<compile_context>
chip_gen: v5e
topology: v5e:2x2
jax: 0.10.0
libtpu: 0.0.40
codegen_flags: <defaults>
</compile_context>

<pallas_src>
import jax
import jax.numpy as jnp
from jax.experimental import pallas as pl
from jax.experimental.pallas import tpu as pltpu

EPS = 1e-5
LANE = 128
MATMUL_DTYPE = jnp.float32   # switch to jnp.bfloat16 on v6e/v7x (loosen test tol)


def _round_up(x, m):
    return (x + m - 1) // m * m


# ---------------------------------------------------------------------------
# In-kernel helpers
# ---------------------------------------------------------------------------
def _conv3x3(x, w_flat):
    """x: (H, W, C) activation (channel-padded, no spatial halo).
    w_flat: (9*C, Co) tap-major flattened weights (bias omitted: BN cancels it).
    Returns (H*W, Co) f32 output of a 3x3 / stride 1 / 'same'-padding conv."""
    H, W, C = x.shape

    # H halo: two zero rows along the outer dim (aligned slab concat,
    # no full zero-filled padded scratch).
    zrow = jnp.zeros((1, W, C), x.dtype)
    xh = jnp.concatenate([zrow, x, zrow], axis=0)                # (H+2, W, C)

    # W halo: two shifted copies with a zero edge column (replaces the 18
    # tile-crossing shifted-reshape copies of the original kernel).
    zcol = jnp.zeros((H + 2, 1, C), x.dtype)
    x_m = jnp.concatenate([zcol, xh[:, :W - 1, :]], axis=1)      # value@w == x[w-1]
    x_p = jnp.concatenate([xh[:, 1:, :], zcol], axis=1)          # value@w == x[w+1]
    shifted = (x_m, xh, x_p)                                     # dx = 0, 1, 2

    # im2col: one deep contraction (K = 9*C) instead of 9 shallow ones.
    taps = [shifted[dx][dy:dy + H].reshape(H * W, C)
            for dy in range(3) for dx in range(3)]
    patch = jnp.concatenate(taps, axis=1)                        # (H*W, 9*C)
    return jnp.dot(patch.astype(MATMUL_DTYPE), w_flat.astype(MATMUL_DTYPE),
                   preferred_element_type=jnp.float32)


def _partial_stats(y):
    """Per-channel partial (sum, sum-of-squares) over the rows of y:(R, C).
    Combined across tiles in the wrapper (two-pass BatchNorm)."""
    s = jnp.sum(y, axis=0, keepdims=True)
    ss = jnp.sum(y * y, axis=0, keepdims=True)
    return jnp.concatenate([s, ss], axis=0)                      # (2, C)


# ---------------------------------------------------------------------------
# Kernels: grid = (N,), one batch image per grid step ("parallel")
# ---------------------------------------------------------------------------
def _conv_stats_kernel(x_ref, w_ref, y_ref, st_ref):
    """conv1 (bias dropped: cancelled by the following BN) + partial stats."""
    _, H, W, _ = x_ref.shape
    Co = y_ref.shape[-1]
    y = _conv3x3(x_ref[0], w_ref[...])                           # (H*W, Co) f32
    y_ref[0] = y.reshape(H, W, Co)
    st_ref[0] = _partial_stats(y)


def _bnrelu_conv_stats_kernel(y1_ref, sc_ref, sh_ref, w_ref, y_ref, st_ref):
    """BN1 (folded affine) + ReLU + conv2 + partial stats."""
    _, H, W, C = y1_ref.shape
    Co = y_ref.shape[-1]
    scale = sc_ref[...].reshape(1, 1, C)
    shift = sh_ref[...].reshape(1, 1, C)
    a = jnp.maximum(y1_ref[0] * scale + shift, 0.0)              # (H, W, C)
    y = _conv3x3(a, w_ref[...])
    y_ref[0] = y.reshape(H, W, Co)
    st_ref[0] = _partial_stats(y)


def _bnrelu_kernel(y_ref, sc_ref, sh_ref, o_ref):
    """Final BN2 (folded affine) + ReLU."""
    C = o_ref.shape[-1]
    scale = sc_ref[...].reshape(1, 1, C)
    shift = sh_ref[...].reshape(1, 1, C)
    o_ref[0] = jnp.maximum(y_ref[0] * scale + shift, 0.0)


# ---------------------------------------------------------------------------
# pallas_call wrappers
# ---------------------------------------------------------------------------
_COMPILER_PARAMS = pltpu.CompilerParams(
    dimension_semantics=("parallel",),           # batch tiles -> both TCs on v7x
    vmem_limit_bytes=32 * 1024 * 1024)           # explicit scoped-VMEM budget


def _per_batch_spec(shape):
    nd = len(shape)
    return pl.BlockSpec((1,) + tuple(shape[1:]),
                        lambda n, nd=nd: (n,) + (0,) * (nd - 1))


def _bcast_spec(shape):
    nd = len(shape)
    return pl.BlockSpec(tuple(shape), lambda n, nd=nd: (0,) * nd)


def _call_conv_stats(x_p, w_flat):
    N, H, W, _ = x_p.shape
    Co = w_flat.shape[-1]
    return pl.pallas_call(
        _conv_stats_kernel,
        grid=(N,),
        in_specs=[_per_batch_spec(x_p.shape), _bcast_spec(w_flat.shape)],
        out_specs=(_per_batch_spec((N, H, W, Co)), _per_batch_spec((N, 2, Co))),
        out_shape=(jax.ShapeDtypeStruct((N, H, W, Co), jnp.float32),
                   jax.ShapeDtypeStruct((N, 2, Co), jnp.float32)),
        compiler_params=_COMPILER_PARAMS,
    )(x_p, w_flat)


def _call_bnrelu_conv_stats(y1, scale, shift, w_flat):
    N, H, W, _ = y1.shape
    Co = w_flat.shape[-1]
    return pl.pallas_call(
        _bnrelu_conv_stats_kernel,
        grid=(N,),
        in_specs=[_per_batch_spec(y1.shape), _bcast_spec(scale.shape),
                  _bcast_spec(shift.shape), _bcast_spec(w_flat.shape)],
        out_specs=(_per_batch_spec((N, H, W, Co)), _per_batch_spec((N, 2, Co))),
        out_shape=(jax.ShapeDtypeStruct((N, H, W, Co), jnp.float32),
                   jax.ShapeDtypeStruct((N, 2, Co), jnp.float32)),
        compiler_params=_COMPILER_PARAMS,
    )(y1, scale, shift, w_flat)


def _call_bnrelu(y2, scale, shift):
    N, H, W, C = y2.shape
    return pl.pallas_call(
        _bnrelu_kernel,
        grid=(N,),
        in_specs=[_per_batch_spec(y2.shape), _bcast_spec(scale.shape),
                  _bcast_spec(shift.shape)],
        out_specs=_per_batch_spec((N, H, W, C)),
        out_shape=jax.ShapeDtypeStruct((N, H, W, C), jnp.float32),
        compiler_params=_COMPILER_PARAMS,
    )(y2, scale, shift)


def _bn_fold(stats, count, gamma_p, beta_p):
    """Combine per-tile (sum, sumsq) partials and fold training-mode BN into a
    per-channel (scale, shift) affine.  Tiny (grid, 2, C) reduction in XLA."""
    s = jnp.sum(stats, axis=0)                         # (2, C)
    mean = s[0] / count
    var = jnp.maximum(s[1] / count - mean * mean, 0.0)  # biased variance
    scale = gamma_p * jax.lax.rsqrt(var + EPS)
    shift = beta_p - mean * scale
    return scale.reshape(1, -1), shift.reshape(1, -1)


# ---------------------------------------------------------------------------
# Public entry point
# ---------------------------------------------------------------------------
def double_conv(x_nchw, params):
    """x_nchw: (N, Cin, H, W) float32. Returns (N, Cout, H, W) float32."""
    w1, b1, g1, bt1, w2, b2, g2, bt2 = params
    del b1, b2   # conv biases cancel exactly against the BN mean subtraction
    N, Cin, H, W = x_nchw.shape
    Cout = w1.shape[0]
    Cin_p = _round_up(Cin, LANE)
    Cout_p = _round_up(Cout, LANE)

    # NCHW -> NHWC; pad channels to a lane-dense multiple of 128.
    x = jnp.transpose(x_nchw.astype(jnp.float32), (0, 2, 3, 1))
    x_p = jnp.pad(x, ((0, 0), (0, 0), (0, 0), (0, Cin_p - Cin)))

    # OIHW -> (dy, dx, ci, co) -> channel-pad -> (9*Cin_p, Cout_p) tap-major.
    def prep_w(w, cin, cin_p, cout, cout_p):
        w = jnp.transpose(w, (2, 3, 1, 0)).astype(jnp.float32)
        w = jnp.pad(w, ((0, 0), (0, 0), (0, cin_p - cin), (0, cout_p - cout)))
        return w.reshape(9 * cin_p, cout_p)

    w1f = prep_w(w1, Cin, Cin_p, Cout, Cout_p)
    w2f = prep_w(w2, Cout, Cout_p, Cout, Cout_p)
    pad_c = (0, Cout_p - Cout)
    g1p, bt1p = jnp.pad(g1, pad_c), jnp.pad(bt1, pad_c)
    g2p, bt2p = jnp.pad(g2, pad_c), jnp.pad(bt2, pad_c)

    count = N * H * W

    # pass 1: conv1 + per-tile BN stats, then fold stats -> (scale, shift)
    y1, st1 = _call_conv_stats(x_p, w1f)
    sc1, sh1 = _bn_fold(st1, count, g1p, bt1p)
    # pass 2: BN1 + ReLU (folded) + conv2 + per-tile BN stats
    y2, st2 = _call_bnrelu_conv_stats(y1, sc1, sh1, w2f)
    sc2, sh2 = _bn_fold(st2, count, g2p, bt2p)
    # pass 3: BN2 + ReLU (folded)
    out_p = _call_bnrelu(y2, sc2, sh2)

    # Drop channel padding, back to NCHW.
    return jnp.transpose(out_p[..., :Cout], (0, 3, 1, 2))


# ---------------------------------------------------------------------------
# Parameters & reference
# ---------------------------------------------------------------------------
def init_params(key, in_channels, out_channels):
    """Deterministic parameter init (shapes match nn.Conv2d / nn.BatchNorm2d)."""
    ks = jax.random.split(key, 8)
    bound1 = 1.0 / jnp.sqrt(in_channels * 9)
    bound2 = 1.0 / jnp.sqrt(out_channels * 9)
    w1 = jax.random.uniform(ks[0], (out_channels, in_channels, 3, 3),
                            jnp.float32, -bound1, bound1)
    b1 = jax.random.uniform(ks[1], (out_channels,), jnp.float32, -bound1, bound1)
    g1 = 1.0 + 0.1 * jax.random.normal(ks[2], (out_channels,), jnp.float32)
    bt1 = 0.1 * jax.random.normal(ks[3], (out_channels,), jnp.float32)
    w2 = jax.random.uniform(ks[4], (out_channels, out_channels, 3, 3),
                            jnp.float32, -bound2, bound2)
    b2 = jax.random.uniform(ks[5], (out_channels,), jnp.float32, -bound2, bound2)
    g2 = 1.0 + 0.1 * jax.random.normal(ks[6], (out_channels,), jnp.float32)
    bt2 = 0.1 * jax.random.normal(ks[7], (out_channels,), jnp.float32)
    return (w1, b1, g1, bt1, w2, b2, g2, bt2)


def double_conv_reference(x, params):
    """Pure-JAX reference reproducing PyTorch forward semantics (NCHW)."""
    w1, b1, g1, bt1, w2, b2, g2, bt2 = params

    def conv(x, w, b):
        y = jax.lax.conv_general_dilated(
            x, w, window_strides=(1, 1), padding=((1, 1), (1, 1)),
            dimension_numbers=("NCHW", "OIHW", "NCHW"))
        return y + b[None, :, None, None]

    def bn_relu(y, g, bt):
        mean = jnp.mean(y, axis=(0, 2, 3), keepdims=True)
        var = jnp.mean((y - mean) ** 2, axis=(0, 2, 3), keepdims=True)
        y_hat = (y - mean) / jnp.sqrt(var + EPS)
        return jnp.maximum(y_hat * g[None, :, None, None]
                           + bt[None, :, None, None], 0.0)

    y = bn_relu(conv(x, w1, b1), g1, bt1)
    return bn_relu(conv(y, w2, b2), g2, bt2)


if __name__ == "__main__":
    key = jax.random.PRNGKey(0)
    k_x, k_p = jax.random.split(key)

    N, Cin, Cout, H, W = 2, 4, 8, 16, 16
    x = jax.random.normal(k_x, (N, Cin, H, W), jnp.float32)
    params = init_params(k_p, Cin, Cout)

    out = jax.block_until_ready(jax.jit(double_conv)(x, params))
    ref = jax.block_until_ready(double_conv_reference(x, params))

    assert out.shape == (N, Cout, H, W)
    err = jnp.max(jnp.abs(out - ref))
    assert jnp.allclose(out, ref, atol=2e-4, rtol=2e-4), f"max abs err = {err}"

    print("KERNEL_OK")
</pallas_src>

<mosaic_0001>
module attributes {stable_mosaic.version = 11 : i64} {
  func.func @_conv_stats_kernel(%arg0: i32, %arg1: memref<1x16x16x128xf32, #tpu.memory_space<vmem>>, %arg2: memref<1152x128xf32, #tpu.memory_space<vmem>>, %arg3: memref<1x16x16x128xf32, #tpu.memory_space<vmem>>, %arg4: memref<1x2x128xf32, #tpu.memory_space<vmem>>) attributes {dimension_semantics = [#tpu.dimension_semantics<parallel>], iteration_bounds = array<i64: 2>, scalar_prefetch = 0 : i64, scratch_operands = 0 : i64, tpu.core_type = #tpu.core_type<tc>, window_params = [{transform_indices = @transform_0, window_bounds = array<i64: 1, 16, 16, 128>}, {pipeline_mode = #tpu.pipeline_mode<synchronous>, transform_indices = @transform_1, window_bounds = array<i64: 1152, 128>}, {transform_indices = @transform_2, window_bounds = array<i64: 1, 16, 16, 128>}, {transform_indices = @transform_3, window_bounds = array<i64: 1, 2, 128>}]} {
    %c0 = arith.constant 0 : index
    %c0_0 = arith.constant 0 : index
    %c0_1 = arith.constant 0 : index
    %c0_2 = arith.constant 0 : index
    %0 = vector.load %arg1[%c0, %c0_0, %c0_1, %c0_2] : memref<1x16x16x128xf32, #tpu.memory_space<vmem>>, vector<1x16x16x128xf32>
    %1 = vector.shape_cast %0 : vector<1x16x16x128xf32> to vector<16x16x128xf32>
    %c0_3 = arith.constant 0 : index
    %c0_4 = arith.constant 0 : index
    %2 = vector.load %arg2[%c0_3, %c0_4] : memref<1152x128xf32, #tpu.memory_space<vmem>>, vector<1152x128xf32>
    %cst = arith.constant 0.000000e+00 : f32
    %3 = vector.broadcast %cst : f32 to vector<1x16x128xf32>
    %4 = tpu.concatenate %3, %1, %3 in 0 : vector<1x16x128xf32>, vector<16x16x128xf32>, vector<1x16x128xf32> -> vector<18x16x128xf32>
    %cst_5 = arith.constant 0.000000e+00 : f32
    %5 = vector.broadcast %cst_5 : f32 to vector<18x1x128xf32>
    %6 = vector.extract_strided_slice %4 {offsets = [0, 0, 0], sizes = [18, 15, 128], strides = [1, 1, 1]} : vector<18x16x128xf32> to vector<18x15x128xf32>
    %7 = tpu.concatenate %5, %6 in 1 : vector<18x1x128xf32>, vector<18x15x128xf32> -> vector<18x16x128xf32>
    %8 = vector.extract_strided_slice %4 {offsets = [0, 1, 0], sizes = [18, 15, 128], strides = [1, 1, 1]} : vector<18x16x128xf32> to vector<18x15x128xf32>
    %9 = tpu.concatenate %8, %5 in 1 : vector<18x15x128xf32>, vector<18x1x128xf32> -> vector<18x16x128xf32>
    %10 = vector.extract_strided_slice %7 {offsets = [0, 0, 0], sizes = [16, 16, 128], strides = [1, 1, 1]} : vector<18x16x128xf32> to vector<16x16x128xf32>
    %11 = vector.shape_cast %10 : vector<16x16x128xf32> to vector<256x128xf32>
    %12 = vector.extract_strided_slice %4 {offsets = [0, 0, 0], sizes = [16, 16, 128], strides = [1, 1, 1]} : vector<18x16x128xf32> to vector<16x16x128xf32>
    %13 = vector.shape_cast %12 : vector<16x16x128xf32> to vector<256x128xf32>
    %14 = vector.extract_strided_slice %9 {offsets = [0, 0, 0], sizes = [16, 16, 128], strides = [1, 1, 1]} : vector<18x16x128xf32> to vector<16x16x128xf32>
    %15 = vector.shape_cast %14 : vector<16x16x128xf32> to vector<256x128xf32>
    %16 = vector.extract_strided_slice %7 {offsets = [1, 0, 0], sizes = [16, 16, 128], strides = [1, 1, 1]} : vector<18x16x128xf32> to vector<16x16x128xf32>
    %17 = vector.shape_cast %16 : vector<16x16x128xf32> to vector<256x128xf32>
    %18 = vector.extract_strided_slice %4 {offsets = [1, 0, 0], sizes = [16, 16, 128], strides = [1, 1, 1]} : vector<18x16x128xf32> to vector<16x16x128xf32>
    %19 = vector.shape_cast %18 : vector<16x16x128xf32> to vector<256x128xf32>
    %20 = vector.extract_strided_slice %9 {offsets = [1, 0, 0], sizes = [16, 16, 128], strides = [1, 1, 1]} : vector<18x16x128xf32> to vector<16x16x128xf32>
    %21 = vector.shape_cast %20 : vector<16x16x128xf32> to vector<256x128xf32>
    %22 = vector.extract_strided_slice %7 {offsets = [2, 0, 0], sizes = [16, 16, 128], strides = [1, 1, 1]} : vector<18x16x128xf32> to vector<16x16x128xf32>
    %23 = vector.shape_cast %22 : vector<16x16x128xf32> to vector<256x128xf32>
    %24 = vector.extract_strided_slice %4 {offsets = [2, 0, 0], sizes = [16, 16, 128], strides = [1, 1, 1]} : vector<18x16x128xf32> to vector<16x16x128xf32>
    %25 = vector.shape_cast %24 : vector<16x16x128xf32> to vector<256x128xf32>
    %26 = vector.extract_strided_slice %9 {offsets = [2, 0, 0], sizes = [16, 16, 128], strides = [1, 1, 1]} : vector<18x16x128xf32> to vector<16x16x128xf32>
    %27 = vector.shape_cast %26 : vector<16x16x128xf32> to vector<256x128xf32>
    %28 = tpu.concatenate %11, %13, %15, %17, %19, %21, %23, %25, %27 in 1 : vector<256x128xf32>, vector<256x128xf32>, vector<256x128xf32>, vector<256x128xf32>, vector<256x128xf32>, vector<256x128xf32>, vector<256x128xf32>, vector<256x128xf32>, vector<256x128xf32> -> vector<256x1152xf32>
    %cst_6 = arith.constant dense<0.000000e+00> : vector<256x128xf32>
    %29 = tpu.matmul %28, %2, %cst_6 {dimension_numbers = #tpu.dot_dimension_numbers<[1], [0], [0], [1], [0, 0, 1, 1], [], []>} : vector<256x1152xf32>, vector<1152x128xf32>, vector<256x128xf32> -> vector<256x128xf32>
    %30 = vector.shape_cast %29 : vector<256x128xf32> to vector<16x16x128xf32>
    %c0_7 = arith.constant 0 : index
    %c0_8 = arith.constant 0 : index
    %c0_9 = arith.constant 0 : index
    %c0_10 = arith.constant 0 : index
    %31 = vector.load %arg3[%c0_7, %c0_8, %c0_9, %c0_10] : memref<1x16x16x128xf32, #tpu.memory_space<vmem>>, vector<1x16x16x128xf32>
    %32 = vector.shape_cast %31 : vector<1x16x16x128xf32> to vector<16x16x128xf32>
    %33 = vector.shape_cast %30 : vector<16x16x128xf32> to vector<1x16x16x128xf32>
    tpu.vector_store %arg3[%c0_7, %c0_8, %c0_9, %c0_10], %33 {strides = array<i32>} : memref<1x16x16x128xf32, #tpu.memory_space<vmem>>, vector<1x16x16x128xf32>,
    %cst_11 = arith.constant dense<0.000000e+00> : vector<128xf32>
    %34 = vector.multi_reduction <add>, %29, %cst_11 [0] : vector<256x128xf32> to vector<128xf32>
    %35 = vector.shape_cast %34 : vector<128xf32> to vector<1x128xf32>
    %36 = arith.mulf %29, %29 : vector<256x128xf32>
    %cst_12 = arith.constant dense<0.000000e+00> : vector<128xf32>
    %37 = vector.multi_reduction <add>, %36, %cst_12 [0] : vector<256x128xf32> to vector<128xf32>
    %38 = vector.shape_cast %37 : vector<128xf32> to vector<1x128xf32>
    %39 = tpu.concatenate %35, %38 in 0 : vector<1x128xf32>, vector<1x128xf32> -> vector<2x128xf32>
    %c0_13 = arith.constant 0 : index
    %c0_14 = arith.constant 0 : index
    %c0_15 = arith.constant 0 : index
    %40 = vector.load %arg4[%c0_13, %c0_14, %c0_15] : memref<1x2x128xf32, #tpu.memory_space<vmem>>, vector<1x2x128xf32>
    %41 = vector.shape_cast %40 : vector<1x2x128xf32> to vector<2x128xf32>
    %42 = vector.shape_cast %39 : vector<2x128xf32> to vector<1x2x128xf32>
    tpu.vector_store %arg4[%c0_13, %c0_14, %c0_15], %42 {strides = array<i32>} : memref<1x2x128xf32, #tpu.memory_space<vmem>>, vector<1x2x128xf32>,
    return
  }
  func.func @transform_0(%arg0: i32) -> (i32, i32, i32, i32) {
    %c0_i32 = arith.constant 0 : i32
    %c0_i32_0 = arith.constant 0 : i32
    %c0_i32_1 = arith.constant 0 : i32
    %c0_i32_2 = arith.constant 0 : i32
    return %arg0, %c0_i32, %c0_i32_0, %c0_i32_1 : i32, i32, i32, i32
  }
  func.func @transform_1(%arg0: i32) -> (i32, i32) {
    %c0_i32 = arith.constant 0 : i32
    %c0_i32_0 = arith.constant 0 : i32
    %c0_i32_1 = arith.constant 0 : i32
    return %c0_i32, %c0_i32_0 : i32, i32
  }
  func.func @transform_2(%arg0: i32) -> (i32, i32, i32, i32) {
    %c0_i32 = arith.constant 0 : i32
    %c0_i32_0 = arith.constant 0 : i32
    %c0_i32_1 = arith.constant 0 : i32
    %c0_i32_2 = arith.constant 0 : i32
    return %arg0, %c0_i32, %c0_i32_0, %c0_i32_1 : i32, i32, i32, i32
  }
  func.func @transform_3(%arg0: i32) -> (i32, i32, i32) {
    %c0_i32 = arith.constant 0 : i32
    %c0_i32_0 = arith.constant 0 : i32
    %c0_i32_1 = arith.constant 0 : i32
    return %arg0, %c0_i32, %c0_i32_0 : i32, i32, i32
  }
}

module attributes {stable_mosaic.version = 11 : i64} {
  func.func @_bnrelu_kernel(%arg0: i32, %arg1: memref<1x16x16x128xf32, #tpu.memory_space<vmem>>, %arg2: memref<1x128xf32, #tpu.memory_space<vmem>>, %arg3: memref<1x128xf32, #tpu.memory_space<vmem>>, %arg4: memref<1x16x16x128xf32, #tpu.memory_space<vmem>>) attributes {dimension_semantics = [#tpu.dimension_semantics<parallel>], iteration_bounds = array<i64: 2>, scalar_prefetch = 0 : i64, scratch_operands = 0 : i64, tpu.core_type = #tpu.core_type<tc>, window_params = [{transform_indices = @transform_0, window_bounds = array<i64: 1, 16, 16, 128>}, {pipeline_mode = #tpu.pipeline_mode<synchronous>, transform_indices = @transform_1, window_bounds = array<i64: 1, 128>}, {pipeline_mode = #tpu.pipeline_mode<synchronous>, transform_indices = @transform_2, window_bounds = array<i64: 1, 128>}, {transform_indices = @transform_3, window_bounds = array<i64: 1, 16, 16, 128>}]} {
    %c0 = arith.constant 0 : index
    %c0_0 = arith.constant 0 : index
    %0 = vector.load %arg2[%c0, %c0_0] : memref<1x128xf32, #tpu.memory_space<vmem>>, vector<1x128xf32>
    %1 = vector.shape_cast %0 : vector<1x128xf32> to vector<1x1x128xf32>
    %c0_1 = arith.constant 0 : index
    %c0_2 = arith.constant 0 : index
    %2 = vector.load %arg3[%c0_1, %c0_2] : memref<1x128xf32, #tpu.memory_space<vmem>>, vector<1x128xf32>
    %3 = vector.shape_cast %2 : vector<1x128xf32> to vector<1x1x128xf32>
    %c0_3 = arith.constant 0 : index
    %c0_4 = arith.constant 0 : index
    %c0_5 = arith.constant 0 : index
    %c0_6 = arith.constant 0 : index
    %4 = vector.load %arg1[%c0_3, %c0_4, %c0_5, %c0_6] : memref<1x16x16x128xf32, #tpu.memory_space<vmem>>, vector<1x16x16x128xf32>
    %5 = vector.shape_cast %4 : vector<1x16x16x128xf32> to vector<16x16x128xf32>
    %6 = vector.broadcast %1 : vector<1x1x128xf32> to vector<16x16x128xf32>
    %7 = arith.mulf %5, %6 : vector<16x16x128xf32>
    %8 = vector.broadcast %3 : vector<1x1x128xf32> to vector<16x16x128xf32>
    %9 = arith.addf %7, %8 : vector<16x16x128xf32>
    %cst = arith.constant 0.000000e+00 : f32
    %10 = vector.broadcast %cst : f32 to vector<16x16x128xf32>
    %11 = arith.maximumf %9, %10 : vector<16x16x128xf32>
    %c0_7 = arith.constant 0 : index
    %c0_8 = arith.constant 0 : index
    %c0_9 = arith.constant 0 : index
    %c0_10 = arith.constant 0 : index
    %12 = vector.load %arg4[%c0_7, %c0_8, %c0_9, %c0_10] : memref<1x16x16x128xf32, #tpu.memory_space<vmem>>, vector<1x16x16x128xf32>
    %13 = vector.shape_cast %12 : vector<1x16x16x128xf32> to vector<16x16x128xf32>
    %14 = vector.shape_cast %11 : vector<16x16x128xf32> to vector<1x16x16x128xf32>
    tpu.vector_store %arg4[%c0_7, %c0_8, %c0_9, %c0_10], %14 {strides = array<i32>} : memref<1x16x16x128xf32, #tpu.memory_space<vmem>>, vector<1x16x16x128xf32>,
    return
  }
  func.func @transform_0(%arg0: i32) -> (i32, i32, i32, i32) {
    %c0_i32 = arith.constant 0 : i32
    %c0_i32_0 = arith.constant 0 : i32
    %c0_i32_1 = arith.constant 0 : i32
    %c0_i32_2 = arith.constant 0 : i32
    return %arg0, %c0_i32, %c0_i32_0, %c0_i32_1 : i32, i32, i32, i32
  }
  func.func @transform_1(%arg0: i32) -> (i32, i32) {
    %c0_i32 = arith.constant 0 : i32
    %c0_i32_0 = arith.constant 0 : i32
    %c0_i32_1 = arith.constant 0 : i32
    return %c0_i32, %c0_i32_0 : i32, i32
  }
  func.func @transform_2(%arg0: i32) -> (i32, i32) {
    %c0_i32 = arith.constant 0 : i32
    %c0_i32_0 = arith.constant 0 : i32
    %c0_i32_1 = arith.constant 0 : i32
    return %c0_i32, %c0_i32_0 : i32, i32
  }
  func.func @transform_3(%arg0: i32) -> (i32, i32, i32, i32) {
    %c0_i32 = arith.constant 0 : i32
    %c0_i32_0 = arith.constant 0 : i32
    %c0_i32_1 = arith.constant 0 : i32
    %c0_i32_2 = arith.constant 0 : i32
    return %arg0, %c0_i32, %c0_i32_0, %c0_i32_1 : i32, i32, i32, i32
  }
}

module attributes {stable_mosaic.version = 11 : i64} {
  func.func @_bnrelu_conv_stats_kernel(%arg0: i32, %arg1: memref<1x16x16x128xf32, #tpu.memory_space<vmem>>, %arg2: memref<1x128xf32, #tpu.memory_space<vmem>>, %arg3: memref<1x128xf32, #tpu.memory_space<vmem>>, %arg4: memref<1152x128xf32, #tpu.memory_space<vmem>>, %arg5: memref<1x16x16x128xf32, #tpu.memory_space<vmem>>, %arg6: memref<1x2x128xf32, #tpu.memory_space<vmem>>) attributes {dimension_semantics = [#tpu.dimension_semantics<parallel>], iteration_bounds = array<i64: 2>, scalar_prefetch = 0 : i64, scratch_operands = 0 : i64, tpu.core_type = #tpu.core_type<tc>, window_params = [{transform_indices = @transform_0, window_bounds = array<i64: 1, 16, 16, 128>}, {pipeline_mode = #tpu.pipeline_mode<synchronous>, transform_indices = @transform_1, window_bounds = array<i64: 1, 128>}, {pipeline_mode = #tpu.pipeline_mode<synchronous>, transform_indices = @transform_2, window_bounds = array<i64: 1, 128>}, {pipeline_mode = #tpu.pipeline_mode<synchronous>, transform_indices = @transform_3, window_bounds = array<i64: 1152, 128>}, {transform_indices = @transform_4, window_bounds = array<i64: 1, 16, 16, 128>}, {transform_indices = @transform_5, window_bounds = array<i64: 1, 2, 128>}]} {
    %c0 = arith.constant 0 : index
    %c0_0 = arith.constant 0 : index
    %0 = vector.load %arg2[%c0, %c0_0] : memref<1x128xf32, #tpu.memory_space<vmem>>, vector<1x128xf32>
    %1 = vector.shape_cast %0 : vector<1x128xf32> to vector<1x1x128xf32>
    %c0_1 = arith.constant 0 : index
    %c0_2 = arith.constant 0 : index
    %2 = vector.load %arg3[%c0_1, %c0_2] : memref<1x128xf32, #tpu.memory_space<vmem>>, vector<1x128xf32>
    %3 = vector.shape_cast %2 : vector<1x128xf32> to vector<1x1x128xf32>
    %c0_3 = arith.constant 0 : index
    %c0_4 = arith.constant 0 : index
    %c0_5 = arith.constant 0 : index
    %c0_6 = arith.constant 0 : index
    %4 = vector.load %arg1[%c0_3, %c0_4, %c0_5, %c0_6] : memref<1x16x16x128xf32, #tpu.memory_space<vmem>>, vector<1x16x16x128xf32>
    %5 = vector.shape_cast %4 : vector<1x16x16x128xf32> to vector<16x16x128xf32>
    %6 = vector.broadcast %1 : vector<1x1x128xf32> to vector<16x16x128xf32>
    %7 = arith.mulf %5, %6 : vector<16x16x128xf32>
    %8 = vector.broadcast %3 : vector<1x1x128xf32> to vector<16x16x128xf32>
    %9 = arith.addf %7, %8 : vector<16x16x128xf32>
    %cst = arith.constant 0.000000e+00 : f32
    %10 = vector.broadcast %cst : f32 to vector<16x16x128xf32>
    %11 = arith.maximumf %9, %10 : vector<16x16x128xf32>
    %c0_7 = arith.constant 0 : index
    %c0_8 = arith.constant 0 : index
    %12 = vector.load %arg4[%c0_7, %c0_8] : memref<1152x128xf32, #tpu.memory_space<vmem>>, vector<1152x128xf32>
    %cst_9 = arith.constant 0.000000e+00 : f32
    %13 = vector.broadcast %cst_9 : f32 to vector<1x16x128xf32>
    %14 = tpu.concatenate %13, %11, %13 in 0 : vector<1x16x128xf32>, vector<16x16x128xf32>, vector<1x16x128xf32> -> vector<18x16x128xf32>
    %cst_10 = arith.constant 0.000000e+00 : f32
    %15 = vector.broadcast %cst_10 : f32 to vector<18x1x128xf32>
    %16 = vector.extract_strided_slice %14 {offsets = [0, 0, 0], sizes = [18, 15, 128], strides = [1, 1, 1]} : vector<18x16x128xf32> to vector<18x15x128xf32>
    %17 = tpu.concatenate %15, %16 in 1 : vector<18x1x128xf32>, vector<18x15x128xf32> -> vector<18x16x128xf32>
    %18 = vector.extract_strided_slice %14 {offsets = [0, 1, 0], sizes = [18, 15, 128], strides = [1, 1, 1]} : vector<18x16x128xf32> to vector<18x15x128xf32>
    %19 = tpu.concatenate %18, %15 in 1 : vector<18x15x128xf32>, vector<18x1x128xf32> -> vector<18x16x128xf32>
    %20 = vector.extract_strided_slice %17 {offsets = [0, 0, 0], sizes = [16, 16, 128], strides = [1, 1, 1]} : vector<18x16x128xf32> to vector<16x16x128xf32>
    %21 = vector.shape_cast %20 : vector<16x16x128xf32> to vector<256x128xf32>
    %22 = vector.extract_strided_slice %14 {offsets = [0, 0, 0], sizes = [16, 16, 128], strides = [1, 1, 1]} : vector<18x16x128xf32> to vector<16x16x128xf32>
    %23 = vector.shape_cast %22 : vector<16x16x128xf32> to vector<256x128xf32>
    %24 = vector.extract_strided_slice %19 {offsets = [0, 0, 0], sizes = [16, 16, 128], strides = [1, 1, 1]} : vector<18x16x128xf32> to vector<16x16x128xf32>
    %25 = vector.shape_cast %24 : vector<16x16x128xf32> to vector<256x128xf32>
    %26 = vector.extract_strided_slice %17 {offsets = [1, 0, 0], sizes = [16, 16, 128], strides = [1, 1, 1]} : vector<18x16x128xf32> to vector<16x16x128xf32>
    %27 = vector.shape_cast %26 : vector<16x16x128xf32> to vector<256x128xf32>
    %28 = vector.extract_strided_slice %14 {offsets = [1, 0, 0], sizes = [16, 16, 128], strides = [1, 1, 1]} : vector<18x16x128xf32> to vector<16x16x128xf32>
    %29 = vector.shape_cast %28 : vector<16x16x128xf32> to vector<256x128xf32>
    %30 = vector.extract_strided_slice %19 {offsets = [1, 0, 0], sizes = [16, 16, 128], strides = [1, 1, 1]} : vector<18x16x128xf32> to vector<16x16x128xf32>
    %31 = vector.shape_cast %30 : vector<16x16x128xf32> to vector<256x128xf32>
    %32 = vector.extract_strided_slice %17 {offsets = [2, 0, 0], sizes = [16, 16, 128], strides = [1, 1, 1]} : vector<18x16x128xf32> to vector<16x16x128xf32>
    %33 = vector.shape_cast %32 : vector<16x16x128xf32> to vector<256x128xf32>
    %34 = vector.extract_strided_slice %14 {offsets = [2, 0, 0], sizes = [16, 16, 128], strides = [1, 1, 1]} : vector<18x16x128xf32> to vector<16x16x128xf32>
    %35 = vector.shape_cast %34 : vector<16x16x128xf32> to vector<256x128xf32>
    %36 = vector.extract_strided_slice %19 {offsets = [2, 0, 0], sizes = [16, 16, 128], strides = [1, 1, 1]} : vector<18x16x128xf32> to vector<16x16x128xf32>
    %37 = vector.shape_cast %36 : vector<16x16x128xf32> to vector<256x128xf32>
    %38 = tpu.concatenate %21, %23, %25, %27, %29, %31, %33, %35, %37 in 1 : vector<256x128xf32>, vector<256x128xf32>, vector<256x128xf32>, vector<256x128xf32>, vector<256x128xf32>, vector<256x128xf32>, vector<256x128xf32>, vector<256x128xf32>, vector<256x128xf32> -> vector<256x1152xf32>
    %cst_11 = arith.constant dense<0.000000e+00> : vector<256x128xf32>
    %39 = tpu.matmul %38, %12, %cst_11 {dimension_numbers = #tpu.dot_dimension_numbers<[1], [0], [0], [1], [0, 0, 1, 1], [], []>} : vector<256x1152xf32>, vector<1152x128xf32>, vector<256x128xf32> -> vector<256x128xf32>
    %40 = vector.shape_cast %39 : vector<256x128xf32> to vector<16x16x128xf32>
    %c0_12 = arith.constant 0 : index
    %c0_13 = arith.constant 0 : index
    %c0_14 = arith.constant 0 : index
    %c0_15 = arith.constant 0 : index
    %41 = vector.load %arg5[%c0_12, %c0_13, %c0_14, %c0_15] : memref<1x16x16x128xf32, #tpu.memory_space<vmem>>, vector<1x16x16x128xf32>
    %42 = vector.shape_cast %41 : vector<1x16x16x128xf32> to vector<16x16x128xf32>
    %43 = vector.shape_cast %40 : vector<16x16x128xf32> to vector<1x16x16x128xf32>
    tpu.vector_store %arg5[%c0_12, %c0_13, %c0_14, %c0_15], %43 {strides = array<i32>} : memref<1x16x16x128xf32, #tpu.memory_space<vmem>>, vector<1x16x16x128xf32>,
    %cst_16 = arith.constant dense<0.000000e+00> : vector<128xf32>
    %44 = vector.multi_reduction <add>, %39, %cst_16 [0] : vector<256x128xf32> to vector<128xf32>
    %45 = vector.shape_cast %44 : vector<128xf32> to vector<1x128xf32>
    %46 = arith.mulf %39, %39 : vector<256x128xf32>
    %cst_17 = arith.constant dense<0.000000e+00> : vector<128xf32>
    %47 = vector.multi_reduction <add>, %46, %cst_17 [0] : vector<256x128xf32> to vector<128xf32>
    %48 = vector.shape_cast %47 : vector<128xf32> to vector<1x128xf32>
    %49 = tpu.concatenate %45, %48 in 0 : vector<1x128xf32>, vector<1x128xf32> -> vector<2x128xf32>
    %c0_18 = arith.constant 0 : index
    %c0_19 = arith.constant 0 : index
    %c0_20 = arith.constant 0 : index
    %50 = vector.load %arg6[%c0_18, %c0_19, %c0_20] : memref<1x2x128xf32, #tpu.memory_space<vmem>>, vector<1x2x128xf32>
    %51 = vector.shape_cast %50 : vector<1x2x128xf32> to vector<2x128xf32>
    %52 = vector.shape_cast %49 : vector<2x128xf32> to vector<1x2x128xf32>
    tpu.vector_store %arg6[%c0_18, %c0_19, %c0_20], %52 {strides = array<i32>} : memref<1x2x128xf32, #tpu.memory_space<vmem>>, vector<1x2x128xf32>,
    return
  }
  func.func @transform_0(%arg0: i32) -> (i32, i32, i32, i32) {
    %c0_i32 = arith.constant 0 : i32
    %c0_i32_0 = arith.constant 0 : i32
    %c0_i32_1 = arith.constant 0 : i32
    %c0_i32_2 = arith.constant 0 : i32
    return %arg0, %c0_i32, %c0_i32_0, %c0_i32_1 : i32, i32, i32, i32
  }
  func.func @transform_1(%arg0: i32) -> (i32, i32) {
    %c0_i32 = arith.constant 0 : i32
    %c0_i32_0 = arith.constant 0 : i32
    %c0_i32_1 = arith.constant 0 : i32
    return %c0_i32, %c0_i32_0 : i32, i32
  }
  func.func @transform_2(%arg0: i32) -> (i32, i32) {
    %c0_i32 = arith.constant 0 : i32
    %c0_i32_0 = arith.constant 0 : i32
    %c0_i32_1 = arith.constant 0 : i32
    return %c0_i32, %c0_i32_0 : i32, i32
  }
  func.func @transform_3(%arg0: i32) -> (i32, i32) {
    %c0_i32 = arith.constant 0 : i32
    %c0_i32_0 = arith.constant 0 : i32
    %c0_i32_1 = arith.constant 0 : i32
    return %c0_i32, %c0_i32_0 : i32, i32
  }
  func.func @transform_4(%arg0: i32) -> (i32, i32, i32, i32) {
    %c0_i32 = arith.constant 0 : i32
    %c0_i32_0 = arith.constant 0 : i32
    %c0_i32_1 = arith.constant 0 : i32
    %c0_i32_2 = arith.constant 0 : i32
    return %arg0, %c0_i32, %c0_i32_0, %c0_i32_1 : i32, i32, i32, i32
  }
  func.func @transform_5(%arg0: i32) -> (i32, i32, i32) {
    %c0_i32 = arith.constant 0 : i32
    %c0_i32_0 = arith.constant 0 : i32
    %c0_i32_1 = arith.constant 0 : i32
    return %arg0, %c0_i32, %c0_i32_0 : i32, i32, i32
  }
}

</mosaic_0001>

<llo_original>
// kernel: double_conv.5
$region0: #{double_conv.5}
  #allocation0 [shape = 'u32[]', space=smem, size = 0x4, offset = 0x4, fixed_abs, tag = 'smem constant byte address 0x4 - core index']
  #allocation1 [shape = 'u32[72,128]{1,0:T(1,128)}', space=vmem, size = 0x9000, scoped, tag = 'internal scratch']
  %s0 = inlined_call_operand.vmem [shape: f32[2,16,16,128], index: 0, kind: input, shape index: {}]
  %s1 = inlined_call_operand.vmem [shape: f32[1,128], index: 1, kind: input, shape index: {}]
  %s2 = inlined_call_operand.vmem [shape: f32[1,128], index: 2, kind: input, shape index: {}]
  %s3 = inlined_call_operand.vmem [shape: f32[2,16,16,128], index: 3, kind: output, shape index: {}]
  %s4 = sld [smem:[#allocation0]]
  $region45: #{double_conv.5} parent=0
    _
  %s6 = ssub.s32 1, %s4
  %s7 = scalar_select 0, %s6, %s4
  loop: start=0, step=1, limit=4
  $region2: #{double_conv.5} parent=0 // loop_pre_header
    _
  $region3: #{double_conv.5} parent=0 // loop_header
    %s9 = sphi 0, %s13
    %p10 = scmp.ge.s32.totalorder %s9, 4
    %s19 = sphi 0, %s21
    %s22 = sphi 0, %s19
    %s23 = sphi 0, %s22
    %s39 = sphi 0, %s23
    %s43 = sphi 0, %s43
    %s45 = sphi 0, %s43
    %s46 = sphi 0, %s45
    %s60 = sphi 0, %s46
    %s64 = sphi 0, %s64
    %s66 = sphi 0, %s64
    %s67 = sphi 0, %s66
    %s81 = sphi 0, %s67
    %s87 = sphi 0, %s89
    %s90 = sphi 0, %s87
    %s91 = sphi 0, %s90
    %s107 = sphi 0, %s91
  $region4: #{double_conv.5} parent=0 // loop_header_branch
    %12 = sbr.rel (%p10) target = $region8
  $region5: #{double_conv.5} parent=0 // loop_body
    %s14 = ssub.s32 %s9, 1
    %s15 = ssub.s32 %s9, 2
    %s16 = sadd.s32 %s9, 1
    %s17 = ssub.s32 %s9, %s16
    %p18 = scmp.eq.s32.totalorder %s17, 0
    %s20 = sadd.s32 %s19, 1
    %s21 = scalar_select %p18, %s19, %s20
    %p24 = pneg %p18
    %p25 = scmp.eq.s32.totalorder %s9, 1
    %p26 = por %p24, %p25
    %p27 = scmp.ne.s32.totalorder %s19, %s22
    %p28 = scmp.eq.s32.totalorder %s9, 0
    %p29 = por %p27, %p28
    %p30 = scmp.ne.s32.totalorder %s19, %s22
    %p31 = scmp.eq.s32.totalorder %s14, 1
    %p32 = por %p30, %p31
    %p33 = scmp.ne.s32.totalorder %s22, %s23
    %p34 = scmp.eq.s32.totalorder %s14, 0
    %p35 = por %p33, %p34
    %p36 = scmp.ne.s32.totalorder %s22, %s23
    %p37 = scmp.eq.s32.totalorder %s15, 1
    %p38 = por %p36, %p37
    %p40 = scmp.ne.s32.totalorder %s23, %s39
    %p41 = scmp.eq.s32.totalorder %s15, 0
    %p42 = por %p40, %p41
    %s44 = sadd.s32 %s43, 1
    %p47 = scmp.eq.s32.totalorder %s9, 1
    %p48 = scmp.ne.s32.totalorder %s43, %s45
    %p49 = scmp.eq.s32.totalorder %s9, 0
    %p50 = por %p48, %p49
    %p51 = scmp.ne.s32.totalorder %s43, %s45
    %p52 = scmp.eq.s32.totalorder %s14, 1
    %p53 = por %p51, %p52
    %p54 = scmp.ne.s32.totalorder %s45, %s46
    %p55 = scmp.eq.s32.totalorder %s14, 0
    %p56 = por %p54, %p55
    %p57 = scmp.ne.s32.totalorder %s45, %s46
    %p58 = scmp.eq.s32.totalorder %s15, 1
    %p59 = por %p57, %p58
    %p61 = scmp.ne.s32.totalorder %s46, %s60
    %p62 = scmp.eq.s32.totalorder %s15, 0
    %p63 = por %p61, %p62
    %s65 = sadd.s32 %s64, 1
    %p68 = scmp.eq.s32.totalorder %s9, 1
    %p69 = scmp.ne.s32.totalorder %s64, %s66
    %p70 = scmp.eq.s32.totalorder %s9, 0
    %p71 = por %p69, %p70
    %p72 = scmp.ne.s32.totalorder %s64, %s66
    %p73 = scmp.eq.s32.totalorder %s14, 1
    %p74 = por %p72, %p73
    %p75 = scmp.ne.s32.totalorder %s66, %s67
    %p76 = scmp.eq.s32.totalorder %s14, 0
    %p77 = por %p75, %p76
    %p78 = scmp.ne.s32.totalorder %s66, %s67
    %p79 = scmp.eq.s32.totalorder %s15, 1
    %p80 = por %p78, %p79
    %p82 = scmp.ne.s32.totalorder %s67, %s81
    %p83 = scmp.eq.s32.totalorder %s15, 0
    %p84 = por %p82, %p83
    %s85 = ssub.s32 %s9, %s16
    %p86 = scmp.eq.s32.totalorder %s85, 0
    %s88 = sadd.s32 %s87, 1
    %s89 = scalar_select %p86, %s87, %s88
    %p92 = pneg %p86
    %p93 = scmp.eq.s32.totalorder %s9, 1
    %p94 = por %p92, %p93
    %p95 = scmp.ne.s32.totalorder %s87, %s90
    %p96 = scmp.eq.s32.totalorder %s9, 0
    %p97 = por %p95, %p96
    %p98 = scmp.ne.s32.totalorder %s87, %s90
    %p99 = scmp.eq.s32.totalorder %s14, 1
    %p100 = por %p98, %p99
    %p101 = scmp.ne.s32.totalorder %s90, %s91
    %p102 = scmp.eq.s32.totalorder %s14, 0
    %p103 = por %p101, %p102
    %p104 = scmp.ne.s32.totalorder %s90, %s91
    %p105 = scmp.eq.s32.totalorder %s15, 1
    %p106 = por %p104, %p105
    %p108 = scmp.ne.s32.totalorder %s91, %s107
    %p109 = scmp.eq.s32.totalorder %s15, 0
    %p110 = por %p108, %p109
    %p111 = scmp.le.s32.totalorder 1, %s9
    %p112 = scmp.lt.s32.totalorder %s9, 3
    %p113 = pnand %p111, %p112
    %p114 = pneg %p113
    // Predicated region
    $region9: #{double_conv.5} parent=5 // pred_check
      _
    $region10: #{double_conv.5} parent=5 // pred_check_branch
      %116 = sbr.rel (%p113) target = $region12
    $region11: #{double_conv.5} parent=5 // pred_region
      %s117 = ssub.s32 %s9, 1
      // Predicated region
      $region13: #{double_conv.5} parent=11 // pred_check
        %p118 = pneg %p56
      $region14: #{double_conv.5} parent=11 // pred_check_branch
        %120 = sbr.rel (%p118) target = $region16
      $region15: #{double_conv.5} parent=11 // pred_region
        _
      $region16: #{double_conv.5} parent=11 // pred_fallthru
        _
      // Predicated region
      $region17: #{double_conv.5} parent=11 // pred_check
        %p121 = pneg %p77
      $region18: #{double_conv.5} parent=11 // pred_check_branch
        %123 = sbr.rel (%p121) target = $region20
      $region19: #{double_conv.5} parent=11 // pred_region
        _
      $region20: #{double_conv.5} parent=11 // pred_fallthru
        _
    $region12: #{double_conv.5} parent=5 // pred_fallthru
      _
    %p124 = scmp.lt.s32.totalorder %s9, 2
    // Predicated region
    $region21: #{double_conv.5} parent=5 // pred_check
      %p125 = pneg %p124
    $region22: #{double_conv.5} parent=5 // pred_check_branch
      %127 = sbr.rel (%p125) target = $region24
    $region23: #{double_conv.5} parent=5 // pred_region
      // Predicated region
      $region25: #{double_conv.5} parent=23 // pred_check
        %p128 = pneg %p29
      $region26: #{double_conv.5} parent=23 // pred_check_branch
        %130 = sbr.rel (%p128) target = $region28
      $region27: #{double_conv.5} parent=23 // pred_region
        %p131 = scmp.lt.s32.totalorder %s9, 1
        %s132 = scalar_select %p131, %s9, 1
        %s133 = smul.addr %s132, 32
        %s134 = smul.addr %s133, 8
        %s135 = scalar_lea.vmem %s0, %s134
      $region28: #{double_conv.5} parent=23 // pred_fallthru
        _
    $region24: #{double_conv.5} parent=5 // pred_fallthru
      _
    %p136 = scmp.le.s32.totalorder 1, %s9
    %p137 = scmp.lt.s32.totalorder %s9, 3
    %p138 = pnand %p136, %p137
    %p139 = pneg %p138
    // Predicated region
    $region29: #{double_conv.5} parent=5 // pred_check
      _
    $region30: #{double_conv.5} parent=5 // pred_check_branch
      %141 = sbr.rel (%p138) target = $region32
    $region31: #{double_conv.5} parent=5 // pred_region
      %s142 = ssub.s32 %s9, 1
      %p143 = scmp.lt.s32.totalorder %s14, 1
      %s144 = scalar_select %p143, %s14, 1
      %s145 = smul.addr %s144, 32
      %s146 = smul.addr %s145, 8
      %s147 = scalar_lea.vmem %s0, %s146
      %p148 = pneg %p35
      %p149 = pneg %p32
      %p150 = pneg %p56
      %p151 = pneg %p53
      %p152 = pneg %p77
      %p153 = pneg %p74
      %p154 = pneg %p103
      %p155 = pneg %p100
      %p156 = scmp.lt.s32.totalorder %s14, 1
      %s157 = scalar_select %p156, %s14, 1
      %s158 = smul.addr %s157, 32
      %s159 = smul.addr %s158, 8
      %s160 = scalar_lea.vmem %s3, %s159
      %p161 = scmp.lt.s32.totalorder %s14, 1
      %s162 = scalar_select %p161, %s14, 1
      %s163 = smul.addr %s162, 32
      %s164 = smul.addr %s163, 8
      %s165 = scalar_lea.vmem %s0, %s164
      %p166 = scmp.lt.s32.totalorder %s14, 1
      %s167 = scalar_select %p166, %s14, 1
      %s168 = smul.addr %s167, 32
      %s169 = smul.addr %s168, 8
      %s170 = scalar_lea.vmem %s3, %s169
      %v171 = vld [vmem:[%s1] sm:$0x1]
      %v172 = vld [vmem:[%s2] sm:$0x1]
      %v173 = vld [vmem:[%s165] sm:$0xff]
      %v174 = vld [vmem:[%s165 + $0x8] sm:$0xff]
      %v175 = vld [vmem:[%s165 + $0x10] sm:$0xff]
      %v176 = vld [vmem:[%s165 + $0x18] sm:$0xff]
      %v177 = vld [vmem:[%s165 + $0x20] sm:$0xff]
      %v178 = vld [vmem:[%s165 + $0x28] sm:$0xff]
      %v179 = vld [vmem:[%s165 + $0x30] sm:$0xff]
      %v180 = vld [vmem:[%s165 + $0x38] sm:$0xff]
      %v181 = vld [vmem:[%s165 + $0x40] sm:$0xff]
      %v182 = vld [vmem:[%s165 + $0x48] sm:$0xff]
      %v183 = vld [vmem:[%s165 + $0x50] sm:$0xff]
      %v184 = vld [vmem:[%s165 + $0x58] sm:$0xff]
      %v185 = vld [vmem:[%s165 + $0x60] sm:$0xff]
      %v186 = vld [vmem:[%s165 + $0x68] sm:$0xff]
      %v187 = vld [vmem:[%s165 + $0x70] sm:$0xff]
      %v188 = vld [vmem:[%s165 + $0x78] sm:$0xff]
      %v189 = vld [vmem:[%s165 + $0x80] sm:$0xff]
      %v190 = vld [vmem:[%s165 + $0x88] sm:$0xff]
      %v191 = vld [vmem:[%s165 + $0x90] sm:$0xff]
      %v192 = vld [vmem:[%s165 + $0x98] sm:$0xff]
      %v193 = vld [vmem:[%s165 + $0xa0] sm:$0xff]
      %v194 = vld [vmem:[%s165 + $0xa8] sm:$0xff]
      %v195 = vld [vmem:[%s165 + $0xb0] sm:$0xff]
      %v196 = vld [vmem:[%s165 + $0xb8] sm:$0xff]
      %v197 = vld [vmem:[%s165 + $0xc0] sm:$0xff]
      %v198 = vld [vmem:[%s165 + $0xc8] sm:$0xff]
      %v199 = vld [vmem:[%s165 + $0xd0] sm:$0xff]
      %v200 = vld [vmem:[%s165 + $0xd8] sm:$0xff]
      %v201 = vld [vmem:[%s165 + $0xe0] sm:$0xff]
      %v202 = vld [vmem:[%s165 + $0xe8] sm:$0xff]
      %v203 = vld [vmem:[%s165 + $0xf0] sm:$0xff]
      %v204 = vld [vmem:[%s165 + $0xf8] sm:$0xff]
      %v206 = vperm.slane %v171, 0
      %v208 = vmul.f32 %v173, %v206
      %v209 = vmul.f32 %v174, %v206
      %v210 = vmul.f32 %v175, %v206
      %v211 = vmul.f32 %v176, %v206
      %v212 = vmul.f32 %v177, %v206
      %v213 = vmul.f32 %v178, %v206
      %v214 = vmul.f32 %v179, %v206
      %v215 = vmul.f32 %v180, %v206
      %v216 = vmul.f32 %v181, %v206
      %v217 = vmul.f32 %v182, %v206
      %v218 = vmul.f32 %v183, %v206
      %v219 = vmul.f32 %v184, %v206
      %v220 = vmul.f32 %v185, %v206
      %v221 = vmul.f32 %v186, %v206
      %v222 = vmul.f32 %v187, %v206
      %v223 = vmul.f32 %v188, %v206
      %v224 = vmul.f32 %v189, %v206
      %v225 = vmul.f32 %v190, %v206
      %v226 = vmul.f32 %v191, %v206
      %v227 = vmul.f32 %v192, %v206
      %v228 = vmul.f32 %v193, %v206
      %v229 = vmul.f32 %v194, %v206
      %v230 = vmul.f32 %v195, %v206
      %v231 = vmul.f32 %v196, %v206
      %v232 = vmul.f32 %v197, %v206
      %v233 = vmul.f32 %v198, %v206
      %v234 = vmul.f32 %v199, %v206
      %v235 = vmul.f32 %v200, %v206
      %v236 = vmul.f32 %v201, %v206
      %v237 = vmul.f32 %v202, %v206
      %v238 = vmul.f32 %v203, %v206
      %v239 = vmul.f32 %v204, %v206
      %v241 = vperm.slane %v172, 0
      %v243 = vadd.f32 %v208, %v241
      %v244 = vadd.f32 %v209, %v241
      %v245 = vadd.f32 %v210, %v241
      %v246 = vadd.f32 %v211, %v241
      %v247 = vadd.f32 %v212, %v241
      %v248 = vadd.f32 %v213, %v241
      %v249 = vadd.f32 %v214, %v241
      %v250 = vadd.f32 %v215, %v241
      %v251 = vadd.f32 %v216, %v241
      %v252 = vadd.f32 %v217, %v241
      %v253 = vadd.f32 %v218, %v241
      %v254 = vadd.f32 %v219, %v241
      %v255 = vadd.f32 %v220, %v241
      %v256 = vadd.f32 %v221, %v241
      %v257 = vadd.f32 %v222, %v241
      %v258 = vadd.f32 %v223, %v241
      %v259 = vadd.f32 %v224, %v241
      %v260 = vadd.f32 %v225, %v241
      %v261 = vadd.f32 %v226, %v241
      %v262 = vadd.f32 %v227, %v241
      %v263 = vadd.f32 %v228, %v241
      %v264 = vadd.f32 %v229, %v241
      %v265 = vadd.f32 %v230, %v241
      %v266 = vadd.f32 %v231, %v241
      %v267 = vadd.f32 %v232, %v241
      %v268 = vadd.f32 %v233, %v241
      %v269 = vadd.f32 %v234, %v241
      %v270 = vadd.f32 %v235, %v241
      %v271 = vadd.f32 %v236, %v241
      %v272 = vadd.f32 %v237, %v241
      %v273 = vadd.f32 %v238, %v241
      %v274 = vadd.f32 %v239, %v241
      %v275 = vmax.f32 %v243, 0.0
      %v276 = vmax.f32 %v244, 0.0
      %v277 = vmax.f32 %v245, 0.0
      %v278 = vmax.f32 %v246, 0.0
      %v279 = vmax.f32 %v247, 0.0
      %v280 = vmax.f32 %v248, 0.0
      %v281 = vmax.f32 %v249, 0.0
      %v282 = vmax.f32 %v250, 0.0
      %v283 = vmax.f32 %v251, 0.0
      %v284 = vmax.f32 %v252, 0.0
      %v285 = vmax.f32 %v253, 0.0
      %v286 = vmax.f32 %v254, 0.0
      %v287 = vmax.f32 %v255, 0.0
      %v288 = vmax.f32 %v256, 0.0
      %v289 = vmax.f32 %v257, 0.0
      %v290 = vmax.f32 %v258, 0.0
      %v291 = vmax.f32 %v259, 0.0
      %v292 = vmax.f32 %v260, 0.0
      %v293 = vmax.f32 %v261, 0.0
      %v294 = vmax.f32 %v262, 0.0
      %v295 = vmax.f32 %v263, 0.0
      %v296 = vmax.f32 %v264, 0.0
      %v297 = vmax.f32 %v265, 0.0
      %v298 = vmax.f32 %v266, 0.0
      %v299 = vmax.f32 %v267, 0.0
      %v300 = vmax.f32 %v268, 0.0
      %v301 = vmax.f32 %v269, 0.0
      %v302 = vmax.f32 %v270, 0.0
      %v303 = vmax.f32 %v271, 0.0
      %v304 = vmax.f32 %v272, 0.0
      %v305 = vmax.f32 %v273, 0.0
      %v306 = vmax.f32 %v274, 0.0
      %307 = vst [vmem:[%s170] sm:$0xff] %v275
      %308 = vst [vmem:[%s170 + $0x8] sm:$0xff] %v276
      %309 = vst [vmem:[%s170 + $0x10] sm:$0xff] %v277
      %310 = vst [vmem:[%s170 + $0x18] sm:$0xff] %v278
      %311 = vst [vmem:[%s170 + $0x20] sm:$0xff] %v279
      %312 = vst [vmem:[%s170 + $0x28] sm:$0xff] %v280
      %313 = vst [vmem:[%s170 + $0x30] sm:$0xff] %v281
      %314 = vst [vmem:[%s170 + $0x38] sm:$0xff] %v282
      %315 = vst [vmem:[%s170 + $0x40] sm:$0xff] %v283
      %316 = vst [vmem:[%s170 + $0x48] sm:$0xff] %v284
      %317 = vst [vmem:[%s170 + $0x50] sm:$0xff] %v285
      %318 = vst [vmem:[%s170 + $0x58] sm:$0xff] %v286
      %319 = vst [vmem:[%s170 + $0x60] sm:$0xff] %v287
      %320 = vst [vmem:[%s170 + $0x68] sm:$0xff] %v288
      %321 = vst [vmem:[%s170 + $0x70] sm:$0xff] %v289
      %322 = vst [vmem:[%s170 + $0x78] sm:$0xff] %v290
      %323 = vst [vmem:[%s170 + $0x80] sm:$0xff] %v291
      %324 = vst [vmem:[%s170 + $0x88] sm:$0xff] %v292
      %325 = vst [vmem:[%s170 + $0x90] sm:$0xff] %v293
      %326 = vst [vmem:[%s170 + $0x98] sm:$0xff] %v294
      %327 = vst [vmem:[%s170 + $0xa0] sm:$0xff] %v295
      %328 = vst [vmem:[%s170 + $0xa8] sm:$0xff] %v296
      %329 = vst [vmem:[%s170 + $0xb0] sm:$0xff] %v297
      %330 = vst [vmem:[%s170 + $0xb8] sm:$0xff] %v298
      %331 = vst [vmem:[%s170 + $0xc0] sm:$0xff] %v299
      %332 = vst [vmem:[%s170 + $0xc8] sm:$0xff] %v300
      %333 = vst [vmem:[%s170 + $0xd0] sm:$0xff] %v301
      %334 = vst [vmem:[%s170 + $0xd8] sm:$0xff] %v302
      %335 = vst [vmem:[%s170 + $0xe0] sm:$0xff] %v303
      %336 = vst [vmem:[%s170 + $0xe8] sm:$0xff] %v304
      %337 = vst [vmem:[%s170 + $0xf0] sm:$0xff] %v305
      %338 = vst [vmem:[%s170 + $0xf8] sm:$0xff] %v306
      %p339 = scmp.lt.s32.totalorder %s14, 1
      %s340 = scalar_select %p339, %s14, 1
      %s341 = smul.addr %s340, 32
      %s342 = smul.addr %s341, 8
      %s343 = scalar_lea.vmem %s3, %s342
      // Predicated region
      $region33: #{double_conv.5} parent=31 // pred_check
        %p344 = pneg %p100
      $region34: #{double_conv.5} parent=31 // pred_check_branch
        %346 = sbr.rel (%p344) target = $region36
      $region35: #{double_conv.5} parent=31 // pred_region
        _
      $region36: #{double_conv.5} parent=31 // pred_fallthru
        _
    $region32: #{double_conv.5} parent=5 // pred_fallthru
      _
    %p347 = scmp.le.s32.totalorder 2, %s9
    // Predicated region
    $region37: #{double_conv.5} parent=5 // pred_check
      %p348 = pneg %p347
    $region38: #{double_conv.5} parent=5 // pred_check_branch
      %350 = sbr.rel (%p348) target = $region40
    $region39: #{double_conv.5} parent=5 // pred_region
      %s351 = ssub.s32 %s9, 2
      // Predicated region
      $region41: #{double_conv.5} parent=39 // pred_check
        %p352 = pneg %p106
      $region42: #{double_conv.5} parent=39 // pred_check_branch
        %354 = sbr.rel (%p352) target = $region44
      $region43: #{double_conv.5} parent=39 // pred_region
        %p355 = scmp.lt.s32.totalorder %s15, 1
        %s356 = scalar_select %p355, %s15, 1
        %s357 = smul.addr %s356, 32
        %s358 = smul.addr %s357, 8
        %s359 = scalar_lea.vmem %s3, %s358
      $region44: #{double_conv.5} parent=39 // pred_fallthru
        _
    $region40: #{double_conv.5} parent=5 // pred_fallthru
      _
  $region6: #{double_conv.5} parent=0 // loop_footer
    %s13 = sadd.s32 1, %s9
  $region7: #{double_conv.5} parent=0 // loop_footer_branch
    %8 = sbr.rel target = $region3
  $region8: #{double_conv.5} parent=0 // loop_exit
    _

// kernel: double_conv.3
$region0: #{double_conv.3}
  #allocation0 [shape = 'u32[]', space=smem, size = 0x4, offset = 0x4, fixed_abs, tag = 'smem constant byte address 0x4 - core index']
  #allocation1 [shape = 'u32[72,128]{1,0:T(1,128)}', space=vmem, size = 0x9000, scoped, tag = 'internal scratch']
  %s0 = inlined_call_operand.vmem [shape: f32[2,16,16,128], index: 0, kind: input, shape index: {}]
  %s1 = inlined_call_operand.vmem [shape: f32[1152,128], index: 1, kind: input, shape index: {}]
  %s2 = inlined_call_operand.vmem [shape: f32[2,16,16,128], index: 2, kind: output, shape index: {0}]
  %s3 = inlined_call_operand.vmem [shape: f32[2,2,128], index: 3, kind: output, shape index: {1}]
  %4 = xla_tuple %s2, %s3
  %s5 = sld [smem:[#allocation0]]
  $region49: #{double_conv.3} parent=0
    _
  %s7 = ssub.s32 1, %s5
  %s8 = scalar_select 0, %s7, %s5
  loop: start=0, step=1, limit=4
  $region2: #{double_conv.3} parent=0 // loop_pre_header
    _
  $region3: #{double_conv.3} parent=0 // loop_header
    %s10 = sphi 0, %s14
    %p11 = scmp.ge.s32.totalorder %s10, 4
    %s20 = sphi 0, %s22
    %s23 = sphi 0, %s20
    %s24 = sphi 0, %s23
    %s40 = sphi 0, %s24
    %s44 = sphi 0, %s44
    %s46 = sphi 0, %s44
    %s47 = sphi 0, %s46
    %s61 = sphi 0, %s47
    %s67 = sphi 0, %s69
    %s70 = sphi 0, %s67
    %s71 = sphi 0, %s70
    %s87 = sphi 0, %s71
    %s93 = sphi 0, %s95
    %s96 = sphi 0, %s93
    %s97 = sphi 0, %s96
    %s113 = sphi 0, %s97
  $region4: #{double_conv.3} parent=0 // loop_header_branch
    %13 = sbr.rel (%p11) target = $region8
  $region5: #{double_conv.3} parent=0 // loop_body
    %s15 = ssub.s32 %s10, 1
    %s16 = ssub.s32 %s10, 2
    %s17 = sadd.s32 %s10, 1
    %s18 = ssub.s32 %s10, %s17
    %p19 = scmp.eq.s32.totalorder %s18, 0
    %s21 = sadd.s32 %s20, 1
    %s22 = scalar_select %p19, %s20, %s21
    %p25 = pneg %p19
    %p26 = scmp.eq.s32.totalorder %s10, 1
    %p27 = por %p25, %p26
    %p28 = scmp.ne.s32.totalorder %s20, %s23
    %p29 = scmp.eq.s32.totalorder %s10, 0
    %p30 = por %p28, %p29
    %p31 = scmp.ne.s32.totalorder %s20, %s23
    %p32 = scmp.eq.s32.totalorder %s15, 1
    %p33 = por %p31, %p32
    %p34 = scmp.ne.s32.totalorder %s23, %s24
    %p35 = scmp.eq.s32.totalorder %s15, 0
    %p36 = por %p34, %p35
    %p37 = scmp.ne.s32.totalorder %s23, %s24
    %p38 = scmp.eq.s32.totalorder %s16, 1
    %p39 = por %p37, %p38
    %p41 = scmp.ne.s32.totalorder %s24, %s40
    %p42 = scmp.eq.s32.totalorder %s16, 0
    %p43 = por %p41, %p42
    %s45 = sadd.s32 %s44, 1
    %p48 = scmp.eq.s32.totalorder %s10, 1
    %p49 = scmp.ne.s32.totalorder %s44, %s46
    %p50 = scmp.eq.s32.totalorder %s10, 0
    %p51 = por %p49, %p50
    %p52 = scmp.ne.s32.totalorder %s44, %s46
    %p53 = scmp.eq.s32.totalorder %s15, 1
    %p54 = por %p52, %p53
    %p55 = scmp.ne.s32.totalorder %s46, %s47
    %p56 = scmp.eq.s32.totalorder %s15, 0
    %p57 = por %p55, %p56
    %p58 = scmp.ne.s32.totalorder %s46, %s47
    %p59 = scmp.eq.s32.totalorder %s16, 1
    %p60 = por %p58, %p59
    %p62 = scmp.ne.s32.totalorder %s47, %s61
    %p63 = scmp.eq.s32.totalorder %s16, 0
    %p64 = por %p62, %p63
    %s65 = ssub.s32 %s10, %s17
    %p66 = scmp.eq.s32.totalorder %s65, 0
    %s68 = sadd.s32 %s67, 1
    %s69 = scalar_select %p66, %s67, %s68
    %p72 = pneg %p66
    %p73 = scmp.eq.s32.totalorder %s10, 1
    %p74 = por %p72, %p73
    %p75 = scmp.ne.s32.totalorder %s67, %s70
    %p76 = scmp.eq.s32.totalorder %s10, 0
    %p77 = por %p75, %p76
    %p78 = scmp.ne.s32.totalorder %s67, %s70
    %p79 = scmp.eq.s32.totalorder %s15, 1
    %p80 = por %p78, %p79
    %p81 = scmp.ne.s32.totalorder %s70, %s71
    %p82 = scmp.eq.s32.totalorder %s15, 0
    %p83 = por %p81, %p82
    %p84 = scmp.ne.s32.totalorder %s70, %s71
    %p85 = scmp.eq.s32.totalorder %s16, 1
    %p86 = por %p84, %p85
    %p88 = scmp.ne.s32.totalorder %s71, %s87
    %p89 = scmp.eq.s32.totalorder %s16, 0
    %p90 = por %p88, %p89
    %s91 = ssub.s32 %s10, %s17
    %p92 = scmp.eq.s32.totalorder %s91, 0
    %s94 = sadd.s32 %s93, 1
    %s95 = scalar_select %p92, %s93, %s94
    %p98 = pneg %p92
    %p99 = scmp.eq.s32.totalorder %s10, 1
    %p100 = por %p98, %p99
    %p101 = scmp.ne.s32.totalorder %s93, %s96
    %p102 = scmp.eq.s32.totalorder %s10, 0
    %p103 = por %p101, %p102
    %p104 = scmp.ne.s32.totalorder %s93, %s96
    %p105 = scmp.eq.s32.totalorder %s15, 1
    %p106 = por %p104, %p105
    %p107 = scmp.ne.s32.totalorder %s96, %s97
    %p108 = scmp.eq.s32.totalorder %s15, 0
    %p109 = por %p107, %p108
    %p110 = scmp.ne.s32.totalorder %s96, %s97
    %p111 = scmp.eq.s32.totalorder %s16, 1
    %p112 = por %p110, %p111
    %p114 = scmp.ne.s32.totalorder %s97, %s113
    %p115 = scmp.eq.s32.totalorder %s16, 0
    %p116 = por %p114, %p115
    %p117 = scmp.le.s32.totalorder 1, %s10
    %p118 = scmp.lt.s32.totalorder %s10, 3
    %p119 = pnand %p117, %p118
    %p120 = pneg %p119
    // Predicated region
    $region9: #{double_conv.3} parent=5 // pred_check
      _
    $region10: #{double_conv.3} parent=5 // pred_check_branch
      %122 = sbr.rel (%p119) target = $region12
    $region11: #{double_conv.3} parent=5 // pred_region
      %s123 = ssub.s32 %s10, 1
      // Predicated region
      $region13: #{double_conv.3} parent=11 // pred_check
        %p124 = pneg %p57
      $region14: #{double_conv.3} parent=11 // pred_check_branch
        %126 = sbr.rel (%p124) target = $region16
      $region15: #{double_conv.3} parent=11 // pred_region
        _
      $region16: #{double_conv.3} parent=11 // pred_fallthru
        _
    $region12: #{double_conv.3} parent=5 // pred_fallthru
      _
    %p127 = scmp.lt.s32.totalorder %s10, 2
    // Predicated region
    $region17: #{double_conv.3} parent=5 // pred_check
      %p128 = pneg %p127
    $region18: #{double_conv.3} parent=5 // pred_check_branch
      %130 = sbr.rel (%p128) target = $region20
    $region19: #{double_conv.3} parent=5 // pred_region
      // Predicated region
      $region21: #{double_conv.3} parent=19 // pred_check
        %p131 = pneg %p30
      $region22: #{double_conv.3} parent=19 // pred_check_branch
        %133 = sbr.rel (%p131) target = $region24
      $region23: #{double_conv.3} parent=19 // pred_region
        %p134 = scmp.lt.s32.totalorder %s10, 1
        %s135 = scalar_select %p134, %s10, 1
        %s136 = smul.addr %s135, 32
        %s137 = smul.addr %s136, 8
        %s138 = scalar_lea.vmem %s0, %s137
      $region24: #{double_conv.3} parent=19 // pred_fallthru
        _
    $region20: #{double_conv.3} parent=5 // pred_fallthru
      _
    %p139 = scmp.le.s32.totalorder 1, %s10
    %p140 = scmp.lt.s32.totalorder %s10, 3
    %p141 = pnand %p139, %p140
    %p142 = pneg %p141
    // Predicated region
    $region25: #{double_conv.3} parent=5 // pred_check
      _
    $region26: #{double_conv.3} parent=5 // pred_check_branch
      %144 = sbr.rel (%p141) target = $region28
    $region27: #{double_conv.3} parent=5 // pred_region
      %s145 = ssub.s32 %s10, 1
      %p146 = scmp.lt.s32.totalorder %s15, 1
      %s147 = scalar_select %p146, %s15, 1
      %s148 = smul.addr %s147, 32
      %s149 = smul.addr %s148, 8
      %s150 = scalar_lea.vmem %s0, %s149
      %p151 = pneg %p36
      %p152 = pneg %p33
      %p153 = pneg %p57
      %p154 = pneg %p54
      %p155 = pneg %p83
      %p156 = pneg %p80
      %p157 = scmp.lt.s32.totalorder %s15, 1
      %s158 = scalar_select %p157, %s15, 1
      %s159 = smul.addr %s158, 32
      %s160 = smul.addr %s159, 8
      %s161 = scalar_lea.vmem %s2, %s160
      %p162 = pneg %p109
      %p163 = pneg %p106
      %p164 = scmp.lt.s32.totalorder %s15, 1
      %s165 = scalar_select %p164, %s15, 1
      %s166 = smul.addr %s165, 2
      %s167 = scalar_lea.vmem %s3, %s166
      %p168 = scmp.lt.s32.totalorder %s15, 1
      %s169 = scalar_select %p168, %s15, 1
      %s170 = smul.addr %s169, 32
      %s171 = smul.addr %s170, 8
      %s172 = scalar_lea.vmem %s0, %s171
      %p173 = scmp.lt.s32.totalorder %s15, 1
      %s174 = scalar_select %p173, %s15, 1
      %s175 = smul.addr %s174, 32
      %s176 = smul.addr %s175, 8
      %s177 = scalar_lea.vmem %s2, %s176
      %p178 = scmp.lt.s32.totalorder %s15, 1
      %s179 = scalar_select %p178, %s15, 1
      %s180 = smul.addr %s179, 2
      %s181 = scalar_lea.vmem %s3, %s180
      %v182 = vld [vmem:[%s172] sm:$0xff]
      %v183 = vld [vmem:[%s172 + $0x8] sm:$0xff]
      %v184 = vld [vmem:[%s172 + $0x10] sm:$0xff]
      %v185 = vld [vmem:[%s172 + $0x18] sm:$0xff]
      %v186 = vld [vmem:[%s172 + $0x20] sm:$0xff]
      %v187 = vld [vmem:[%s172 + $0x28] sm:$0xff]
      %v188 = vld [vmem:[%s172 + $0x30] sm:$0xff]
      %v189 = vld [vmem:[%s172 + $0x38] sm:$0xff]
      %v190 = vld [vmem:[%s172 + $0x40] sm:$0xff]
      %v191 = vld [vmem:[%s172 + $0x48] sm:$0xff]
      %v192 = vld [vmem:[%s172 + $0x50] sm:$0xff]
      %v193 = vld [vmem:[%s172 + $0x58] sm:$0xff]
      %v194 = vld [vmem:[%s172 + $0x60] sm:$0xff]
      %v195 = vld [vmem:[%s172 + $0x68] sm:$0xff]
      %v196 = vld [vmem:[%s172 + $0x70] sm:$0xff]
      %v197 = vld [vmem:[%s172 + $0x78] sm:$0xff]
      %v198 = vld [vmem:[%s172 + $0x80] sm:$0xff]
      %v199 = vld [vmem:[%s172 + $0x88] sm:$0xff]
      %v200 = vld [vmem:[%s172 + $0x90] sm:$0xff]
      %v201 = vld [vmem:[%s172 + $0x98] sm:$0xff]
      %v202 = vld [vmem:[%s172 + $0xa0] sm:$0xff]
      %v203 = vld [vmem:[%s172 + $0xa8] sm:$0xff]
      %v204 = vld [vmem:[%s172 + $0xb0] sm:$0xff]
      %v205 = vld [vmem:[%s172 + $0xb8] sm:$0xff]
      %v206 = vld [vmem:[%s172 + $0xc0] sm:$0xff]
      %v207 = vld [vmem:[%s172 + $0xc8] sm:$0xff]
      %v208 = vld [vmem:[%s172 + $0xd0] sm:$0xff]
      %v209 = vld [vmem:[%s172 + $0xd8] sm:$0xff]
      %v210 = vld [vmem:[%s172 + $0xe0] sm:$0xff]
      %v211 = vld [vmem:[%s172 + $0xe8] sm:$0xff]
      %v212 = vld [vmem:[%s172 + $0xf0] sm:$0xff]
      %v213 = vld [vmem:[%s172 + $0xf8] sm:$0xff]
      %v214 = vld [vmem:[%s1] sm:$0xff]
      %v215 = vld [vmem:[%s1 + $0x8] sm:$0xff]
      %v216 = vld [vmem:[%s1 + $0x10] sm:$0xff]
      %v217 = vld [vmem:[%s1 + $0x18] sm:$0xff]
      %v218 = vld [vmem:[%s1 + $0x20] sm:$0xff]
      %v219 = vld [vmem:[%s1 + $0x28] sm:$0xff]
      %v220 = vld [vmem:[%s1 + $0x30] sm:$0xff]
      %v221 = vld [vmem:[%s1 + $0x38] sm:$0xff]
      %v222 = vld [vmem:[%s1 + $0x40] sm:$0xff]
      %v223 = vld [vmem:[%s1 + $0x48] sm:$0xff]
      %v224 = vld [vmem:[%s1 + $0x50] sm:$0xff]
      %v225 = vld [vmem:[%s1 + $0x58] sm:$0xff]
      %v226 = vld [vmem:[%s1 + $0x60] sm:$0xff]
      %v227 = vld [vmem:[%s1 + $0x68] sm:$0xff]
      %v228 = vld [vmem:[%s1 + $0x70] sm:$0xff]
      %v229 = vld [vmem:[%s1 + $0x78] sm:$0xff]
      %v230 = vld [vmem:[%s1 + $0x80] sm:$0xff]
      %v231 = vld [vmem:[%s1 + $0x88] sm:$0xff]
      %v232 = vld [vmem:[%s1 + $0x90] sm:$0xff]
      %v233 = vld [vmem:[%s1 + $0x98] sm:$0xff]
      %v234 = vld [vmem:[%s1 + $0xa0] sm:$0xff]
      %v235 = vld [vmem:[%s1 + $0xa8] sm:$0xff]
      %v236 = vld [vmem:[%s1 + $0xb0] sm:$0xff]
      %v237 = vld [vmem:[%s1 + $0xb8] sm:$0xff]
      %v238 = vld [vmem:[%s1 + $0xc0] sm:$0xff]
      %v239 = vld [vmem:[%s1 + $0xc8] sm:$0xff]
      %v240 = vld [vmem:[%s1 + $0xd0] sm:$0xff]
      %v241 = vld [vmem:[%s1 + $0xd8] sm:$0xff]
      %v242 = vld [vmem:[%s1 + $0xe0] sm:$0xff]
      %v243 = vld [vmem:[%s1 + $0xe8] sm:$0xff]
      %v244 = vld [vmem:[%s1 + $0xf0] sm:$0xff]
      %v245 = vld [vmem:[%s1 + $0xf8] sm:$0xff]
      %v246 = vld [vmem:[%s1 + $0x100] sm:$0xff]
      %v247 = vld [vmem:[%s1 + $0x108] sm:$0xff]
      %v248 = vld [vmem:[%s1 + $0x110] sm:$0xff]
      %v249 = vld [vmem:[%s1 + $0x118] sm:$0xff]
      %v250 = vld [vmem:[%s1 + $0x120] sm:$0xff]
      %v251 = vld [vmem:[%s1 + $0x128] sm:$0xff]
      %v252 = vld [vmem:[%s1 + $0x130] sm:$0xff]
      %v253 = vld [vmem:[%s1 + $0x138] sm:$0xff]
      %v254 = vld [vmem:[%s1 + $0x140] sm:$0xff]
      %v255 = vld [vmem:[%s1 + $0x148] sm:$0xff]
      %v256 = vld [vmem:[%s1 + $0x150] sm:$0xff]
      %v257 = vld [vmem:[%s1 + $0x158] sm:$0xff]
      %v258 = vld [vmem:[%s1 + $0x160] sm:$0xff]
      %v259 = vld [vmem:[%s1 + $0x168] sm:$0xff]
      %v260 = vld [vmem:[%s1 + $0x170] sm:$0xff]
      %v261 = vld [vmem:[%s1 + $0x178] sm:$0xff]
      %v262 = vld [vmem:[%s1 + $0x180] sm:$0xff]
      %v263 = vld [vmem:[%s1 + $0x188] sm:$0xff]
      %v264 = vld [vmem:[%s1 + $0x190] sm:$0xff]
      %v265 = vld [vmem:[%s1 + $0x198] sm:$0xff]
      %v266 = vld [vmem:[%s1 + $0x1a0] sm:$0xff]
      %v267 = vld [vmem:[%s1 + $0x1a8] sm:$0xff]
      %v268 = vld [vmem:[%s1 + $0x1b0] sm:$0xff]
      %v269 = vld [vmem:[%s1 + $0x1b8] sm:$0xff]
      %v270 = vld [vmem:[%s1 + $0x1c0] sm:$0xff]
      %v271 = vld [vmem:[%s1 + $0x1c8] sm:$0xff]
      %v272 = vld [vmem:[%s1 + $0x1d0] sm:$0xff]
      %v273 = vld [vmem:[%s1 + $0x1d8] sm:$0xff]
      %v274 = vld [vmem:[%s1 + $0x1e0] sm:$0xff]
      %v275 = vld [vmem:[%s1 + $0x1e8] sm:$0xff]
      %v276 = vld [vmem:[%s1 + $0x1f0] sm:$0xff]
      %v277 = vld [vmem:[%s1 + $0x1f8] sm:$0xff]
      %v278 = vld [vmem:[%s1 + $0x200] sm:$0xff]
      %v279 = vld [vmem:[%s1 + $0x208] sm:$0xff]
      %v280 = vld [vmem:[%s1 + $0x210] sm:$0xff]
      %v281 = vld [vmem:[%s1 + $0x218] sm:$0xff]
      %v282 = vld [vmem:[%s1 + $0x220] sm:$0xff]
      %v283 = vld [vmem:[%s1 + $0x228] sm:$0xff]
      %v284 = vld [vmem:[%s1 + $0x230] sm:$0xff]
      %v285 = vld [vmem:[%s1 + $0x238] sm:$0xff]
      %v286 = vld [vmem:[%s1 + $0x240] sm:$0xff]
      %v287 = vld [vmem:[%s1 + $0x248] sm:$0xff]
      %v288 = vld [vmem:[%s1 + $0x250] sm:$0xff]
      %v289 = vld [vmem:[%s1 + $0x258] sm:$0xff]
      %v290 = vld [vmem:[%s1 + $0x260] sm:$0xff]
      %v291 = vld [vmem:[%s1 + $0x268] sm:$0xff]
      %v292 = vld [vmem:[%s1 + $0x270] sm:$0xff]
      %v293 = vld [vmem:[%s1 + $0x278] sm:$0xff]
      %v294 = vld [vmem:[%s1 + $0x280] sm:$0xff]
      %v295 = vld [vmem:[%s1 + $0x288] sm:$0xff]
      %v296 = vld [vmem:[%s1 + $0x290] sm:$0xff]
      %v297 = vld [vmem:[%s1 + $0x298] sm:$0xff]
      %v298 = vld [vmem:[%s1 + $0x2a0] sm:$0xff]
      %v299 = vld [vmem:[%s1 + $0x2a8] sm:$0xff]
      %v300 = vld [vmem:[%s1 + $0x2b0] sm:$0xff]
      %v301 = vld [vmem:[%s1 + $0x2b8] sm:$0xff]
      %v302 = vld [vmem:[%s1 + $0x2c0] sm:$0xff]
      %v303 = vld [vmem:[%s1 + $0x2c8] sm:$0xff]
      %v304 = vld [vmem:[%s1 + $0x2d0] sm:$0xff]
      %v305 = vld [vmem:[%s1 + $0x2d8] sm:$0xff]
      %v306 = vld [vmem:[%s1 + $0x2e0] sm:$0xff]
      %v307 = vld [vmem:[%s1 + $0x2e8] sm:$0xff]
      %v308 = vld [vmem:[%s1 + $0x2f0] sm:$0xff]
      %v309 = vld [vmem:[%s1 + $0x2f8] sm:$0xff]
      %v310 = vld [vmem:[%s1 + $0x300] sm:$0xff]
      %v311 = vld [vmem:[%s1 + $0x308] sm:$0xff]
      %v312 = vld [vmem:[%s1 + $0x310] sm:$0xff]
      %v313 = vld [vmem:[%s1 + $0x318] sm:$0xff]
      %v314 = vld [vmem:[%s1 + $0x320] sm:$0xff]
      %v315 = vld [vmem:[%s1 + $0x328] sm:$0xff]
      %v316 = vld [vmem:[%s1 + $0x330] sm:$0xff]
      %v317 = vld [vmem:[%s1 + $0x338] sm:$0xff]
      %v318 = vld [vmem:[%s1 + $0x340] sm:$0xff]
      %v319 = vld [vmem:[%s1 + $0x348] sm:$0xff]
      %v320 = vld [vmem:[%s1 + $0x350] sm:$0xff]
      %v321 = vld [vmem:[%s1 + $0x358] sm:$0xff]
      %v322 = vld [vmem:[%s1 + $0x360] sm:$0xff]
      %v323 = vld [vmem:[%s1 + $0x368] sm:$0xff]
      %v324 = vld [vmem:[%s1 + $0x370] sm:$0xff]
      %v325 = vld [vmem:[%s1 + $0x378] sm:$0xff]
      %v326 = vld [vmem:[%s1 + $0x380] sm:$0xff]
      %v327 = vld [vmem:[%s1 + $0x388] sm:$0xff]
      %v328 = vld [vmem:[%s1 + $0x390] sm:$0xff]
      %v329 = vld [vmem:[%s1 + $0x398] sm:$0xff]
      %v330 = vld [vmem:[%s1 + $0x3a0] sm:$0xff]
      %v331 = vld [vmem:[%s1 + $0x3a8] sm:$0xff]
      %v332 = vld [vmem:[%s1 + $0x3b0] sm:$0xff]
      %v333 = vld [vmem:[%s1 + $0x3b8] sm:$0xff]
      %v334 = vld [vmem:[%s1 + $0x3c0] sm:$0xff]
      %v335 = vld [vmem:[%s1 + $0x3c8] sm:$0xff]
      %v336 = vld [vmem:[%s1 + $0x3d0] sm:$0xff]
      %v337 = vld [vmem:[%s1 + $0x3d8] sm:$0xff]
      %v338 = vld [vmem:[%s1 + $0x3e0] sm:$0xff]
      %v339 = vld [vmem:[%s1 + $0x3e8] sm:$0xff]
      %v340 = vld [vmem:[%s1 + $0x3f0] sm:$0xff]
      %v341 = vld [vmem:[%s1 + $0x3f8] sm:$0xff]
      %v342 = vld [vmem:[%s1 + $0x400] sm:$0xff]
      %v343 = vld [vmem:[%s1 + $0x408] sm:$0xff]
      %v344 = vld [vmem:[%s1 + $0x410] sm:$0xff]
      %v345 = vld [vmem:[%s1 + $0x418] sm:$0xff]
      %v346 = vld [vmem:[%s1 + $0x420] sm:$0xff]
      %v347 = vld [vmem:[%s1 + $0x428] sm:$0xff]
      %v348 = vld [vmem:[%s1 + $0x430] sm:$0xff]
      %v349 = vld [vmem:[%s1 + $0x438] sm:$0xff]
      %v350 = vld [vmem:[%s1 + $0x440] sm:$0xff]
      %v351 = vld [vmem:[%s1 + $0x448] sm:$0xff]
      %v352 = vld [vmem:[%s1 + $0x450] sm:$0xff]
      %v353 = vld [vmem:[%s1 + $0x458] sm:$0xff]
      %v354 = vld [vmem:[%s1 + $0x460] sm:$0xff]
      %v355 = vld [vmem:[%s1 + $0x468] sm:$0xff]
      %v356 = vld [vmem:[%s1 + $0x470] sm:$0xff]
      %v357 = vld [vmem:[%s1 + $0x478] sm:$0xff]
      %vm391 = vcmask 1040384
      %v392 = vrot.slane 0.0, 7
      %v393 = vsel %vm391, %v392, %v392
      %v394 = vrot.slane %v182, 7
      %v395 = vrot.slane %v183, 7
      %v396 = vsel %vm391, %v394, %v395
      %v397 = vrot.slane %v184, 7
      %v398 = vrot.slane %v185, 7
      %v399 = vsel %vm391, %v397, %v398
      %v400 = vrot.slane %v186, 7
      %v401 = vrot.slane %v187, 7
      %v402 = vsel %vm391, %v400, %v401
      %v403 = vrot.slane %v188, 7
      %v404 = vrot.slane %v189, 7
      %v405 = vsel %vm391, %v403, %v404
      %v406 = vrot.slane %v190, 7
      %v407 = vrot.slane %v191, 7
      %v408 = vsel %vm391, %v406, %v407
      %v409 = vrot.slane %v192, 7
      %v410 = vrot.slane %v193, 7
      %v411 = vsel %vm391, %v409, %v410
      %v412 = vrot.slane %v194, 7
      %v413 = vrot.slane %v195, 7
      %v414 = vsel %vm391, %v412, %v413
      %v415 = vrot.slane %v196, 7
      %v416 = vrot.slane %v197, 7
      %v417 = vsel %vm391, %v415, %v416
      %v418 = vrot.slane %v198, 7
      %v419 = vrot.slane %v199, 7
      %v420 = vsel %vm391, %v418, %v419
      %v421 = vrot.slane %v200, 7
      %v422 = vrot.slane %v201, 7
      %v423 = vsel %vm391, %v421, %v422
      %v424 = vrot.slane %v202, 7
      %v425 = vrot.slane %v203, 7
      %v426 = vsel %vm391, %v424, %v425
      %v427 = vrot.slane %v204, 7
      %v428 = vrot.slane %v205, 7
      %v429 = vsel %vm391, %v427, %v428
      %v430 = vrot.slane %v206, 7
      %v431 = vrot.slane %v207, 7
      %v432 = vsel %vm391, %v430, %v431
      %v433 = vrot.slane %v208, 7
      %v434 = vrot.slane %v209, 7
      %v435 = vsel %vm391, %v433, %v434
      %v436 = vrot.slane %v210, 7
      %v437 = vrot.slane %v211, 7
      %v438 = vsel %vm391, %v436, %v437
      %v439 = vrot.slane %v212, 7
      %v440 = vrot.slane %v213, 7
      %v441 = vsel %vm391, %v439, %v440
      %v476 = vsel %vm391, 0.0, %v392
      %v477 = vsel %vm391, 0.0, %v394
      %v478 = vsel %vm391, 0.0, %v397
      %v479 = vsel %vm391, 0.0, %v400
      %v480 = vsel %vm391, 0.0, %v403
      %v481 = vsel %vm391, 0.0, %v406
      %v482 = vsel %vm391, 0.0, %v409
      %v483 = vsel %vm391, 0.0, %v412
      %v484 = vsel %vm391, 0.0, %v415
      %v485 = vsel %vm391, 0.0, %v418
      %v486 = vsel %vm391, 0.0, %v421
      %v487 = vsel %vm391, 0.0, %v424
      %v488 = vsel %vm391, 0.0, %v427
      %v489 = vsel %vm391, 0.0, %v430
      %v490 = vsel %vm391, 0.0, %v433
      %v491 = vsel %vm391, 0.0, %v436
      %v492 = vsel %vm391, 0.0, %v439
      %vm493 = vcmask 1046528
      %v494 = vrot.slane 0.0, 1
      %v495 = vsel %vm493, %v494, %v494
      %v496 = vrot.slane %v182, 1
      %v497 = vrot.slane %v183, 1
      %v498 = vsel %vm493, %v496, %v497
      %v499 = vrot.slane %v184, 1
      %v500 = vrot.slane %v185, 1
      %v501 = vsel %vm493, %v499, %v500
      %v502 = vrot.slane %v186, 1
      %v503 = vrot.slane %v187, 1
      %v504 = vsel %vm493, %v502, %v503
      %v505 = vrot.slane %v188, 1
      %v506 = vrot.slane %v189, 1
      %v507 = vsel %vm493, %v505, %v506
      %v508 = vrot.slane %v190, 1
      %v509 = vrot.slane %v191, 1
      %v510 = vsel %vm493, %v508, %v509
      %v511 = vrot.slane %v192, 1
      %v512 = vrot.slane %v193, 1
      %v513 = vsel %vm493, %v511, %v512
      %v514 = vrot.slane %v194, 1
      %v515 = vrot.slane %v195, 1
      %v516 = vsel %vm493, %v514, %v515
      %v517 = vrot.slane %v196, 1
      %v518 = vrot.slane %v197, 1
      %v519 = vsel %vm493, %v517, %v518
      %v520 = vrot.slane %v198, 1
      %v521 = vrot.slane %v199, 1
      %v522 = vsel %vm493, %v520, %v521
      %v523 = vrot.slane %v200, 1
      %v524 = vrot.slane %v201, 1
      %v525 = vsel %vm493, %v523, %v524
      %v526 = vrot.slane %v202, 1
      %v527 = vrot.slane %v203, 1
      %v528 = vsel %vm493, %v526, %v527
      %v529 = vrot.slane %v204, 1
      %v530 = vrot.slane %v205, 1
      %v531 = vsel %vm493, %v529, %v530
      %v532 = vrot.slane %v206, 1
      %v533 = vrot.slane %v207, 1
      %v534 = vsel %vm493, %v532, %v533
      %v535 = vrot.slane %v208, 1
      %v536 = vrot.slane %v209, 1
      %v537 = vsel %vm493, %v535, %v536
      %v538 = vrot.slane %v210, 1
      %v539 = vrot.slane %v211, 1
      %v540 = vsel %vm493, %v538, %v539
      %v541 = vrot.slane %v212, 1
      %v542 = vrot.slane %v213, 1
      %v543 = vsel %vm493, %v541, %v542
      %v578 = vsel %vm493, %v494, 0.0
      %v579 = vsel %vm493, %v497, 0.0
      %v580 = vsel %vm493, %v500, 0.0
      %v581 = vsel %vm493, %v503, 0.0
      %v582 = vsel %vm493, %v506, 0.0
      %v583 = vsel %vm493, %v509, 0.0
      %v584 = vsel %vm493, %v512, 0.0
      %v585 = vsel %vm493, %v515, 0.0
      %v586 = vsel %vm493, %v518, 0.0
      %v587 = vsel %vm493, %v521, 0.0
      %v588 = vsel %vm493, %v524, 0.0
      %v589 = vsel %vm493, %v527, 0.0
      %v590 = vsel %vm493, %v530, 0.0
      %v591 = vsel %vm493, %v533, 0.0
      %v592 = vsel %vm493, %v536, 0.0
      %v593 = vsel %vm493, %v539, 0.0
      %v594 = vsel %vm493, %v542, 0.0
      %595 = vmatpush.msra.mxu0 %v229
      %596 = vmatpush.msra.mxu0 %v228
      %597 = vmatpush.msra.mxu0 %v227
      %598 = vmatpush.msra.mxu0 %v226
      %599 = vmatpush.msra.mxu0 %v225
      %600 = vmatpush.msra.mxu0 %v224
      %601 = vmatpush.msra.mxu0 %v223
      %602 = vmatpush.msra.mxu0 %v222
      %603 = vmatpush.msra.mxu0 %v221
      %604 = vmatpush.msra.mxu0 %v220
      %605 = vmatpush.msra.mxu0 %v219
      %606 = vmatpush.msra.mxu0 %v218
      %607 = vmatpush.msra.mxu0 %v217
      %608 = vmatpush.msra.mxu0 %v216
      %609 = vmatpush.msra.mxu0 %v215
      %610 = vmatpush.msra.mxu0 %v214
      %611 = vmatmul.f32.gmra.mxu0 %v476
      %v612 = vpop.f32.mrf.mxu0
      %v613 = vadd.f32 0.0, %v612
      %614 = vmatmul.f32.gmra.mxu0 %v393
      %v615 = vpop.f32.mrf.mxu0
      %v616 = vadd.f32 0.0, %v615
      %617 = vmatmul.f32.gmra.mxu0 %v477
      %v618 = vpop.f32.mrf.mxu0
      %v619 = vadd.f32 0.0, %v618
      %620 = vmatmul.f32.gmra.mxu0 %v396
      %v621 = vpop.f32.mrf.mxu0
      %v622 = vadd.f32 0.0, %v621
      %623 = vmatmul.f32.gmra.mxu0 %v478
      %v624 = vpop.f32.mrf.mxu0
      %v625 = vadd.f32 0.0, %v624
      %626 = vmatmul.f32.gmra.mxu0 %v399
      %v627 = vpop.f32.mrf.mxu0
      %v628 = vadd.f32 0.0, %v627
      %629 = vmatmul.f32.gmra.mxu0 %v479
      %v630 = vpop.f32.mrf.mxu0
      %v631 = vadd.f32 0.0, %v630
      %632 = vmatmul.f32.gmra.mxu0 %v402
      %v633 = vpop.f32.mrf.mxu0
      %v634 = vadd.f32 0.0, %v633
      %635 = vmatmul.f32.gmra.mxu0 %v480
      %v636 = vpop.f32.mrf.mxu0
      %v637 = vadd.f32 0.0, %v636
      %638 = vmatmul.f32.gmra.mxu0 %v405
      %v639 = vpop.f32.mrf.mxu0
      %v640 = vadd.f32 0.0, %v639
      %641 = vmatmul.f32.gmra.mxu0 %v481
      %v642 = vpop.f32.mrf.mxu0
      %v643 = vadd.f32 0.0, %v642
      %644 = vmatmul.f32.gmra.mxu0 %v408
      %v645 = vpop.f32.mrf.mxu0
      %v646 = vadd.f32 0.0, %v645
      %647 = vmatmul.f32.gmra.mxu0 %v482
      %v648 = vpop.f32.mrf.mxu0
      %v649 = vadd.f32 0.0, %v648
      %650 = vmatmul.f32.gmra.mxu0 %v411
      %v651 = vpop.f32.mrf.mxu0
      %v652 = vadd.f32 0.0, %v651
      %653 = vmatmul.f32.gmra.mxu0 %v483
      %v654 = vpop.f32.mrf.mxu0
      %v655 = vadd.f32 0.0, %v654
      %656 = vmatmul.f32.gmra.mxu0 %v414
      %v657 = vpop.f32.mrf.mxu0
      %v658 = vadd.f32 0.0, %v657
      %659 = vmatmul.f32.gmra.mxu0 %v484
      %v660 = vpop.f32.mrf.mxu0
      %v661 = vadd.f32 0.0, %v660
      %662 = vmatmul.f32.gmra.mxu0 %v417
      %v663 = vpop.f32.mrf.mxu0
      %v664 = vadd.f32 0.0, %v663
      %665 = vmatmul.f32.gmra.mxu0 %v485
      %v666 = vpop.f32.mrf.mxu0
      %v667 = vadd.f32 0.0, %v666
      %668 = vmatmul.f32.gmra.mxu0 %v420
      %v669 = vpop.f32.mrf.mxu0
      %v670 = vadd.f32 0.0, %v669
      %671 = vmatmul.f32.gmra.mxu0 %v486
      %v672 = vpop.f32.mrf.mxu0
      %v673 = vadd.f32 0.0, %v672
      %674 = vmatmul.f32.gmra.mxu0 %v423
      %v675 = vpop.f32.mrf.mxu0
      %v676 = vadd.f32 0.0, %v675
      %677 = vmatmul.f32.gmra.mxu0 %v487
      %v678 = vpop.f32.mrf.mxu0
      %v679 = vadd.f32 0.0, %v678
      %680 = vmatmul.f32.gmra.mxu0 %v426
      %v681 = vpop.f32.mrf.mxu0
      %v682 = vadd.f32 0.0, %v681
      %683 = vmatmul.f32.gmra.mxu0 %v488
      %v684 = vpop.f32.mrf.mxu0
      %v685 = vadd.f32 0.0, %v684
      %686 = vmatmul.f32.gmra.mxu0 %v429
      %v687 = vpop.f32.mrf.mxu0
      %v688 = vadd.f32 0.0, %v687
      %689 = vmatmul.f32.gmra.mxu0 %v489
      %v690 = vpop.f32.mrf.mxu0
      %v691 = vadd.f32 0.0, %v690
      %692 = vmatmul.f32.gmra.mxu0 %v432
      %v693 = vpop.f32.mrf.mxu0
      %v694 = vadd.f32 0.0, %v693
      %695 = vmatmul.f32.gmra.mxu0 %v490
      %v696 = vpop.f32.mrf.mxu0
      %v697 = vadd.f32 0.0, %v696
      %698 = vmatmul.f32.gmra.mxu0 %v435
      %v699 = vpop.f32.mrf.mxu0
      %v700 = vadd.f32 0.0, %v699
      %701 = vmatmul.f32.gmra.mxu0 %v491
      %v702 = vpop.f32.mrf.mxu0
      %v703 = vadd.f32 0.0, %v702
      %704 = vmatmul.f32.gmra.mxu0 %v438
      %v705 = vpop.f32.mrf.mxu0
      %v706 = vadd.f32 0.0, %v705
      %707 = vdwg.mxu0
      %708 = vmatpush.msra.mxu0 %v245
      %709 = vmatpush.msra.mxu0 %v244
      %710 = vmatpush.msra.mxu0 %v243
      %711 = vmatpush.msra.mxu0 %v242
      %712 = vmatpush.msra.mxu0 %v241
      %713 = vmatpush.msra.mxu0 %v240
      %714 = vmatpush.msra.mxu0 %v239
      %715 = vmatpush.msra.mxu0 %v238
      %716 = vmatpush.msra.mxu0 %v237
      %717 = vmatpush.msra.mxu0 %v236
      %718 = vmatpush.msra.mxu0 %v235
      %719 = vmatpush.msra.mxu0 %v234
      %720 = vmatpush.msra.mxu0 %v233
      %721 = vmatpush.msra.mxu0 %v232
      %722 = vmatpush.msra.mxu0 %v231
      %723 = vmatpush.msra.mxu0 %v230
      %724 = vmatmul.f32.gmra.mxu0 0.0
      %v725 = vpop.f32.mrf.mxu0
      %v726 = vadd.f32 %v613, %v725
      %727 = vmatmul.f32.gmra.mxu0 0.0
      %v728 = vpop.f32.mrf.mxu0
      %v729 = vadd.f32 %v616, %v728
      %730 = vmatmul.f32.gmra.mxu0 %v182
      %v731 = vpop.f32.mrf.mxu0
      %v732 = vadd.f32 %v619, %v731
      %733 = vmatmul.f32.gmra.mxu0 %v183
      %v734 = vpop.f32.mrf.mxu0
      %v735 = vadd.f32 %v622, %v734
      %736 = vmatmul.f32.gmra.mxu0 %v184
      %v737 = vpop.f32.mrf.mxu0
      %v738 = vadd.f32 %v625, %v737
      %739 = vmatmul.f32.gmra.mxu0 %v185
      %v740 = vpop.f32.mrf.mxu0
      %v741 = vadd.f32 %v628, %v740
      %742 = vmatmul.f32.gmra.mxu0 %v186
      %v743 = vpop.f32.mrf.mxu0
      %v744 = vadd.f32 %v631, %v743
      %745 = vmatmul.f32.gmra.mxu0 %v187
      %v746 = vpop.f32.mrf.mxu0
      %v747 = vadd.f32 %v634, %v746
      %748 = vmatmul.f32.gmra.mxu0 %v188
      %v749 = vpop.f32.mrf.mxu0
      %v750 = vadd.f32 %v637, %v749
      %751 = vmatmul.f32.gmra.mxu0 %v189
      %v752 = vpop.f32.mrf.mxu0
      %v753 = vadd.f32 %v640, %v752
      %754 = vmatmul.f32.gmra.mxu0 %v190
      %v755 = vpop.f32.mrf.mxu0
      %v756 = vadd.f32 %v643, %v755
      %757 = vmatmul.f32.gmra.mxu0 %v191
      %v758 = vpop.f32.mrf.mxu0
      %v759 = vadd.f32 %v646, %v758
      %760 = vmatmul.f32.gmra.mxu0 %v192
      %v761 = vpop.f32.mrf.mxu0
      %v762 = vadd.f32 %v649, %v761
      %763 = vmatmul.f32.gmra.mxu0 %v193
      %v764 = vpop.f32.mrf.mxu0
      %v765 = vadd.f32 %v652, %v764
      %766 = vmatmul.f32.gmra.mxu0 %v194
      %v767 = vpop.f32.mrf.mxu0
      %v768 = vadd.f32 %v655, %v767
      %769 = vmatmul.f32.gmra.mxu0 %v195
      %v770 = vpop.f32.mrf.mxu0
      %v771 = vadd.f32 %v658, %v770
      %772 = vmatmul.f32.gmra.mxu0 %v196
      %v773 = vpop.f32.mrf.mxu0
      %v774 = vadd.f32 %v661, %v773
      %775 = vmatmul.f32.gmra.mxu0 %v197
      %v776 = vpop.f32.mrf.mxu0
      %v777 = vadd.f32 %v664, %v776
      %778 = vmatmul.f32.gmra.mxu0 %v198
      %v779 = vpop.f32.mrf.mxu0
      %v780 = vadd.f32 %v667, %v779
      %781 = vmatmul.f32.gmra.mxu0 %v199
      %v782 = vpop.f32.mrf.mxu0
      %v783 = vadd.f32 %v670, %v782
      %784 = vmatmul.f32.gmra.mxu0 %v200
      %v785 = vpop.f32.mrf.mxu0
      %v786 = vadd.f32 %v673, %v785
      %787 = vmatmul.f32.gmra.mxu0 %v201
      %v788 = vpop.f32.mrf.mxu0
      %v789 = vadd.f32 %v676, %v788
      %790 = vmatmul.f32.gmra.mxu0 %v202
      %v791 = vpop.f32.mrf.mxu0
      %v792 = vadd.f32 %v679, %v791
      %793 = vmatmul.f32.gmra.mxu0 %v203
      %v794 = vpop.f32.mrf.mxu0
      %v795 = vadd.f32 %v682, %v794
      %796 = vmatmul.f32.gmra.mxu0 %v204
      %v797 = vpop.f32.mrf.mxu0
      %v798 = vadd.f32 %v685, %v797
      %799 = vmatmul.f32.gmra.mxu0 %v205
      %v800 = vpop.f32.mrf.mxu0
      %v801 = vadd.f32 %v688, %v800
      %802 = vmatmul.f32.gmra.mxu0 %v206
      %v803 = vpop.f32.mrf.mxu0
      %v804 = vadd.f32 %v691, %v803
      %805 = vmatmul.f32.gmra.mxu0 %v207
      %v806 = vpop.f32.mrf.mxu0
      %v807 = vadd.f32 %v694, %v806
      %808 = vmatmul.f32.gmra.mxu0 %v208
      %v809 = vpop.f32.mrf.mxu0
      %v810 = vadd.f32 %v697, %v809
      %811 = vmatmul.f32.gmra.mxu0 %v209
      %v812 = vpop.f32.mrf.mxu0
      %v813 = vadd.f32 %v700, %v812
      %814 = vmatmul.f32.gmra.mxu0 %v210
      %v815 = vpop.f32.mrf.mxu0
      %v816 = vadd.f32 %v703, %v815
      %817 = vmatmul.f32.gmra.mxu0 %v211
      %v818 = vpop.f32.mrf.mxu0
      %v819 = vadd.f32 %v706, %v818
      %820 = vdwg.mxu0
      %821 = vmatpush.msra.mxu0 %v261
      %822 = vmatpush.msra.mxu0 %v260
      %823 = vmatpush.msra.mxu0 %v259
      %824 = vmatpush.msra.mxu0 %v258
      %825 = vmatpush.msra.mxu0 %v257
      %826 = vmatpush.msra.mxu0 %v256
      %827 = vmatpush.msra.mxu0 %v255
      %828 = vmatpush.msra.mxu0 %v254
      %829 = vmatpush.msra.mxu0 %v253
      %830 = vmatpush.msra.mxu0 %v252
      %831 = vmatpush.msra.mxu0 %v251
      %832 = vmatpush.msra.mxu0 %v250
      %833 = vmatpush.msra.mxu0 %v249
      %834 = vmatpush.msra.mxu0 %v248
      %835 = vmatpush.msra.mxu0 %v247
      %836 = vmatpush.msra.mxu0 %v246
      %837 = vmatmul.f32.gmra.mxu0 %v495
      %v838 = vpop.f32.mrf.mxu0
      %v839 = vadd.f32 %v726, %v838
      %840 = vmatmul.f32.gmra.mxu0 %v578
      %v841 = vpop.f32.mrf.mxu0
      %v842 = vadd.f32 %v729, %v841
      %843 = vmatmul.f32.gmra.mxu0 %v498
      %v844 = vpop.f32.mrf.mxu0
      %v845 = vadd.f32 %v732, %v844
      %846 = vmatmul.f32.gmra.mxu0 %v579
      %v847 = vpop.f32.mrf.mxu0
      %v848 = vadd.f32 %v735, %v847
      %849 = vmatmul.f32.gmra.mxu0 %v501
      %v850 = vpop.f32.mrf.mxu0
      %v851 = vadd.f32 %v738, %v850
      %852 = vmatmul.f32.gmra.mxu0 %v580
      %v853 = vpop.f32.mrf.mxu0
      %v854 = vadd.f32 %v741, %v853
      %855 = vmatmul.f32.gmra.mxu0 %v504
      %v856 = vpop.f32.mrf.mxu0
      %v857 = vadd.f32 %v744, %v856
      %858 = vmatmul.f32.gmra.mxu0 %v581
      %v859 = vpop.f32.mrf.mxu0
      %v860 = vadd.f32 %v747, %v859
      %861 = vmatmul.f32.gmra.mxu0 %v507
      %v862 = vpop.f32.mrf.mxu0
      %v863 = vadd.f32 %v750, %v862
      %864 = vmatmul.f32.gmra.mxu0 %v582
      %v865 = vpop.f32.mrf.mxu0
      %v866 = vadd.f32 %v753, %v865
      %867 = vmatmul.f32.gmra.mxu0 %v510
      %v868 = vpop.f32.mrf.mxu0
      %v869 = vadd.f32 %v756, %v868
      %870 = vmatmul.f32.gmra.mxu0 %v583
      %v871 = vpop.f32.mrf.mxu0
      %v872 = vadd.f32 %v759, %v871
      %873 = vmatmul.f32.gmra.mxu0 %v513
      %v874 = vpop.f32.mrf.mxu0
      %v875 = vadd.f32 %v762, %v874
      %876 = vmatmul.f32.gmra.mxu0 %v584
      %v877 = vpop.f32.mrf.mxu0
      %v878 = vadd.f32 %v765, %v877
      %879 = vmatmul.f32.gmra.mxu0 %v516
      %v880 = vpop.f32.mrf.mxu0
      %v881 = vadd.f32 %v768, %v880
      %882 = vmatmul.f32.gmra.mxu0 %v585
      %v883 = vpop.f32.mrf.mxu0
      %v884 = vadd.f32 %v771, %v883
      %885 = vmatmul.f32.gmra.mxu0 %v519
      %v886 = vpop.f32.mrf.mxu0
      %v887 = vadd.f32 %v774, %v886
      %888 = vmatmul.f32.gmra.mxu0 %v586
      %v889 = vpop.f32.mrf.mxu0
      %v890 = vadd.f32 %v777, %v889
      %891 = vmatmul.f32.gmra.mxu0 %v522
      %v892 = vpop.f32.mrf.mxu0
      %v893 = vadd.f32 %v780, %v892
      %894 = vmatmul.f32.gmra.mxu0 %v587
      %v895 = vpop.f32.mrf.mxu0
      %v896 = vadd.f32 %v783, %v895
      %897 = vmatmul.f32.gmra.mxu0 %v525
      %v898 = vpop.f32.mrf.mxu0
      %v899 = vadd.f32 %v786, %v898
      %900 = vmatmul.f32.gmra.mxu0 %v588
      %v901 = vpop.f32.mrf.mxu0
      %v902 = vadd.f32 %v789, %v901
      %903 = vmatmul.f32.gmra.mxu0 %v528
      %v904 = vpop.f32.mrf.mxu0
      %v905 = vadd.f32 %v792, %v904
      %906 = vmatmul.f32.gmra.mxu0 %v589
      %v907 = vpop.f32.mrf.mxu0
      %v908 = vadd.f32 %v795, %v907
      %909 = vmatmul.f32.gmra.mxu0 %v531
      %v910 = vpop.f32.mrf.mxu0
      %v911 = vadd.f32 %v798, %v910
      %912 = vmatmul.f32.gmra.mxu0 %v590
      %v913 = vpop.f32.mrf.mxu0
      %v914 = vadd.f32 %v801, %v913
      %915 = vmatmul.f32.gmra.mxu0 %v534
      %v916 = vpop.f32.mrf.mxu0
      %v917 = vadd.f32 %v804, %v916
      %918 = vmatmul.f32.gmra.mxu0 %v591
      %v919 = vpop.f32.mrf.mxu0
      %v920 = vadd.f32 %v807, %v919
      %921 = vmatmul.f32.gmra.mxu0 %v537
      %v922 = vpop.f32.mrf.mxu0
      %v923 = vadd.f32 %v810, %v922
      %924 = vmatmul.f32.gmra.mxu0 %v592
      %v925 = vpop.f32.mrf.mxu0
      %v926 = vadd.f32 %v813, %v925
      %927 = vmatmul.f32.gmra.mxu0 %v540
      %v928 = vpop.f32.mrf.mxu0
      %v929 = vadd.f32 %v816, %v928
      %930 = vmatmul.f32.gmra.mxu0 %v593
      %v931 = vpop.f32.mrf.mxu0
      %v932 = vadd.f32 %v819, %v931
      %933 = vdwg.mxu0
      %934 = vmatpush.msra.mxu0 %v277
      %935 = vmatpush.msra.mxu0 %v276
      %936 = vmatpush.msra.mxu0 %v275
      %937 = vmatpush.msra.mxu0 %v274
      %938 = vmatpush.msra.mxu0 %v273
      %939 = vmatpush.msra.mxu0 %v272
      %940 = vmatpush.msra.mxu0 %v271
      %941 = vmatpush.msra.mxu0 %v270
      %942 = vmatpush.msra.mxu0 %v269
      %943 = vmatpush.msra.mxu0 %v268
      %944 = vmatpush.msra.mxu0 %v267
      %945 = vmatpush.msra.mxu0 %v266
      %946 = vmatpush.msra.mxu0 %v265
      %947 = vmatpush.msra.mxu0 %v264
      %948 = vmatpush.msra.mxu0 %v263
      %949 = vmatpush.msra.mxu0 %v262
      %950 = vmatmul.f32.gmra.mxu0 %v477
      %v951 = vpop.f32.mrf.mxu0
      %v952 = vadd.f32 %v839, %v951
      %953 = vmatmul.f32.gmra.mxu0 %v396
      %v954 = vpop.f32.mrf.mxu0
      %v955 = vadd.f32 %v842, %v954
      %956 = vmatmul.f32.gmra.mxu0 %v478
      %v957 = vpop.f32.mrf.mxu0
      %v958 = vadd.f32 %v845, %v957
      %959 = vmatmul.f32.gmra.mxu0 %v399
      %v960 = vpop.f32.mrf.mxu0
      %v961 = vadd.f32 %v848, %v960
      %962 = vmatmul.f32.gmra.mxu0 %v479
      %v963 = vpop.f32.mrf.mxu0
      %v964 = vadd.f32 %v851, %v963
      %965 = vmatmul.f32.gmra.mxu0 %v402
      %v966 = vpop.f32.mrf.mxu0
      %v967 = vadd.f32 %v854, %v966
      %968 = vmatmul.f32.gmra.mxu0 %v480
      %v969 = vpop.f32.mrf.mxu0
      %v970 = vadd.f32 %v857, %v969
      %971 = vmatmul.f32.gmra.mxu0 %v405
      %v972 = vpop.f32.mrf.mxu0
      %v973 = vadd.f32 %v860, %v972
      %974 = vmatmul.f32.gmra.mxu0 %v481
      %v975 = vpop.f32.mrf.mxu0
      %v976 = vadd.f32 %v863, %v975
      %977 = vmatmul.f32.gmra.mxu0 %v408
      %v978 = vpop.f32.mrf.mxu0
      %v979 = vadd.f32 %v866, %v978
      %980 = vmatmul.f32.gmra.mxu0 %v482
      %v981 = vpop.f32.mrf.mxu0
      %v982 = vadd.f32 %v869, %v981
      %983 = vmatmul.f32.gmra.mxu0 %v411
      %v984 = vpop.f32.mrf.mxu0
      %v985 = vadd.f32 %v872, %v984
      %986 = vmatmul.f32.gmra.mxu0 %v483
      %v987 = vpop.f32.mrf.mxu0
      %v988 = vadd.f32 %v875, %v987
      %989 = vmatmul.f32.gmra.mxu0 %v414
      %v990 = vpop.f32.mrf.mxu0
      %v991 = vadd.f32 %v878, %v990
      %992 = vmatmul.f32.gmra.mxu0 %v484
      %v993 = vpop.f32.mrf.mxu0
      %v994 = vadd.f32 %v881, %v993
      %995 = vmatmul.f32.gmra.mxu0 %v417
      %v996 = vpop.f32.mrf.mxu0
      %v997 = vadd.f32 %v884, %v996
      %998 = vmatmul.f32.gmra.mxu0 %v485
      %v999 = vpop.f32.mrf.mxu0
      %v1000 = vadd.f32 %v887, %v999
      %1001 = vmatmul.f32.gmra.mxu0 %v420
      %v1002 = vpop.f32.mrf.mxu0
      %v1003 = vadd.f32 %v890, %v1002
      %1004 = vmatmul.f32.gmra.mxu0 %v486
      %v1005 = vpop.f32.mrf.mxu0
      %v1006 = vadd.f32 %v893, %v1005
      %1007 = vmatmul.f32.gmra.mxu0 %v423
      %v1008 = vpop.f32.mrf.mxu0
      %v1009 = vadd.f32 %v896, %v1008
      %1010 = vmatmul.f32.gmra.mxu0 %v487
      %v1011 = vpop.f32.mrf.mxu0
      %v1012 = vadd.f32 %v899, %v1011
      %1013 = vmatmul.f32.gmra.mxu0 %v426
      %v1014 = vpop.f32.mrf.mxu0
      %v1015 = vadd.f32 %v902, %v1014
      %1016 = vmatmul.f32.gmra.mxu0 %v488
      %v1017 = vpop.f32.mrf.mxu0
      %v1018 = vadd.f32 %v905, %v1017
      %1019 = vmatmul.f32.gmra.mxu0 %v429
      %v1020 = vpop.f32.mrf.mxu0
      %v1021 = vadd.f32 %v908, %v1020
      %1022 = vmatmul.f32.gmra.mxu0 %v489
      %v1023 = vpop.f32.mrf.mxu0
      %v1024 = vadd.f32 %v911, %v1023
      %1025 = vmatmul.f32.gmra.mxu0 %v432
      %v1026 = vpop.f32.mrf.mxu0
      %v1027 = vadd.f32 %v914, %v1026
      %1028 = vmatmul.f32.gmra.mxu0 %v490
      %v1029 = vpop.f32.mrf.mxu0
      %v1030 = vadd.f32 %v917, %v1029
      %1031 = vmatmul.f32.gmra.mxu0 %v435
      %v1032 = vpop.f32.mrf.mxu0
      %v1033 = vadd.f32 %v920, %v1032
      %1034 = vmatmul.f32.gmra.mxu0 %v491
      %v1035 = vpop.f32.mrf.mxu0
      %v1036 = vadd.f32 %v923, %v1035
      %1037 = vmatmul.f32.gmra.mxu0 %v438
      %v1038 = vpop.f32.mrf.mxu0
      %v1039 = vadd.f32 %v926, %v1038
      %1040 = vmatmul.f32.gmra.mxu0 %v492
      %v1041 = vpop.f32.mrf.mxu0
      %v1042 = vadd.f32 %v929, %v1041
      %1043 = vmatmul.f32.gmra.mxu0 %v441
      %v1044 = vpop.f32.mrf.mxu0
      %v1045 = vadd.f32 %v932, %v1044
      %1046 = vdwg.mxu0
      %1047 = vmatpush.msra.mxu0 %v293
      %1048 = vmatpush.msra.mxu0 %v292
      %1049 = vmatpush.msra.mxu0 %v291
      %1050 = vmatpush.msra.mxu0 %v290
      %1051 = vmatpush.msra.mxu0 %v289
      %1052 = vmatpush.msra.mxu0 %v288
      %1053 = vmatpush.msra.mxu0 %v287
      %1054 = vmatpush.msra.mxu0 %v286
      %1055 = vmatpush.msra.mxu0 %v285
      %1056 = vmatpush.msra.mxu0 %v284
      %1057 = vmatpush.msra.mxu0 %v283
      %1058 = vmatpush.msra.mxu0 %v282
      %1059 = vmatpush.msra.mxu0 %v281
      %1060 = vmatpush.msra.mxu0 %v280
      %1061 = vmatpush.msra.mxu0 %v279
      %1062 = vmatpush.msra.mxu0 %v278
      %1063 = vmatmul.f32.gmra.mxu0 %v182
      %v1064 = vpop.f32.mrf.mxu0
      %v1065 = vadd.f32 %v952, %v1064
      %1066 = vmatmul.f32.gmra.mxu0 %v183
      %v1067 = vpop.f32.mrf.mxu0
      %v1068 = vadd.f32 %v955, %v1067
      %1069 = vmatmul.f32.gmra.mxu0 %v184
      %v1070 = vpop.f32.mrf.mxu0
      %v1071 = vadd.f32 %v958, %v1070
      %1072 = vmatmul.f32.gmra.mxu0 %v185
      %v1073 = vpop.f32.mrf.mxu0
      %v1074 = vadd.f32 %v961, %v1073
      %1075 = vmatmul.f32.gmra.mxu0 %v186
      %v1076 = vpop.f32.mrf.mxu0
      %v1077 = vadd.f32 %v964, %v1076
      %1078 = vmatmul.f32.gmra.mxu0 %v187
      %v1079 = vpop.f32.mrf.mxu0
      %v1080 = vadd.f32 %v967, %v1079
      %1081 = vmatmul.f32.gmra.mxu0 %v188
      %v1082 = vpop.f32.mrf.mxu0
      %v1083 = vadd.f32 %v970, %v1082
      %1084 = vmatmul.f32.gmra.mxu0 %v189
      %v1085 = vpop.f32.mrf.mxu0
      %v1086 = vadd.f32 %v973, %v1085
      %1087 = vmatmul.f32.gmra.mxu0 %v190
      %v1088 = vpop.f32.mrf.mxu0
      %v1089 = vadd.f32 %v976, %v1088
      %1090 = vmatmul.f32.gmra.mxu0 %v191
      %v1091 = vpop.f32.mrf.mxu0
      %v1092 = vadd.f32 %v979, %v1091
      %1093 = vmatmul.f32.gmra.mxu0 %v192
      %v1094 = vpop.f32.mrf.mxu0
      %v1095 = vadd.f32 %v982, %v1094
      %1096 = vmatmul.f32.gmra.mxu0 %v193
      %v1097 = vpop.f32.mrf.mxu0
      %v1098 = vadd.f32 %v985, %v1097
      %1099 = vmatmul.f32.gmra.mxu0 %v194
      %v1100 = vpop.f32.mrf.mxu0
      %v1101 = vadd.f32 %v988, %v1100
      %1102 = vmatmul.f32.gmra.mxu0 %v195
      %v1103 = vpop.f32.mrf.mxu0
      %v1104 = vadd.f32 %v991, %v1103
      %1105 = vmatmul.f32.gmra.mxu0 %v196
      %v1106 = vpop.f32.mrf.mxu0
      %v1107 = vadd.f32 %v994, %v1106
      %1108 = vmatmul.f32.gmra.mxu0 %v197
      %v1109 = vpop.f32.mrf.mxu0
      %v1110 = vadd.f32 %v997, %v1109
      %1111 = vmatmul.f32.gmra.mxu0 %v198
      %v1112 = vpop.f32.mrf.mxu0
      %v1113 = vadd.f32 %v1000, %v1112
      %1114 = vmatmul.f32.gmra.mxu0 %v199
      %v1115 = vpop.f32.mrf.mxu0
      %v1116 = vadd.f32 %v1003, %v1115
      %1117 = vmatmul.f32.gmra.mxu0 %v200
      %v1118 = vpop.f32.mrf.mxu0
      %v1119 = vadd.f32 %v1006, %v1118
      %1120 = vmatmul.f32.gmra.mxu0 %v201
      %v1121 = vpop.f32.mrf.mxu0
      %v1122 = vadd.f32 %v1009, %v1121
      %1123 = vmatmul.f32.gmra.mxu0 %v202
      %v1124 = vpop.f32.mrf.mxu0
      %v1125 = vadd.f32 %v1012, %v1124
      %1126 = vmatmul.f32.gmra.mxu0 %v203
      %v1127 = vpop.f32.mrf.mxu0
      %v1128 = vadd.f32 %v1015, %v1127
      %1129 = vmatmul.f32.gmra.mxu0 %v204
      %v1130 = vpop.f32.mrf.mxu0
      %v1131 = vadd.f32 %v1018, %v1130
      %1132 = vmatmul.f32.gmra.mxu0 %v205
      %v1133 = vpop.f32.mrf.mxu0
      %v1134 = vadd.f32 %v1021, %v1133
      %1135 = vmatmul.f32.gmra.mxu0 %v206
      %v1136 = vpop.f32.mrf.mxu0
      %v1137 = vadd.f32 %v1024, %v1136
      %1138 = vmatmul.f32.gmra.mxu0 %v207
      %v1139 = vpop.f32.mrf.mxu0
      %v1140 = vadd.f32 %v1027, %v1139
      %1141 = vmatmul.f32.gmra.mxu0 %v208
      %v1142 = vpop.f32.mrf.mxu0
      %v1143 = vadd.f32 %v1030, %v1142
      %1144 = vmatmul.f32.gmra.mxu0 %v209
      %v1145 = vpop.f32.mrf.mxu0
      %v1146 = vadd.f32 %v1033, %v1145
      %1147 = vmatmul.f32.gmra.mxu0 %v210
      %v1148 = vpop.f32.mrf.mxu0
      %v1149 = vadd.f32 %v1036, %v1148
      %1150 = vmatmul.f32.gmra.mxu0 %v211
      %v1151 = vpop.f32.mrf.mxu0
      %v1152 = vadd.f32 %v1039, %v1151
      %1153 = vmatmul.f32.gmra.mxu0 %v212
      %v1154 = vpop.f32.mrf.mxu0
      %v1155 = vadd.f32 %v1042, %v1154
      %1156 = vmatmul.f32.gmra.mxu0 %v213
      %v1157 = vpop.f32.mrf.mxu0
      %v1158 = vadd.f32 %v1045, %v1157
      %1159 = vdwg.mxu0
      %1160 = vmatpush.msra.mxu0 %v309
      %1161 = vmatpush.msra.mxu0 %v308
      %1162 = vmatpush.msra.mxu0 %v307
      %1163 = vmatpush.msra.mxu0 %v306
      %1164 = vmatpush.msra.mxu0 %v305
      %1165 = vmatpush.msra.mxu0 %v304
      %1166 = vmatpush.msra.mxu0 %v303
      %1167 = vmatpush.msra.mxu0 %v302
      %1168 = vmatpush.msra.mxu0 %v301
      %1169 = vmatpush.msra.mxu0 %v300
      %1170 = vmatpush.msra.mxu0 %v299
      %1171 = vmatpush.msra.mxu0 %v298
      %1172 = vmatpush.msra.mxu0 %v297
      %1173 = vmatpush.msra.mxu0 %v296
      %1174 = vmatpush.msra.mxu0 %v295
      %1175 = vmatpush.msra.mxu0 %v294
      %1176 = vmatmul.f32.gmra.mxu0 %v498
      %v1177 = vpop.f32.mrf.mxu0
      %v1178 = vadd.f32 %v1065, %v1177
      %1179 = vmatmul.f32.gmra.mxu0 %v579
      %v1180 = vpop.f32.mrf.mxu0
      %v1181 = vadd.f32 %v1068, %v1180
      %1182 = vmatmul.f32.gmra.mxu0 %v501
      %v1183 = vpop.f32.mrf.mxu0
      %v1184 = vadd.f32 %v1071, %v1183
      %1185 = vmatmul.f32.gmra.mxu0 %v580
      %v1186 = vpop.f32.mrf.mxu0
      %v1187 = vadd.f32 %v1074, %v1186
      %1188 = vmatmul.f32.gmra.mxu0 %v504
      %v1189 = vpop.f32.mrf.mxu0
      %v1190 = vadd.f32 %v1077, %v1189
      %1191 = vmatmul.f32.gmra.mxu0 %v581
      %v1192 = vpop.f32.mrf.mxu0
      %v1193 = vadd.f32 %v1080, %v1192
      %1194 = vmatmul.f32.gmra.mxu0 %v507
      %v1195 = vpop.f32.mrf.mxu0
      %v1196 = vadd.f32 %v1083, %v1195
      %1197 = vmatmul.f32.gmra.mxu0 %v582
      %v1198 = vpop.f32.mrf.mxu0
      %v1199 = vadd.f32 %v1086, %v1198
      %1200 = vmatmul.f32.gmra.mxu0 %v510
      %v1201 = vpop.f32.mrf.mxu0
      %v1202 = vadd.f32 %v1089, %v1201
      %1203 = vmatmul.f32.gmra.mxu0 %v583
      %v1204 = vpop.f32.mrf.mxu0
      %v1205 = vadd.f32 %v1092, %v1204
      %1206 = vmatmul.f32.gmra.mxu0 %v513
      %v1207 = vpop.f32.mrf.mxu0
      %v1208 = vadd.f32 %v1095, %v1207
      %1209 = vmatmul.f32.gmra.mxu0 %v584
      %v1210 = vpop.f32.mrf.mxu0
      %v1211 = vadd.f32 %v1098, %v1210
      %1212 = vmatmul.f32.gmra.mxu0 %v516
      %v1213 = vpop.f32.mrf.mxu0
      %v1214 = vadd.f32 %v1101, %v1213
      %1215 = vmatmul.f32.gmra.mxu0 %v585
      %v1216 = vpop.f32.mrf.mxu0
      %v1217 = vadd.f32 %v1104, %v1216
      %1218 = vmatmul.f32.gmra.mxu0 %v519
      %v1219 = vpop.f32.mrf.mxu0
      %v1220 = vadd.f32 %v1107, %v1219
      %1221 = vmatmul.f32.gmra.mxu0 %v586
      %v1222 = vpop.f32.mrf.mxu0
      %v1223 = vadd.f32 %v1110, %v1222
      %1224 = vmatmul.f32.gmra.mxu0 %v522
      %v1225 = vpop.f32.mrf.mxu0
      %v1226 = vadd.f32 %v1113, %v1225
      %1227 = vmatmul.f32.gmra.mxu0 %v587
      %v1228 = vpop.f32.mrf.mxu0
      %v1229 = vadd.f32 %v1116, %v1228
      %1230 = vmatmul.f32.gmra.mxu0 %v525
      %v1231 = vpop.f32.mrf.mxu0
      %v1232 = vadd.f32 %v1119, %v1231
      %1233 = vmatmul.f32.gmra.mxu0 %v588
      %v1234 = vpop.f32.mrf.mxu0
      %v1235 = vadd.f32 %v1122, %v1234
      %1236 = vmatmul.f32.gmra.mxu0 %v528
      %v1237 = vpop.f32.mrf.mxu0
      %v1238 = vadd.f32 %v1125, %v1237
      %1239 = vmatmul.f32.gmra.mxu0 %v589
      %v1240 = vpop.f32.mrf.mxu0
      %v1241 = vadd.f32 %v1128, %v1240
      %1242 = vmatmul.f32.gmra.mxu0 %v531
      %v1243 = vpop.f32.mrf.mxu0
      %v1244 = vadd.f32 %v1131, %v1243
      %1245 = vmatmul.f32.gmra.mxu0 %v590
      %v1246 = vpop.f32.mrf.mxu0
      %v1247 = vadd.f32 %v1134, %v1246
      %1248 = vmatmul.f32.gmra.mxu0 %v534
      %v1249 = vpop.f32.mrf.mxu0
      %v1250 = vadd.f32 %v1137, %v1249
      %1251 = vmatmul.f32.gmra.mxu0 %v591
      %v1252 = vpop.f32.mrf.mxu0
      %v1253 = vadd.f32 %v1140, %v1252
      %1254 = vmatmul.f32.gmra.mxu0 %v537
      %v1255 = vpop.f32.mrf.mxu0
      %v1256 = vadd.f32 %v1143, %v1255
      %1257 = vmatmul.f32.gmra.mxu0 %v592
      %v1258 = vpop.f32.mrf.mxu0
      %v1259 = vadd.f32 %v1146, %v1258
      %1260 = vmatmul.f32.gmra.mxu0 %v540
      %v1261 = vpop.f32.mrf.mxu0
      %v1262 = vadd.f32 %v1149, %v1261
      %1263 = vmatmul.f32.gmra.mxu0 %v593
      %v1264 = vpop.f32.mrf.mxu0
      %v1265 = vadd.f32 %v1152, %v1264
      %1266 = vmatmul.f32.gmra.mxu0 %v543
      %v1267 = vpop.f32.mrf.mxu0
      %v1268 = vadd.f32 %v1155, %v1267
      %1269 = vmatmul.f32.gmra.mxu0 %v594
      %v1270 = vpop.f32.mrf.mxu0
      %v1271 = vadd.f32 %v1158, %v1270
      %1272 = vdwg.mxu0
      %1273 = vmatpush.msra.mxu0 %v325
      %1274 = vmatpush.msra.mxu0 %v324
      %1275 = vmatpush.msra.mxu0 %v323
      %1276 = vmatpush.msra.mxu0 %v322
      %1277 = vmatpush.msra.mxu0 %v321
      %1278 = vmatpush.msra.mxu0 %v320
      %1279 = vmatpush.msra.mxu0 %v319
      %1280 = vmatpush.msra.mxu0 %v318
      %1281 = vmatpush.msra.mxu0 %v317
      %1282 = vmatpush.msra.mxu0 %v316
      %1283 = vmatpush.msra.mxu0 %v315
      %1284 = vmatpush.msra.mxu0 %v314
      %1285 = vmatpush.msra.mxu0 %v313
      %1286 = vmatpush.msra.mxu0 %v312
      %1287 = vmatpush.msra.mxu0 %v311
      %1288 = vmatpush.msra.mxu0 %v310
      %1289 = vmatmul.f32.gmra.mxu0 %v478
      %v1290 = vpop.f32.mrf.mxu0
      %v1291 = vadd.f32 %v1178, %v1290
      %1292 = vmatmul.f32.gmra.mxu0 %v399
      %v1293 = vpop.f32.mrf.mxu0
      %v1294 = vadd.f32 %v1181, %v1293
      %1295 = vmatmul.f32.gmra.mxu0 %v479
      %v1296 = vpop.f32.mrf.mxu0
      %v1297 = vadd.f32 %v1184, %v1296
      %1298 = vmatmul.f32.gmra.mxu0 %v402
      %v1299 = vpop.f32.mrf.mxu0
      %v1300 = vadd.f32 %v1187, %v1299
      %1301 = vmatmul.f32.gmra.mxu0 %v480
      %v1302 = vpop.f32.mrf.mxu0
      %v1303 = vadd.f32 %v1190, %v1302
      %1304 = vmatmul.f32.gmra.mxu0 %v405
      %v1305 = vpop.f32.mrf.mxu0
      %v1306 = vadd.f32 %v1193, %v1305
      %1307 = vmatmul.f32.gmra.mxu0 %v481
      %v1308 = vpop.f32.mrf.mxu0
      %v1309 = vadd.f32 %v1196, %v1308
      %1310 = vmatmul.f32.gmra.mxu0 %v408
      %v1311 = vpop.f32.mrf.mxu0
      %v1312 = vadd.f32 %v1199, %v1311
      %1313 = vmatmul.f32.gmra.mxu0 %v482
      %v1314 = vpop.f32.mrf.mxu0
      %v1315 = vadd.f32 %v1202, %v1314
      %1316 = vmatmul.f32.gmra.mxu0 %v411
      %v1317 = vpop.f32.mrf.mxu0
      %v1318 = vadd.f32 %v1205, %v1317
      %1319 = vmatmul.f32.gmra.mxu0 %v483
      %v1320 = vpop.f32.mrf.mxu0
      %v1321 = vadd.f32 %v1208, %v1320
      %1322 = vmatmul.f32.gmra.mxu0 %v414
      %v1323 = vpop.f32.mrf.mxu0
      %v1324 = vadd.f32 %v1211, %v1323
      %1325 = vmatmul.f32.gmra.mxu0 %v484
      %v1326 = vpop.f32.mrf.mxu0
      %v1327 = vadd.f32 %v1214, %v1326
      %1328 = vmatmul.f32.gmra.mxu0 %v417
      %v1329 = vpop.f32.mrf.mxu0
      %v1330 = vadd.f32 %v1217, %v1329
      %1331 = vmatmul.f32.gmra.mxu0 %v485
      %v1332 = vpop.f32.mrf.mxu0
      %v1333 = vadd.f32 %v1220, %v1332
      %1334 = vmatmul.f32.gmra.mxu0 %v420
      %v1335 = vpop.f32.mrf.mxu0
      %v1336 = vadd.f32 %v1223, %v1335
      %1337 = vmatmul.f32.gmra.mxu0 %v486
      %v1338 = vpop.f32.mrf.mxu0
      %v1339 = vadd.f32 %v1226, %v1338
      %1340 = vmatmul.f32.gmra.mxu0 %v423
      %v1341 = vpop.f32.mrf.mxu0
      %v1342 = vadd.f32 %v1229, %v1341
      %1343 = vmatmul.f32.gmra.mxu0 %v487
      %v1344 = vpop.f32.mrf.mxu0
      %v1345 = vadd.f32 %v1232, %v1344
      %1346 = vmatmul.f32.gmra.mxu0 %v426
      %v1347 = vpop.f32.mrf.mxu0
      %v1348 = vadd.f32 %v1235, %v1347
      %1349 = vmatmul.f32.gmra.mxu0 %v488
      %v1350 = vpop.f32.mrf.mxu0
      %v1351 = vadd.f32 %v1238, %v1350
      %1352 = vmatmul.f32.gmra.mxu0 %v429
      %v1353 = vpop.f32.mrf.mxu0
      %v1354 = vadd.f32 %v1241, %v1353
      %1355 = vmatmul.f32.gmra.mxu0 %v489
      %v1356 = vpop.f32.mrf.mxu0
      %v1357 = vadd.f32 %v1244, %v1356
      %1358 = vmatmul.f32.gmra.mxu0 %v432
      %v1359 = vpop.f32.mrf.mxu0
      %v1360 = vadd.f32 %v1247, %v1359
      %1361 = vmatmul.f32.gmra.mxu0 %v490
      %v1362 = vpop.f32.mrf.mxu0
      %v1363 = vadd.f32 %v1250, %v1362
      %1364 = vmatmul.f32.gmra.mxu0 %v435
      %v1365 = vpop.f32.mrf.mxu0
      %v1366 = vadd.f32 %v1253, %v1365
      %1367 = vmatmul.f32.gmra.mxu0 %v491
      %v1368 = vpop.f32.mrf.mxu0
      %v1369 = vadd.f32 %v1256, %v1368
      %1370 = vmatmul.f32.gmra.mxu0 %v438
      %v1371 = vpop.f32.mrf.mxu0
      %v1372 = vadd.f32 %v1259, %v1371
      %1373 = vmatmul.f32.gmra.mxu0 %v492
      %v1374 = vpop.f32.mrf.mxu0
      %v1375 = vadd.f32 %v1262, %v1374
      %1376 = vmatmul.f32.gmra.mxu0 %v441
      %v1377 = vpop.f32.mrf.mxu0
      %v1378 = vadd.f32 %v1265, %v1377
      %1379 = vmatmul.f32.gmra.mxu0 %v476
      %v1380 = vpop.f32.mrf.mxu0
      %v1381 = vadd.f32 %v1268, %v1380
      %1382 = vmatmul.f32.gmra.mxu0 %v393
      %v1383 = vpop.f32.mrf.mxu0
      %v1384 = vadd.f32 %v1271, %v1383
      %1385 = vdwg.mxu0
      %1386 = vmatpush.msra.mxu0 %v341
      %1387 = vmatpush.msra.mxu0 %v340
      %1388 = vmatpush.msra.mxu0 %v339
      %1389 = vmatpush.msra.mxu0 %v338
      %1390 = vmatpush.msra.mxu0 %v337
      %1391 = vmatpush.msra.mxu0 %v336
      %1392 = vmatpush.msra.mxu0 %v335
      %1393 = vmatpush.msra.mxu0 %v334
      %1394 = vmatpush.msra.mxu0 %v333
      %1395 = vmatpush.msra.mxu0 %v332
      %1396 = vmatpush.msra.mxu0 %v331
      %1397 = vmatpush.msra.mxu0 %v330
      %1398 = vmatpush.msra.mxu0 %v329
      %1399 = vmatpush.msra.mxu0 %v328
      %1400 = vmatpush.msra.mxu0 %v327
      %1401 = vmatpush.msra.mxu0 %v326
      %1402 = vmatmul.f32.gmra.mxu0 %v184
      %v1403 = vpop.f32.mrf.mxu0
      %v1404 = vadd.f32 %v1291, %v1403
      %1405 = vmatmul.f32.gmra.mxu0 %v185
      %v1406 = vpop.f32.mrf.mxu0
      %v1407 = vadd.f32 %v1294, %v1406
      %1408 = vmatmul.f32.gmra.mxu0 %v186
      %v1409 = vpop.f32.mrf.mxu0
      %v1410 = vadd.f32 %v1297, %v1409
      %1411 = vmatmul.f32.gmra.mxu0 %v187
      %v1412 = vpop.f32.mrf.mxu0
      %v1413 = vadd.f32 %v1300, %v1412
      %1414 = vmatmul.f32.gmra.mxu0 %v188
      %v1415 = vpop.f32.mrf.mxu0
      %v1416 = vadd.f32 %v1303, %v1415
      %1417 = vmatmul.f32.gmra.mxu0 %v189
      %v1418 = vpop.f32.mrf.mxu0
      %v1419 = vadd.f32 %v1306, %v1418
      %1420 = vmatmul.f32.gmra.mxu0 %v190
      %v1421 = vpop.f32.mrf.mxu0
      %v1422 = vadd.f32 %v1309, %v1421
      %1423 = vmatmul.f32.gmra.mxu0 %v191
      %v1424 = vpop.f32.mrf.mxu0
      %v1425 = vadd.f32 %v1312, %v1424
      %1426 = vmatmul.f32.gmra.mxu0 %v192
      %v1427 = vpop.f32.mrf.mxu0
      %v1428 = vadd.f32 %v1315, %v1427
      %1429 = vmatmul.f32.gmra.mxu0 %v193
      %v1430 = vpop.f32.mrf.mxu0
      %v1431 = vadd.f32 %v1318, %v1430
      %1432 = vmatmul.f32.gmra.mxu0 %v194
      %v1433 = vpop.f32.mrf.mxu0
      %v1434 = vadd.f32 %v1321, %v1433
      %1435 = vmatmul.f32.gmra.mxu0 %v195
      %v1436 = vpop.f32.mrf.mxu0
      %v1437 = vadd.f32 %v1324, %v1436
      %1438 = vmatmul.f32.gmra.mxu0 %v196
      %v1439 = vpop.f32.mrf.mxu0
      %v1440 = vadd.f32 %v1327, %v1439
      %1441 = vmatmul.f32.gmra.mxu0 %v197
      %v1442 = vpop.f32.mrf.mxu0
      %v1443 = vadd.f32 %v1330, %v1442
      %1444 = vmatmul.f32.gmra.mxu0 %v198
      %v1445 = vpop.f32.mrf.mxu0
      %v1446 = vadd.f32 %v1333, %v1445
      %1447 = vmatmul.f32.gmra.mxu0 %v199
      %v1448 = vpop.f32.mrf.mxu0
      %v1449 = vadd.f32 %v1336, %v1448
      %1450 = vmatmul.f32.gmra.mxu0 %v200
      %v1451 = vpop.f32.mrf.mxu0
      %v1452 = vadd.f32 %v1339, %v1451
      %1453 = vmatmul.f32.gmra.mxu0 %v201
      %v1454 = vpop.f32.mrf.mxu0
      %v1455 = vadd.f32 %v1342, %v1454
      %1456 = vmatmul.f32.gmra.mxu0 %v202
      %v1457 = vpop.f32.mrf.mxu0
      %v1458 = vadd.f32 %v1345, %v1457
      %1459 = vmatmul.f32.gmra.mxu0 %v203
      %v1460 = vpop.f32.mrf.mxu0
      %v1461 = vadd.f32 %v1348, %v1460
      %1462 = vmatmul.f32.gmra.mxu0 %v204
      %v1463 = vpop.f32.mrf.mxu0
      %v1464 = vadd.f32 %v1351, %v1463
      %1465 = vmatmul.f32.gmra.mxu0 %v205
      %v1466 = vpop.f32.mrf.mxu0
      %v1467 = vadd.f32 %v1354, %v1466
      %1468 = vmatmul.f32.gmra.mxu0 %v206
      %v1469 = vpop.f32.mrf.mxu0
      %v1470 = vadd.f32 %v1357, %v1469
      %1471 = vmatmul.f32.gmra.mxu0 %v207
      %v1472 = vpop.f32.mrf.mxu0
      %v1473 = vadd.f32 %v1360, %v1472
      %1474 = vmatmul.f32.gmra.mxu0 %v208
      %v1475 = vpop.f32.mrf.mxu0
      %v1476 = vadd.f32 %v1363, %v1475
      %1477 = vmatmul.f32.gmra.mxu0 %v209
      %v1478 = vpop.f32.mrf.mxu0
      %v1479 = vadd.f32 %v1366, %v1478
      %1480 = vmatmul.f32.gmra.mxu0 %v210
      %v1481 = vpop.f32.mrf.mxu0
      %v1482 = vadd.f32 %v1369, %v1481
      %1483 = vmatmul.f32.gmra.mxu0 %v211
      %v1484 = vpop.f32.mrf.mxu0
      %v1485 = vadd.f32 %v1372, %v1484
      %1486 = vmatmul.f32.gmra.mxu0 %v212
      %v1487 = vpop.f32.mrf.mxu0
      %v1488 = vadd.f32 %v1375, %v1487
      %1489 = vmatmul.f32.gmra.mxu0 %v213
      %v1490 = vpop.f32.mrf.mxu0
      %v1491 = vadd.f32 %v1378, %v1490
      %1492 = vmatmul.f32.gmra.mxu0 0.0
      %v1493 = vpop.f32.mrf.mxu0
      %v1494 = vadd.f32 %v1381, %v1493
      %1495 = vmatmul.f32.gmra.mxu0 0.0
      %v1496 = vpop.f32.mrf.mxu0
      %v1497 = vadd.f32 %v1384, %v1496
      %1498 = vdwg.mxu0
      %1499 = vmatpush.msra.mxu0 %v357
      %1500 = vmatpush.msra.mxu0 %v356
      %1501 = vmatpush.msra.mxu0 %v355
      %1502 = vmatpush.msra.mxu0 %v354
      %1503 = vmatpush.msra.mxu0 %v353
      %1504 = vmatpush.msra.mxu0 %v352
      %1505 = vmatpush.msra.mxu0 %v351
      %1506 = vmatpush.msra.mxu0 %v350
      %1507 = vmatpush.msra.mxu0 %v349
      %1508 = vmatpush.msra.mxu0 %v348
      %1509 = vmatpush.msra.mxu0 %v347
      %1510 = vmatpush.msra.mxu0 %v346
      %1511 = vmatpush.msra.mxu0 %v345
      %1512 = vmatpush.msra.mxu0 %v344
      %1513 = vmatpush.msra.mxu0 %v343
      %1514 = vmatpush.msra.mxu0 %v342
      %1515 = vmatmul.f32.gmra.mxu0 %v501
      %v1516 = vpop.f32.mrf.mxu0
      %v1517 = vadd.f32 %v1404, %v1516
      %1518 = vmatmul.f32.gmra.mxu0 %v580
      %v1519 = vpop.f32.mrf.mxu0
      %v1520 = vadd.f32 %v1407, %v1519
      %1521 = vmatmul.f32.gmra.mxu0 %v504
      %v1522 = vpop.f32.mrf.mxu0
      %v1523 = vadd.f32 %v1410, %v1522
      %1524 = vmatmul.f32.gmra.mxu0 %v581
      %v1525 = vpop.f32.mrf.mxu0
      %v1526 = vadd.f32 %v1413, %v1525
      %1527 = vmatmul.f32.gmra.mxu0 %v507
      %v1528 = vpop.f32.mrf.mxu0
      %v1529 = vadd.f32 %v1416, %v1528
      %1530 = vmatmul.f32.gmra.mxu0 %v582
      %v1531 = vpop.f32.mrf.mxu0
      %v1532 = vadd.f32 %v1419, %v1531
      %1533 = vmatmul.f32.gmra.mxu0 %v510
      %v1534 = vpop.f32.mrf.mxu0
      %v1535 = vadd.f32 %v1422, %v1534
      %1536 = vmatmul.f32.gmra.mxu0 %v583
      %v1537 = vpop.f32.mrf.mxu0
      %v1538 = vadd.f32 %v1425, %v1537
      %1539 = vmatmul.f32.gmra.mxu0 %v513
      %v1540 = vpop.f32.mrf.mxu0
      %v1541 = vadd.f32 %v1428, %v1540
      %1542 = vmatmul.f32.gmra.mxu0 %v584
      %v1543 = vpop.f32.mrf.mxu0
      %v1544 = vadd.f32 %v1431, %v1543
      %1545 = vmatmul.f32.gmra.mxu0 %v516
      %v1546 = vpop.f32.mrf.mxu0
      %v1547 = vadd.f32 %v1434, %v1546
      %1548 = vmatmul.f32.gmra.mxu0 %v585
      %v1549 = vpop.f32.mrf.mxu0
      %v1550 = vadd.f32 %v1437, %v1549
      %1551 = vmatmul.f32.gmra.mxu0 %v519
      %v1552 = vpop.f32.mrf.mxu0
      %v1553 = vadd.f32 %v1440, %v1552
      %1554 = vmatmul.f32.gmra.mxu0 %v586
      %v1555 = vpop.f32.mrf.mxu0
      %v1556 = vadd.f32 %v1443, %v1555
      %1557 = vmatmul.f32.gmra.mxu0 %v522
      %v1558 = vpop.f32.mrf.mxu0
      %v1559 = vadd.f32 %v1446, %v1558
      %1560 = vmatmul.f32.gmra.mxu0 %v587
      %v1561 = vpop.f32.mrf.mxu0
      %v1562 = vadd.f32 %v1449, %v1561
      %1563 = vmatmul.f32.gmra.mxu0 %v525
      %v1564 = vpop.f32.mrf.mxu0
      %v1565 = vadd.f32 %v1452, %v1564
      %1566 = vmatmul.f32.gmra.mxu0 %v588
      %v1567 = vpop.f32.mrf.mxu0
      %v1568 = vadd.f32 %v1455, %v1567
      %1569 = vmatmul.f32.gmra.mxu0 %v528
      %v1570 = vpop.f32.mrf.mxu0
      %v1571 = vadd.f32 %v1458, %v1570
      %1572 = vmatmul.f32.gmra.mxu0 %v589
      %v1573 = vpop.f32.mrf.mxu0
      %v1574 = vadd.f32 %v1461, %v1573
      %1575 = vmatmul.f32.gmra.mxu0 %v531
      %v1576 = vpop.f32.mrf.mxu0
      %v1577 = vadd.f32 %v1464, %v1576
      %1578 = vmatmul.f32.gmra.mxu0 %v590
      %v1579 = vpop.f32.mrf.mxu0
      %v1580 = vadd.f32 %v1467, %v1579
      %1581 = vmatmul.f32.gmra.mxu0 %v534
      %v1582 = vpop.f32.mrf.mxu0
      %v1583 = vadd.f32 %v1470, %v1582
      %1584 = vmatmul.f32.gmra.mxu0 %v591
      %v1585 = vpop.f32.mrf.mxu0
      %v1586 = vadd.f32 %v1473, %v1585
      %1587 = vmatmul.f32.gmra.mxu0 %v537
      %v1588 = vpop.f32.mrf.mxu0
      %v1589 = vadd.f32 %v1476, %v1588
      %1590 = vmatmul.f32.gmra.mxu0 %v592
      %v1591 = vpop.f32.mrf.mxu0
      %v1592 = vadd.f32 %v1479, %v1591
      %1593 = vmatmul.f32.gmra.mxu0 %v540
      %v1594 = vpop.f32.mrf.mxu0
      %v1595 = vadd.f32 %v1482, %v1594
      %1596 = vmatmul.f32.gmra.mxu0 %v593
      %v1597 = vpop.f32.mrf.mxu0
      %v1598 = vadd.f32 %v1485, %v1597
      %1599 = vmatmul.f32.gmra.mxu0 %v543
      %v1600 = vpop.f32.mrf.mxu0
      %v1601 = vadd.f32 %v1488, %v1600
      %1602 = vmatmul.f32.gmra.mxu0 %v594
      %v1603 = vpop.f32.mrf.mxu0
      %v1604 = vadd.f32 %v1491, %v1603
      %1605 = vmatmul.f32.gmra.mxu0 %v495
      %v1606 = vpop.f32.mrf.mxu0
      %v1607 = vadd.f32 %v1494, %v1606
      %1608 = vmatmul.f32.gmra.mxu0 %v578
      %v1609 = vpop.f32.mrf.mxu0
      %v1610 = vadd.f32 %v1497, %v1609
      %1611 = vdwg.mxu0
      %1612 = vst [vmem:[%s177] sm:$0xff] %v1517
      %1613 = vst [vmem:[%s177 + $0x8] sm:$0xff] %v1520
      %1614 = vst [vmem:[%s177 + $0x10] sm:$0xff] %v1523
      %1615 = vst [vmem:[%s177 + $0x18] sm:$0xff] %v1526
      %1616 = vst [vmem:[%s177 + $0x20] sm:$0xff] %v1529
      %1617 = vst [vmem:[%s177 + $0x28] sm:$0xff] %v1532
      %1618 = vst [vmem:[%s177 + $0x30] sm:$0xff] %v1535
      %1619 = vst [vmem:[%s177 + $0x38] sm:$0xff] %v1538
      %1620 = vst [vmem:[%s177 + $0x40] sm:$0xff] %v1541
      %1621 = vst [vmem:[%s177 + $0x48] sm:$0xff] %v1544
      %1622 = vst [vmem:[%s177 + $0x50] sm:$0xff] %v1547
      %1623 = vst [vmem:[%s177 + $0x58] sm:$0xff] %v1550
      %1624 = vst [vmem:[%s177 + $0x60] sm:$0xff] %v1553
      %1625 = vst [vmem:[%s177 + $0x68] sm:$0xff] %v1556
      %1626 = vst [vmem:[%s177 + $0x70] sm:$0xff] %v1559
      %1627 = vst [vmem:[%s177 + $0x78] sm:$0xff] %v1562
      %1628 = vst [vmem:[%s177 + $0x80] sm:$0xff] %v1565
      %1629 = vst [vmem:[%s177 + $0x88] sm:$0xff] %v1568
      %1630 = vst [vmem:[%s177 + $0x90] sm:$0xff] %v1571
      %1631 = vst [vmem:[%s177 + $0x98] sm:$0xff] %v1574
      %1632 = vst [vmem:[%s177 + $0xa0] sm:$0xff] %v1577
      %1633 = vst [vmem:[%s177 + $0xa8] sm:$0xff] %v1580
      %1634 = vst [vmem:[%s177 + $0xb0] sm:$0xff] %v1583
      %1635 = vst [vmem:[%s177 + $0xb8] sm:$0xff] %v1586
      %1636 = vst [vmem:[%s177 + $0xc0] sm:$0xff] %v1589
      %1637 = vst [vmem:[%s177 + $0xc8] sm:$0xff] %v1592
      %1638 = vst [vmem:[%s177 + $0xd0] sm:$0xff] %v1595
      %1639 = vst [vmem:[%s177 + $0xd8] sm:$0xff] %v1598
      %1640 = vst [vmem:[%s177 + $0xe0] sm:$0xff] %v1601
      %1641 = vst [vmem:[%s177 + $0xe8] sm:$0xff] %v1604
      %1642 = vst [vmem:[%s177 + $0xf0] sm:$0xff] %v1607
      %1643 = vst [vmem:[%s177 + $0xf8] sm:$0xff] %v1610
      %v1644 = vadd.f32 %v1517, %v1520
      %v1645 = vadd.f32 %v1644, %v1523
      %v1646 = vadd.f32 %v1645, %v1526
      %v1647 = vadd.f32 %v1646, %v1529
      %v1648 = vadd.f32 %v1647, %v1532
      %v1649 = vadd.f32 %v1648, %v1535
      %v1650 = vadd.f32 %v1649, %v1538
      %v1651 = vadd.f32 %v1650, %v1541
      %v1652 = vadd.f32 %v1651, %v1544
      %v1653 = vadd.f32 %v1652, %v1547
      %v1654 = vadd.f32 %v1653, %v1550
      %v1655 = vadd.f32 %v1654, %v1553
      %v1656 = vadd.f32 %v1655, %v1556
      %v1657 = vadd.f32 %v1656, %v1559
      %v1658 = vadd.f32 %v1657, %v1562
      %v1659 = vadd.f32 %v1658, %v1565
      %v1660 = vadd.f32 %v1659, %v1568
      %v1661 = vadd.f32 %v1660, %v1571
      %v1662 = vadd.f32 %v1661, %v1574
      %v1663 = vadd.f32 %v1662, %v1577
      %v1664 = vadd.f32 %v1663, %v1580
      %v1665 = vadd.f32 %v1664, %v1583
      %v1666 = vadd.f32 %v1665, %v1586
      %v1667 = vadd.f32 %v1666, %v1589
      %v1668 = vadd.f32 %v1667, %v1592
      %v1669 = vadd.f32 %v1668, %v1595
      %v1670 = vadd.f32 %v1669, %v1598
      %v1671 = vadd.f32 %v1670, %v1601
      %v1672 = vadd.f32 %v1671, %v1604
      %v1673 = vadd.f32 %v1672, %v1607
      %v1674 = vadd.f32 %v1673, %v1610
      %v1675 = vrot.slane %v1674, 4
      %v1676 = vadd.f32 %v1674, %v1675
      %v1677 = vrot.slane %v1676, 2
      %v1678 = vadd.f32 %v1676, %v1677
      %v1679 = vrot.slane %v1678, 1
      %v1680 = vadd.f32 %v1678, %v1679
      %v1681 = vmul.f32 %v1517, %v1517
      %v1682 = vmul.f32 %v1520, %v1520
      %v1683 = vmul.f32 %v1523, %v1523
      %v1684 = vmul.f32 %v1526, %v1526
      %v1685 = vmul.f32 %v1529, %v1529
      %v1686 = vmul.f32 %v1532, %v1532
      %v1687 = vmul.f32 %v1535, %v1535
      %v1688 = vmul.f32 %v1538, %v1538
      %v1689 = vmul.f32 %v1541, %v1541
      %v1690 = vmul.f32 %v1544, %v1544
      %v1691 = vmul.f32 %v1547, %v1547
      %v1692 = vmul.f32 %v1550, %v1550
      %v1693 = vmul.f32 %v1553, %v1553
      %v1694 = vmul.f32 %v1556, %v1556
      %v1695 = vmul.f32 %v1559, %v1559
      %v1696 = vmul.f32 %v1562, %v1562
      %v1697 = vmul.f32 %v1565, %v1565
      %v1698 = vmul.f32 %v1568, %v1568
      %v1699 = vmul.f32 %v1571, %v1571
      %v1700 = vmul.f32 %v1574, %v1574
      %v1701 = vmul.f32 %v1577, %v1577
      %v1702 = vmul.f32 %v1580, %v1580
      %v1703 = vmul.f32 %v1583, %v1583
      %v1704 = vmul.f32 %v1586, %v1586
      %v1705 = vmul.f32 %v1589, %v1589
      %v1706 = vmul.f32 %v1592, %v1592
      %v1707 = vmul.f32 %v1595, %v1595
      %v1708 = vmul.f32 %v1598, %v1598
      %v1709 = vmul.f32 %v1601, %v1601
      %v1710 = vmul.f32 %v1604, %v1604
      %v1711 = vmul.f32 %v1607, %v1607
      %v1712 = vmul.f32 %v1610, %v1610
      %v1713 = vadd.f32 %v1681, %v1682
      %v1714 = vadd.f32 %v1713, %v1683
      %v1715 = vadd.f32 %v1714, %v1684
      %v1716 = vadd.f32 %v1715, %v1685
      %v1717 = vadd.f32 %v1716, %v1686
      %v1718 = vadd.f32 %v1717, %v1687
      %v1719 = vadd.f32 %v1718, %v1688
      %v1720 = vadd.f32 %v1719, %v1689
      %v1721 = vadd.f32 %v1720, %v1690
      %v1722 = vadd.f32 %v1721, %v1691
      %v1723 = vadd.f32 %v1722, %v1692
      %v1724 = vadd.f32 %v1723, %v1693
      %v1725 = vadd.f32 %v1724, %v1694
      %v1726 = vadd.f32 %v1725, %v1695
      %v1727 = vadd.f32 %v1726, %v1696
      %v1728 = vadd.f32 %v1727, %v1697
      %v1729 = vadd.f32 %v1728, %v1698
      %v1730 = vadd.f32 %v1729, %v1699
      %v1731 = vadd.f32 %v1730, %v1700
      %v1732 = vadd.f32 %v1731, %v1701
      %v1733 = vadd.f32 %v1732, %v1702
      %v1734 = vadd.f32 %v1733, %v1703
      %v1735 = vadd.f32 %v1734, %v1704
      %v1736 = vadd.f32 %v1735, %v1705
      %v1737 = vadd.f32 %v1736, %v1706
      %v1738 = vadd.f32 %v1737, %v1707
      %v1739 = vadd.f32 %v1738, %v1708
      %v1740 = vadd.f32 %v1739, %v1709
      %v1741 = vadd.f32 %v1740, %v1710
      %v1742 = vadd.f32 %v1741, %v1711
      %v1743 = vadd.f32 %v1742, %v1712
      %v1744 = vrot.slane %v1743, 4
      %v1745 = vadd.f32 %v1743, %v1744
      %v1746 = vrot.slane %v1745, 2
      %v1747 = vadd.f32 %v1745, %v1746
      %v1748 = vrot.slane %v1747, 1
      %v1749 = vadd.f32 %v1747, %v1748
      %v1750 = vsel %vm391, %v1680, %v1749
      %1751 = vst [vmem:[%s181] sm:$0x3] %v1750
      %p1752 = scmp.lt.s32.totalorder %s15, 1
      %s1753 = scalar_select %p1752, %s15, 1
      %s1754 = smul.addr %s1753, 32
      %s1755 = smul.addr %s1754, 8
      %s1756 = scalar_lea.vmem %s2, %s1755
      %p1757 = scmp.lt.s32.totalorder %s15, 1
      %s1758 = scalar_select %p1757, %s15, 1
      %s1759 = smul.addr %s1758, 2
      %s1760 = scalar_lea.vmem %s3, %s1759
      // Predicated region
      $region29: #{double_conv.3} parent=27 // pred_check
        %p1761 = pneg %p80
      $region30: #{double_conv.3} parent=27 // pred_check_branch
        %1763 = sbr.rel (%p1761) target = $region32
      $region31: #{double_conv.3} parent=27 // pred_region
        _
      $region32: #{double_conv.3} parent=27 // pred_fallthru
        _
      // Predicated region
      $region33: #{double_conv.3} parent=27 // pred_check
        %p1764 = pneg %p106
      $region34: #{double_conv.3} parent=27 // pred_check_branch
        %1766 = sbr.rel (%p1764) target = $region36
      $region35: #{double_conv.3} parent=27 // pred_region
        _
      $region36: #{double_conv.3} parent=27 // pred_fallthru
        _
    $region28: #{double_conv.3} parent=5 // pred_fallthru
      _
    %p1767 = scmp.le.s32.totalorder 2, %s10
    // Predicated region
    $region37: #{double_conv.3} parent=5 // pred_check
      %p1768 = pneg %p1767
    $region38: #{double_conv.3} parent=5 // pred_check_branch
      %1770 = sbr.rel (%p1768) target = $region40
    $region39: #{double_conv.3} parent=5 // pred_region
      %s1771 = ssub.s32 %s10, 2
      // Predicated region
      $region41: #{double_conv.3} parent=39 // pred_check
        %p1772 = pneg %p86
      $region42: #{double_conv.3} parent=39 // pred_check_branch
        %1774 = sbr.rel (%p1772) target = $region44
      $region43: #{double_conv.3} parent=39 // pred_region
        %p1775 = scmp.lt.s32.totalorder %s16, 1
        %s1776 = scalar_select %p1775, %s16, 1
        %s1777 = smul.addr %s1776, 32
        %s1778 = smul.addr %s1777, 8
        %s1779 = scalar_lea.vmem %s2, %s1778
      $region44: #{double_conv.3} parent=39 // pred_fallthru
        _
      // Predicated region
      $region45: #{double_conv.3} parent=39 // pred_check
        %p1780 = pneg %p112
      $region46: #{double_conv.3} parent=39 // pred_check_branch
        %1782 = sbr.rel (%p1780) target = $region48
      $region47: #{double_conv.3} parent=39 // pred_region
        %p1783 = scmp.lt.s32.totalorder %s16, 1
        %s1784 = scalar_select %p1783, %s16, 1
        %s1785 = smul.addr %s1784, 2
        %s1786 = scalar_lea.vmem %s3, %s1785
      $region48: #{double_conv.3} parent=39 // pred_fallthru
        _
    $region40: #{double_conv.3} parent=5 // pred_fallthru
      _
  $region6: #{double_conv.3} parent=0 // loop_footer
    %s14 = sadd.s32 1, %s10
  $region7: #{double_conv.3} parent=0 // loop_footer_branch
    %9 = sbr.rel target = $region3
  $region8: #{double_conv.3} parent=0 // loop_exit
    _

// kernel: double_conv.4
$region0: #{double_conv.4}
  #allocation0 [shape = 'u32[]', space=smem, size = 0x4, offset = 0x4, fixed_abs, tag = 'smem constant byte address 0x4 - core index']
  #allocation1 [shape = 'u32[72,128]{1,0:T(1,128)}', space=vmem, size = 0x9000, scoped, tag = 'internal scratch']
  %s0 = inlined_call_operand.vmem [shape: f32[2,16,16,128], index: 0, kind: input, shape index: {}]
  %s1 = inlined_call_operand.vmem [shape: f32[1,128], index: 1, kind: input, shape index: {}]
  %s2 = inlined_call_operand.vmem [shape: f32[1,128], index: 2, kind: input, shape index: {}]
  %s3 = inlined_call_operand.vmem [shape: f32[1152,128], index: 3, kind: input, shape index: {}]
  %s4 = inlined_call_operand.vmem [shape: f32[2,16,16,128], index: 4, kind: output, shape index: {0}]
  %s5 = inlined_call_operand.vmem [shape: f32[2,2,128], index: 5, kind: output, shape index: {1}]
  %6 = xla_tuple %s4, %s5
  %s7 = sld [smem:[#allocation0]]
  $region57: #{double_conv.4} parent=0
    _
  %s9 = ssub.s32 1, %s7
  %s10 = scalar_select 0, %s9, %s7
  loop: start=0, step=1, limit=4
  $region2: #{double_conv.4} parent=0 // loop_pre_header
    _
  $region3: #{double_conv.4} parent=0 // loop_header
    %s12 = sphi 0, %s16
    %p13 = scmp.ge.s32.totalorder %s12, 4
    %s22 = sphi 0, %s24
    %s25 = sphi 0, %s22
    %s26 = sphi 0, %s25
    %s42 = sphi 0, %s26
    %s46 = sphi 0, %s46
    %s48 = sphi 0, %s46
    %s49 = sphi 0, %s48
    %s63 = sphi 0, %s49
    %s67 = sphi 0, %s67
    %s69 = sphi 0, %s67
    %s70 = sphi 0, %s69
    %s84 = sphi 0, %s70
    %s88 = sphi 0, %s88
    %s90 = sphi 0, %s88
    %s91 = sphi 0, %s90
    %s105 = sphi 0, %s91
    %s111 = sphi 0, %s113
    %s114 = sphi 0, %s111
    %s115 = sphi 0, %s114
    %s131 = sphi 0, %s115
    %s137 = sphi 0, %s139
    %s140 = sphi 0, %s137
    %s141 = sphi 0, %s140
    %s157 = sphi 0, %s141
  $region4: #{double_conv.4} parent=0 // loop_header_branch
    %15 = sbr.rel (%p13) target = $region8
  $region5: #{double_conv.4} parent=0 // loop_body
    %s17 = ssub.s32 %s12, 1
    %s18 = ssub.s32 %s12, 2
    %s19 = sadd.s32 %s12, 1
    %s20 = ssub.s32 %s12, %s19
    %p21 = scmp.eq.s32.totalorder %s20, 0
    %s23 = sadd.s32 %s22, 1
    %s24 = scalar_select %p21, %s22, %s23
    %p27 = pneg %p21
    %p28 = scmp.eq.s32.totalorder %s12, 1
    %p29 = por %p27, %p28
    %p30 = scmp.ne.s32.totalorder %s22, %s25
    %p31 = scmp.eq.s32.totalorder %s12, 0
    %p32 = por %p30, %p31
    %p33 = scmp.ne.s32.totalorder %s22, %s25
    %p34 = scmp.eq.s32.totalorder %s17, 1
    %p35 = por %p33, %p34
    %p36 = scmp.ne.s32.totalorder %s25, %s26
    %p37 = scmp.eq.s32.totalorder %s17, 0
    %p38 = por %p36, %p37
    %p39 = scmp.ne.s32.totalorder %s25, %s26
    %p40 = scmp.eq.s32.totalorder %s18, 1
    %p41 = por %p39, %p40
    %p43 = scmp.ne.s32.totalorder %s26, %s42
    %p44 = scmp.eq.s32.totalorder %s18, 0
    %p45 = por %p43, %p44
    %s47 = sadd.s32 %s46, 1
    %p50 = scmp.eq.s32.totalorder %s12, 1
    %p51 = scmp.ne.s32.totalorder %s46, %s48
    %p52 = scmp.eq.s32.totalorder %s12, 0
    %p53 = por %p51, %p52
    %p54 = scmp.ne.s32.totalorder %s46, %s48
    %p55 = scmp.eq.s32.totalorder %s17, 1
    %p56 = por %p54, %p55
    %p57 = scmp.ne.s32.totalorder %s48, %s49
    %p58 = scmp.eq.s32.totalorder %s17, 0
    %p59 = por %p57, %p58
    %p60 = scmp.ne.s32.totalorder %s48, %s49
    %p61 = scmp.eq.s32.totalorder %s18, 1
    %p62 = por %p60, %p61
    %p64 = scmp.ne.s32.totalorder %s49, %s63
    %p65 = scmp.eq.s32.totalorder %s18, 0
    %p66 = por %p64, %p65
    %s68 = sadd.s32 %s67, 1
    %p71 = scmp.eq.s32.totalorder %s12, 1
    %p72 = scmp.ne.s32.totalorder %s67, %s69
    %p73 = scmp.eq.s32.totalorder %s12, 0
    %p74 = por %p72, %p73
    %p75 = scmp.ne.s32.totalorder %s67, %s69
    %p76 = scmp.eq.s32.totalorder %s17, 1
    %p77 = por %p75, %p76
    %p78 = scmp.ne.s32.totalorder %s69, %s70
    %p79 = scmp.eq.s32.totalorder %s17, 0
    %p80 = por %p78, %p79
    %p81 = scmp.ne.s32.totalorder %s69, %s70
    %p82 = scmp.eq.s32.totalorder %s18, 1
    %p83 = por %p81, %p82
    %p85 = scmp.ne.s32.totalorder %s70, %s84
    %p86 = scmp.eq.s32.totalorder %s18, 0
    %p87 = por %p85, %p86
    %s89 = sadd.s32 %s88, 1
    %p92 = scmp.eq.s32.totalorder %s12, 1
    %p93 = scmp.ne.s32.totalorder %s88, %s90
    %p94 = scmp.eq.s32.totalorder %s12, 0
    %p95 = por %p93, %p94
    %p96 = scmp.ne.s32.totalorder %s88, %s90
    %p97 = scmp.eq.s32.totalorder %s17, 1
    %p98 = por %p96, %p97
    %p99 = scmp.ne.s32.totalorder %s90, %s91
    %p100 = scmp.eq.s32.totalorder %s17, 0
    %p101 = por %p99, %p100
    %p102 = scmp.ne.s32.totalorder %s90, %s91
    %p103 = scmp.eq.s32.totalorder %s18, 1
    %p104 = por %p102, %p103
    %p106 = scmp.ne.s32.totalorder %s91, %s105
    %p107 = scmp.eq.s32.totalorder %s18, 0
    %p108 = por %p106, %p107
    %s109 = ssub.s32 %s12, %s19
    %p110 = scmp.eq.s32.totalorder %s109, 0
    %s112 = sadd.s32 %s111, 1
    %s113 = scalar_select %p110, %s111, %s112
    %p116 = pneg %p110
    %p117 = scmp.eq.s32.totalorder %s12, 1
    %p118 = por %p116, %p117
    %p119 = scmp.ne.s32.totalorder %s111, %s114
    %p120 = scmp.eq.s32.totalorder %s12, 0
    %p121 = por %p119, %p120
    %p122 = scmp.ne.s32.totalorder %s111, %s114
    %p123 = scmp.eq.s32.totalorder %s17, 1
    %p124 = por %p122, %p123
    %p125 = scmp.ne.s32.totalorder %s114, %s115
    %p126 = scmp.eq.s32.totalorder %s17, 0
    %p127 = por %p125, %p126
    %p128 = scmp.ne.s32.totalorder %s114, %s115
    %p129 = scmp.eq.s32.totalorder %s18, 1
    %p130 = por %p128, %p129
    %p132 = scmp.ne.s32.totalorder %s115, %s131
    %p133 = scmp.eq.s32.totalorder %s18, 0
    %p134 = por %p132, %p133
    %s135 = ssub.s32 %s12, %s19
    %p136 = scmp.eq.s32.totalorder %s135, 0
    %s138 = sadd.s32 %s137, 1
    %s139 = scalar_select %p136, %s137, %s138
    %p142 = pneg %p136
    %p143 = scmp.eq.s32.totalorder %s12, 1
    %p144 = por %p142, %p143
    %p145 = scmp.ne.s32.totalorder %s137, %s140
    %p146 = scmp.eq.s32.totalorder %s12, 0
    %p147 = por %p145, %p146
    %p148 = scmp.ne.s32.totalorder %s137, %s140
    %p149 = scmp.eq.s32.totalorder %s17, 1
    %p150 = por %p148, %p149
    %p151 = scmp.ne.s32.totalorder %s140, %s141
    %p152 = scmp.eq.s32.totalorder %s17, 0
    %p153 = por %p151, %p152
    %p154 = scmp.ne.s32.totalorder %s140, %s141
    %p155 = scmp.eq.s32.totalorder %s18, 1
    %p156 = por %p154, %p155
    %p158 = scmp.ne.s32.totalorder %s141, %s157
    %p159 = scmp.eq.s32.totalorder %s18, 0
    %p160 = por %p158, %p159
    %p161 = scmp.le.s32.totalorder 1, %s12
    %p162 = scmp.lt.s32.totalorder %s12, 3
    %p163 = pnand %p161, %p162
    %p164 = pneg %p163
    // Predicated region
    $region9: #{double_conv.4} parent=5 // pred_check
      _
    $region10: #{double_conv.4} parent=5 // pred_check_branch
      %166 = sbr.rel (%p163) target = $region12
    $region11: #{double_conv.4} parent=5 // pred_region
      %s167 = ssub.s32 %s12, 1
      // Predicated region
      $region13: #{double_conv.4} parent=11 // pred_check
        %p168 = pneg %p59
      $region14: #{double_conv.4} parent=11 // pred_check_branch
        %170 = sbr.rel (%p168) target = $region16
      $region15: #{double_conv.4} parent=11 // pred_region
        _
      $region16: #{double_conv.4} parent=11 // pred_fallthru
        _
      // Predicated region
      $region17: #{double_conv.4} parent=11 // pred_check
        %p171 = pneg %p80
      $region18: #{double_conv.4} parent=11 // pred_check_branch
        %173 = sbr.rel (%p171) target = $region20
      $region19: #{double_conv.4} parent=11 // pred_region
        _
      $region20: #{double_conv.4} parent=11 // pred_fallthru
        _
      // Predicated region
      $region21: #{double_conv.4} parent=11 // pred_check
        %p174 = pneg %p101
      $region22: #{double_conv.4} parent=11 // pred_check_branch
        %176 = sbr.rel (%p174) target = $region24
      $region23: #{double_conv.4} parent=11 // pred_region
        _
      $region24: #{double_conv.4} parent=11 // pred_fallthru
        _
    $region12: #{double_conv.4} parent=5 // pred_fallthru
      _
    %p177 = scmp.lt.s32.totalorder %s12, 2
    // Predicated region
    $region25: #{double_conv.4} parent=5 // pred_check
      %p178 = pneg %p177
    $region26: #{double_conv.4} parent=5 // pred_check_branch
      %180 = sbr.rel (%p178) target = $region28
    $region27: #{double_conv.4} parent=5 // pred_region
      // Predicated region
      $region29: #{double_conv.4} parent=27 // pred_check
        %p181 = pneg %p32
      $region30: #{double_conv.4} parent=27 // pred_check_branch
        %183 = sbr.rel (%p181) target = $region32
      $region31: #{double_conv.4} parent=27 // pred_region
        %p184 = scmp.lt.s32.totalorder %s12, 1
        %s185 = scalar_select %p184, %s12, 1
        %s186 = smul.addr %s185, 32
        %s187 = smul.addr %s186, 8
        %s188 = scalar_lea.vmem %s0, %s187
      $region32: #{double_conv.4} parent=27 // pred_fallthru
        _
    $region28: #{double_conv.4} parent=5 // pred_fallthru
      _
    %p189 = scmp.le.s32.totalorder 1, %s12
    %p190 = scmp.lt.s32.totalorder %s12, 3
    %p191 = pnand %p189, %p190
    %p192 = pneg %p191
    // Predicated region
    $region33: #{double_conv.4} parent=5 // pred_check
      _
    $region34: #{double_conv.4} parent=5 // pred_check_branch
      %194 = sbr.rel (%p191) target = $region36
    $region35: #{double_conv.4} parent=5 // pred_region
      %s195 = ssub.s32 %s12, 1
      %p196 = scmp.lt.s32.totalorder %s17, 1
      %s197 = scalar_select %p196, %s17, 1
      %s198 = smul.addr %s197, 32
      %s199 = smul.addr %s198, 8
      %s200 = scalar_lea.vmem %s0, %s199
      %p201 = pneg %p38
      %p202 = pneg %p35
      %p203 = pneg %p59
      %p204 = pneg %p56
      %p205 = pneg %p80
      %p206 = pneg %p77
      %p207 = pneg %p101
      %p208 = pneg %p98
      %p209 = pneg %p127
      %p210 = pneg %p124
      %p211 = scmp.lt.s32.totalorder %s17, 1
      %s212 = scalar_select %p211, %s17, 1
      %s213 = smul.addr %s212, 32
      %s214 = smul.addr %s213, 8
      %s215 = scalar_lea.vmem %s4, %s214
      %p216 = pneg %p153
      %p217 = pneg %p150
      %p218 = scmp.lt.s32.totalorder %s17, 1
      %s219 = scalar_select %p218, %s17, 1
      %s220 = smul.addr %s219, 2
      %s221 = scalar_lea.vmem %s5, %s220
      %p222 = scmp.lt.s32.totalorder %s17, 1
      %s223 = scalar_select %p222, %s17, 1
      %s224 = smul.addr %s223, 32
      %s225 = smul.addr %s224, 8
      %s226 = scalar_lea.vmem %s0, %s225
      %p227 = scmp.lt.s32.totalorder %s17, 1
      %s228 = scalar_select %p227, %s17, 1
      %s229 = smul.addr %s228, 32
      %s230 = smul.addr %s229, 8
      %s231 = scalar_lea.vmem %s4, %s230
      %p232 = scmp.lt.s32.totalorder %s17, 1
      %s233 = scalar_select %p232, %s17, 1
      %s234 = smul.addr %s233, 2
      %s235 = scalar_lea.vmem %s5, %s234
      %v236 = vld [vmem:[%s1] sm:$0x1]
      %v237 = vld [vmem:[%s2] sm:$0x1]
      %v238 = vld [vmem:[%s226] sm:$0xff]
      %v239 = vld [vmem:[%s226 + $0x8] sm:$0xff]
      %v240 = vld [vmem:[%s226 + $0x10] sm:$0xff]
      %v241 = vld [vmem:[%s226 + $0x18] sm:$0xff]
      %v242 = vld [vmem:[%s226 + $0x20] sm:$0xff]
      %v243 = vld [vmem:[%s226 + $0x28] sm:$0xff]
      %v244 = vld [vmem:[%s226 + $0x30] sm:$0xff]
      %v245 = vld [vmem:[%s226 + $0x38] sm:$0xff]
      %v246 = vld [vmem:[%s226 + $0x40] sm:$0xff]
      %v247 = vld [vmem:[%s226 + $0x48] sm:$0xff]
      %v248 = vld [vmem:[%s226 + $0x50] sm:$0xff]
      %v249 = vld [vmem:[%s226 + $0x58] sm:$0xff]
      %v250 = vld [vmem:[%s226 + $0x60] sm:$0xff]
      %v251 = vld [vmem:[%s226 + $0x68] sm:$0xff]
      %v252 = vld [vmem:[%s226 + $0x70] sm:$0xff]
      %v253 = vld [vmem:[%s226 + $0x78] sm:$0xff]
      %v254 = vld [vmem:[%s226 + $0x80] sm:$0xff]
      %v255 = vld [vmem:[%s226 + $0x88] sm:$0xff]
      %v256 = vld [vmem:[%s226 + $0x90] sm:$0xff]
      %v257 = vld [vmem:[%s226 + $0x98] sm:$0xff]
      %v258 = vld [vmem:[%s226 + $0xa0] sm:$0xff]
      %v259 = vld [vmem:[%s226 + $0xa8] sm:$0xff]
      %v260 = vld [vmem:[%s226 + $0xb0] sm:$0xff]
      %v261 = vld [vmem:[%s226 + $0xb8] sm:$0xff]
      %v262 = vld [vmem:[%s226 + $0xc0] sm:$0xff]
      %v263 = vld [vmem:[%s226 + $0xc8] sm:$0xff]
      %v264 = vld [vmem:[%s226 + $0xd0] sm:$0xff]
      %v265 = vld [vmem:[%s226 + $0xd8] sm:$0xff]
      %v266 = vld [vmem:[%s226 + $0xe0] sm:$0xff]
      %v267 = vld [vmem:[%s226 + $0xe8] sm:$0xff]
      %v268 = vld [vmem:[%s226 + $0xf0] sm:$0xff]
      %v269 = vld [vmem:[%s226 + $0xf8] sm:$0xff]
      %v271 = vperm.slane %v236, 0
      %v273 = vmul.f32 %v238, %v271
      %v274 = vmul.f32 %v239, %v271
      %v275 = vmul.f32 %v240, %v271
      %v276 = vmul.f32 %v241, %v271
      %v277 = vmul.f32 %v242, %v271
      %v278 = vmul.f32 %v243, %v271
      %v279 = vmul.f32 %v244, %v271
      %v280 = vmul.f32 %v245, %v271
      %v281 = vmul.f32 %v246, %v271
      %v282 = vmul.f32 %v247, %v271
      %v283 = vmul.f32 %v248, %v271
      %v284 = vmul.f32 %v249, %v271
      %v285 = vmul.f32 %v250, %v271
      %v286 = vmul.f32 %v251, %v271
      %v287 = vmul.f32 %v252, %v271
      %v288 = vmul.f32 %v253, %v271
      %v289 = vmul.f32 %v254, %v271
      %v290 = vmul.f32 %v255, %v271
      %v291 = vmul.f32 %v256, %v271
      %v292 = vmul.f32 %v257, %v271
      %v293 = vmul.f32 %v258, %v271
      %v294 = vmul.f32 %v259, %v271
      %v295 = vmul.f32 %v260, %v271
      %v296 = vmul.f32 %v261, %v271
      %v297 = vmul.f32 %v262, %v271
      %v298 = vmul.f32 %v263, %v271
      %v299 = vmul.f32 %v264, %v271
      %v300 = vmul.f32 %v265, %v271
      %v301 = vmul.f32 %v266, %v271
      %v302 = vmul.f32 %v267, %v271
      %v303 = vmul.f32 %v268, %v271
      %v304 = vmul.f32 %v269, %v271
      %v306 = vperm.slane %v237, 0
      %v308 = vadd.f32 %v273, %v306
      %v309 = vadd.f32 %v274, %v306
      %v310 = vadd.f32 %v275, %v306
      %v311 = vadd.f32 %v276, %v306
      %v312 = vadd.f32 %v277, %v306
      %v313 = vadd.f32 %v278, %v306
      %v314 = vadd.f32 %v279, %v306
      %v315 = vadd.f32 %v280, %v306
      %v316 = vadd.f32 %v281, %v306
      %v317 = vadd.f32 %v282, %v306
      %v318 = vadd.f32 %v283, %v306
      %v319 = vadd.f32 %v284, %v306
      %v320 = vadd.f32 %v285, %v306
      %v321 = vadd.f32 %v286, %v306
      %v322 = vadd.f32 %v287, %v306
      %v323 = vadd.f32 %v288, %v306
      %v324 = vadd.f32 %v289, %v306
      %v325 = vadd.f32 %v290, %v306
      %v326 = vadd.f32 %v291, %v306
      %v327 = vadd.f32 %v292, %v306
      %v328 = vadd.f32 %v293, %v306
      %v329 = vadd.f32 %v294, %v306
      %v330 = vadd.f32 %v295, %v306
      %v331 = vadd.f32 %v296, %v306
      %v332 = vadd.f32 %v297, %v306
      %v333 = vadd.f32 %v298, %v306
      %v334 = vadd.f32 %v299, %v306
      %v335 = vadd.f32 %v300, %v306
      %v336 = vadd.f32 %v301, %v306
      %v337 = vadd.f32 %v302, %v306
      %v338 = vadd.f32 %v303, %v306
      %v339 = vadd.f32 %v304, %v306
      %v340 = vmax.f32 %v308, 0.0
      %v341 = vmax.f32 %v309, 0.0
      %v342 = vmax.f32 %v310, 0.0
      %v343 = vmax.f32 %v311, 0.0
      %v344 = vmax.f32 %v312, 0.0
      %v345 = vmax.f32 %v313, 0.0
      %v346 = vmax.f32 %v314, 0.0
      %v347 = vmax.f32 %v315, 0.0
      %v348 = vmax.f32 %v316, 0.0
      %v349 = vmax.f32 %v317, 0.0
      %v350 = vmax.f32 %v318, 0.0
      %v351 = vmax.f32 %v319, 0.0
      %v352 = vmax.f32 %v320, 0.0
      %v353 = vmax.f32 %v321, 0.0
      %v354 = vmax.f32 %v322, 0.0
      %v355 = vmax.f32 %v323, 0.0
      %v356 = vmax.f32 %v324, 0.0
      %v357 = vmax.f32 %v325, 0.0
      %v358 = vmax.f32 %v326, 0.0
      %v359 = vmax.f32 %v327, 0.0
      %v360 = vmax.f32 %v328, 0.0
      %v361 = vmax.f32 %v329, 0.0
      %v362 = vmax.f32 %v330, 0.0
      %v363 = vmax.f32 %v331, 0.0
      %v364 = vmax.f32 %v332, 0.0
      %v365 = vmax.f32 %v333, 0.0
      %v366 = vmax.f32 %v334, 0.0
      %v367 = vmax.f32 %v335, 0.0
      %v368 = vmax.f32 %v336, 0.0
      %v369 = vmax.f32 %v337, 0.0
      %v370 = vmax.f32 %v338, 0.0
      %v371 = vmax.f32 %v339, 0.0
      %v372 = vld [vmem:[%s3] sm:$0xff]
      %v373 = vld [vmem:[%s3 + $0x8] sm:$0xff]
      %v374 = vld [vmem:[%s3 + $0x10] sm:$0xff]
      %v375 = vld [vmem:[%s3 + $0x18] sm:$0xff]
      %v376 = vld [vmem:[%s3 + $0x20] sm:$0xff]
      %v377 = vld [vmem:[%s3 + $0x28] sm:$0xff]
      %v378 = vld [vmem:[%s3 + $0x30] sm:$0xff]
      %v379 = vld [vmem:[%s3 + $0x38] sm:$0xff]
      %v380 = vld [vmem:[%s3 + $0x40] sm:$0xff]
      %v381 = vld [vmem:[%s3 + $0x48] sm:$0xff]
      %v382 = vld [vmem:[%s3 + $0x50] sm:$0xff]
      %v383 = vld [vmem:[%s3 + $0x58] sm:$0xff]
      %v384 = vld [vmem:[%s3 + $0x60] sm:$0xff]
      %v385 = vld [vmem:[%s3 + $0x68] sm:$0xff]
      %v386 = vld [vmem:[%s3 + $0x70] sm:$0xff]
      %v387 = vld [vmem:[%s3 + $0x78] sm:$0xff]
      %v388 = vld [vmem:[%s3 + $0x80] sm:$0xff]
      %v389 = vld [vmem:[%s3 + $0x88] sm:$0xff]
      %v390 = vld [vmem:[%s3 + $0x90] sm:$0xff]
      %v391 = vld [vmem:[%s3 + $0x98] sm:$0xff]
      %v392 = vld [vmem:[%s3 + $0xa0] sm:$0xff]
      %v393 = vld [vmem:[%s3 + $0xa8] sm:$0xff]
      %v394 = vld [vmem:[%s3 + $0xb0] sm:$0xff]
      %v395 = vld [vmem:[%s3 + $0xb8] sm:$0xff]
      %v396 = vld [vmem:[%s3 + $0xc0] sm:$0xff]
      %v397 = vld [vmem:[%s3 + $0xc8] sm:$0xff]
      %v398 = vld [vmem:[%s3 + $0xd0] sm:$0xff]
      %v399 = vld [vmem:[%s3 + $0xd8] sm:$0xff]
      %v400 = vld [vmem:[%s3 + $0xe0] sm:$0xff]
      %v401 = vld [vmem:[%s3 + $0xe8] sm:$0xff]
      %v402 = vld [vmem:[%s3 + $0xf0] sm:$0xff]
      %v403 = vld [vmem:[%s3 + $0xf8] sm:$0xff]
      %v404 = vld [vmem:[%s3 + $0x100] sm:$0xff]
      %v405 = vld [vmem:[%s3 + $0x108] sm:$0xff]
      %v406 = vld [vmem:[%s3 + $0x110] sm:$0xff]
      %v407 = vld [vmem:[%s3 + $0x118] sm:$0xff]
      %v408 = vld [vmem:[%s3 + $0x120] sm:$0xff]
      %v409 = vld [vmem:[%s3 + $0x128] sm:$0xff]
      %v410 = vld [vmem:[%s3 + $0x130] sm:$0xff]
      %v411 = vld [vmem:[%s3 + $0x138] sm:$0xff]
      %v412 = vld [vmem:[%s3 + $0x140] sm:$0xff]
      %v413 = vld [vmem:[%s3 + $0x148] sm:$0xff]
      %v414 = vld [vmem:[%s3 + $0x150] sm:$0xff]
      %v415 = vld [vmem:[%s3 + $0x158] sm:$0xff]
      %v416 = vld [vmem:[%s3 + $0x160] sm:$0xff]
      %v417 = vld [vmem:[%s3 + $0x168] sm:$0xff]
      %v418 = vld [vmem:[%s3 + $0x170] sm:$0xff]
      %v419 = vld [vmem:[%s3 + $0x178] sm:$0xff]
      %v420 = vld [vmem:[%s3 + $0x180] sm:$0xff]
      %v421 = vld [vmem:[%s3 + $0x188] sm:$0xff]
      %v422 = vld [vmem:[%s3 + $0x190] sm:$0xff]
      %v423 = vld [vmem:[%s3 + $0x198] sm:$0xff]
      %v424 = vld [vmem:[%s3 + $0x1a0] sm:$0xff]
      %v425 = vld [vmem:[%s3 + $0x1a8] sm:$0xff]
      %v426 = vld [vmem:[%s3 + $0x1b0] sm:$0xff]
      %v427 = vld [vmem:[%s3 + $0x1b8] sm:$0xff]
      %v428 = vld [vmem:[%s3 + $0x1c0] sm:$0xff]
      %v429 = vld [vmem:[%s3 + $0x1c8] sm:$0xff]
      %v430 = vld [vmem:[%s3 + $0x1d0] sm:$0xff]
      %v431 = vld [vmem:[%s3 + $0x1d8] sm:$0xff]
      %v432 = vld [vmem:[%s3 + $0x1e0] sm:$0xff]
      %v433 = vld [vmem:[%s3 + $0x1e8] sm:$0xff]
      %v434 = vld [vmem:[%s3 + $0x1f0] sm:$0xff]
      %v435 = vld [vmem:[%s3 + $0x1f8] sm:$0xff]
      %v436 = vld [vmem:[%s3 + $0x200] sm:$0xff]
      %v437 = vld [vmem:[%s3 + $0x208] sm:$0xff]
      %v438 = vld [vmem:[%s3 + $0x210] sm:$0xff]
      %v439 = vld [vmem:[%s3 + $0x218] sm:$0xff]
      %v440 = vld [vmem:[%s3 + $0x220] sm:$0xff]
      %v441 = vld [vmem:[%s3 + $0x228] sm:$0xff]
      %v442 = vld [vmem:[%s3 + $0x230] sm:$0xff]
      %v443 = vld [vmem:[%s3 + $0x238] sm:$0xff]
      %v444 = vld [vmem:[%s3 + $0x240] sm:$0xff]
      %v445 = vld [vmem:[%s3 + $0x248] sm:$0xff]
      %v446 = vld [vmem:[%s3 + $0x250] sm:$0xff]
      %v447 = vld [vmem:[%s3 + $0x258] sm:$0xff]
      %v448 = vld [vmem:[%s3 + $0x260] sm:$0xff]
      %v449 = vld [vmem:[%s3 + $0x268] sm:$0xff]
      %v450 = vld [vmem:[%s3 + $0x270] sm:$0xff]
      %v451 = vld [vmem:[%s3 + $0x278] sm:$0xff]
      %v452 = vld [vmem:[%s3 + $0x280] sm:$0xff]
      %v453 = vld [vmem:[%s3 + $0x288] sm:$0xff]
      %v454 = vld [vmem:[%s3 + $0x290] sm:$0xff]
      %v455 = vld [vmem:[%s3 + $0x298] sm:$0xff]
      %v456 = vld [vmem:[%s3 + $0x2a0] sm:$0xff]
      %v457 = vld [vmem:[%s3 + $0x2a8] sm:$0xff]
      %v458 = vld [vmem:[%s3 + $0x2b0] sm:$0xff]
      %v459 = vld [vmem:[%s3 + $0x2b8] sm:$0xff]
      %v460 = vld [vmem:[%s3 + $0x2c0] sm:$0xff]
      %v461 = vld [vmem:[%s3 + $0x2c8] sm:$0xff]
      %v462 = vld [vmem:[%s3 + $0x2d0] sm:$0xff]
      %v463 = vld [vmem:[%s3 + $0x2d8] sm:$0xff]
      %v464 = vld [vmem:[%s3 + $0x2e0] sm:$0xff]
      %v465 = vld [vmem:[%s3 + $0x2e8] sm:$0xff]
      %v466 = vld [vmem:[%s3 + $0x2f0] sm:$0xff]
      %v467 = vld [vmem:[%s3 + $0x2f8] sm:$0xff]
      %v468 = vld [vmem:[%s3 + $0x300] sm:$0xff]
      %v469 = vld [vmem:[%s3 + $0x308] sm:$0xff]
      %v470 = vld [vmem:[%s3 + $0x310] sm:$0xff]
      %v471 = vld [vmem:[%s3 + $0x318] sm:$0xff]
      %v472 = vld [vmem:[%s3 + $0x320] sm:$0xff]
      %v473 = vld [vmem:[%s3 + $0x328] sm:$0xff]
      %v474 = vld [vmem:[%s3 + $0x330] sm:$0xff]
      %v475 = vld [vmem:[%s3 + $0x338] sm:$0xff]
      %v476 = vld [vmem:[%s3 + $0x340] sm:$0xff]
      %v477 = vld [vmem:[%s3 + $0x348] sm:$0xff]
      %v478 = vld [vmem:[%s3 + $0x350] sm:$0xff]
      %v479 = vld [vmem:[%s3 + $0x358] sm:$0xff]
      %v480 = vld [vmem:[%s3 + $0x360] sm:$0xff]
      %v481 = vld [vmem:[%s3 + $0x368] sm:$0xff]
      %v482 = vld [vmem:[%s3 + $0x370] sm:$0xff]
      %v483 = vld [vmem:[%s3 + $0x378] sm:$0xff]
      %v484 = vld [vmem:[%s3 + $0x380] sm:$0xff]
      %v485 = vld [vmem:[%s3 + $0x388] sm:$0xff]
      %v486 = vld [vmem:[%s3 + $0x390] sm:$0xff]
      %v487 = vld [vmem:[%s3 + $0x398] sm:$0xff]
      %v488 = vld [vmem:[%s3 + $0x3a0] sm:$0xff]
      %v489 = vld [vmem:[%s3 + $0x3a8] sm:$0xff]
      %v490 = vld [vmem:[%s3 + $0x3b0] sm:$0xff]
      %v491 = vld [vmem:[%s3 + $0x3b8] sm:$0xff]
      %v492 = vld [vmem:[%s3 + $0x3c0] sm:$0xff]
      %v493 = vld [vmem:[%s3 + $0x3c8] sm:$0xff]
      %v494 = vld [vmem:[%s3 + $0x3d0] sm:$0xff]
      %v495 = vld [vmem:[%s3 + $0x3d8] sm:$0xff]
      %v496 = vld [vmem:[%s3 + $0x3e0] sm:$0xff]
      %v497 = vld [vmem:[%s3 + $0x3e8] sm:$0xff]
      %v498 = vld [vmem:[%s3 + $0x3f0] sm:$0xff]
      %v499 = vld [vmem:[%s3 + $0x3f8] sm:$0xff]
      %v500 = vld [vmem:[%s3 + $0x400] sm:$0xff]
      %v501 = vld [vmem:[%s3 + $0x408] sm:$0xff]
      %v502 = vld [vmem:[%s3 + $0x410] sm:$0xff]
      %v503 = vld [vmem:[%s3 + $0x418] sm:$0xff]
      %v504 = vld [vmem:[%s3 + $0x420] sm:$0xff]
      %v505 = vld [vmem:[%s3 + $0x428] sm:$0xff]
      %v506 = vld [vmem:[%s3 + $0x430] sm:$0xff]
      %v507 = vld [vmem:[%s3 + $0x438] sm:$0xff]
      %v508 = vld [vmem:[%s3 + $0x440] sm:$0xff]
      %v509 = vld [vmem:[%s3 + $0x448] sm:$0xff]
      %v510 = vld [vmem:[%s3 + $0x450] sm:$0xff]
      %v511 = vld [vmem:[%s3 + $0x458] sm:$0xff]
      %v512 = vld [vmem:[%s3 + $0x460] sm:$0xff]
      %v513 = vld [vmem:[%s3 + $0x468] sm:$0xff]
      %v514 = vld [vmem:[%s3 + $0x470] sm:$0xff]
      %v515 = vld [vmem:[%s3 + $0x478] sm:$0xff]
      %vm549 = vcmask 1040384
      %v550 = vrot.slane 0.0, 7
      %v551 = vsel %vm549, %v550, %v550
      %v552 = vrot.slane %v340, 7
      %v553 = vrot.slane %v341, 7
      %v554 = vsel %vm549, %v552, %v553
      %v555 = vrot.slane %v342, 7
      %v556 = vrot.slane %v343, 7
      %v557 = vsel %vm549, %v555, %v556
      %v558 = vrot.slane %v344, 7
      %v559 = vrot.slane %v345, 7
      %v560 = vsel %vm549, %v558, %v559
      %v561 = vrot.slane %v346, 7
      %v562 = vrot.slane %v347, 7
      %v563 = vsel %vm549, %v561, %v562
      %v564 = vrot.slane %v348, 7
      %v565 = vrot.slane %v349, 7
      %v566 = vsel %vm549, %v564, %v565
      %v567 = vrot.slane %v350, 7
      %v568 = vrot.slane %v351, 7
      %v569 = vsel %vm549, %v567, %v568
      %v570 = vrot.slane %v352, 7
      %v571 = vrot.slane %v353, 7
      %v572 = vsel %vm549, %v570, %v571
      %v573 = vrot.slane %v354, 7
      %v574 = vrot.slane %v355, 7
      %v575 = vsel %vm549, %v573, %v574
      %v576 = vrot.slane %v356, 7
      %v577 = vrot.slane %v357, 7
      %v578 = vsel %vm549, %v576, %v577
      %v579 = vrot.slane %v358, 7
      %v580 = vrot.slane %v359, 7
      %v581 = vsel %vm549, %v579, %v580
      %v582 = vrot.slane %v360, 7
      %v583 = vrot.slane %v361, 7
      %v584 = vsel %vm549, %v582, %v583
      %v585 = vrot.slane %v362, 7
      %v586 = vrot.slane %v363, 7
      %v587 = vsel %vm549, %v585, %v586
      %v588 = vrot.slane %v364, 7
      %v589 = vrot.slane %v365, 7
      %v590 = vsel %vm549, %v588, %v589
      %v591 = vrot.slane %v366, 7
      %v592 = vrot.slane %v367, 7
      %v593 = vsel %vm549, %v591, %v592
      %v594 = vrot.slane %v368, 7
      %v595 = vrot.slane %v369, 7
      %v596 = vsel %vm549, %v594, %v595
      %v597 = vrot.slane %v370, 7
      %v598 = vrot.slane %v371, 7
      %v599 = vsel %vm549, %v597, %v598
      %v634 = vsel %vm549, 0.0, %v550
      %v635 = vsel %vm549, 0.0, %v552
      %v636 = vsel %vm549, 0.0, %v555
      %v637 = vsel %vm549, 0.0, %v558
      %v638 = vsel %vm549, 0.0, %v561
      %v639 = vsel %vm549, 0.0, %v564
      %v640 = vsel %vm549, 0.0, %v567
      %v641 = vsel %vm549, 0.0, %v570
      %v642 = vsel %vm549, 0.0, %v573
      %v643 = vsel %vm549, 0.0, %v576
      %v644 = vsel %vm549, 0.0, %v579
      %v645 = vsel %vm549, 0.0, %v582
      %v646 = vsel %vm549, 0.0, %v585
      %v647 = vsel %vm549, 0.0, %v588
      %v648 = vsel %vm549, 0.0, %v591
      %v649 = vsel %vm549, 0.0, %v594
      %v650 = vsel %vm549, 0.0, %v597
      %vm651 = vcmask 1046528
      %v652 = vrot.slane 0.0, 1
      %v653 = vsel %vm651, %v652, %v652
      %v654 = vrot.slane %v340, 1
      %v655 = vrot.slane %v341, 1
      %v656 = vsel %vm651, %v654, %v655
      %v657 = vrot.slane %v342, 1
      %v658 = vrot.slane %v343, 1
      %v659 = vsel %vm651, %v657, %v658
      %v660 = vrot.slane %v344, 1
      %v661 = vrot.slane %v345, 1
      %v662 = vsel %vm651, %v660, %v661
      %v663 = vrot.slane %v346, 1
      %v664 = vrot.slane %v347, 1
      %v665 = vsel %vm651, %v663, %v664
      %v666 = vrot.slane %v348, 1
      %v667 = vrot.slane %v349, 1
      %v668 = vsel %vm651, %v666, %v667
      %v669 = vrot.slane %v350, 1
      %v670 = vrot.slane %v351, 1
      %v671 = vsel %vm651, %v669, %v670
      %v672 = vrot.slane %v352, 1
      %v673 = vrot.slane %v353, 1
      %v674 = vsel %vm651, %v672, %v673
      %v675 = vrot.slane %v354, 1
      %v676 = vrot.slane %v355, 1
      %v677 = vsel %vm651, %v675, %v676
      %v678 = vrot.slane %v356, 1
      %v679 = vrot.slane %v357, 1
      %v680 = vsel %vm651, %v678, %v679
      %v681 = vrot.slane %v358, 1
      %v682 = vrot.slane %v359, 1
      %v683 = vsel %vm651, %v681, %v682
      %v684 = vrot.slane %v360, 1
      %v685 = vrot.slane %v361, 1
      %v686 = vsel %vm651, %v684, %v685
      %v687 = vrot.slane %v362, 1
      %v688 = vrot.slane %v363, 1
      %v689 = vsel %vm651, %v687, %v688
      %v690 = vrot.slane %v364, 1
      %v691 = vrot.slane %v365, 1
      %v692 = vsel %vm651, %v690, %v691
      %v693 = vrot.slane %v366, 1
      %v694 = vrot.slane %v367, 1
      %v695 = vsel %vm651, %v693, %v694
      %v696 = vrot.slane %v368, 1
      %v697 = vrot.slane %v369, 1
      %v698 = vsel %vm651, %v696, %v697
      %v699 = vrot.slane %v370, 1
      %v700 = vrot.slane %v371, 1
      %v701 = vsel %vm651, %v699, %v700
      %v736 = vsel %vm651, %v652, 0.0
      %v737 = vsel %vm651, %v655, 0.0
      %v738 = vsel %vm651, %v658, 0.0
      %v739 = vsel %vm651, %v661, 0.0
      %v740 = vsel %vm651, %v664, 0.0
      %v741 = vsel %vm651, %v667, 0.0
      %v742 = vsel %vm651, %v670, 0.0
      %v743 = vsel %vm651, %v673, 0.0
      %v744 = vsel %vm651, %v676, 0.0
      %v745 = vsel %vm651, %v679, 0.0
      %v746 = vsel %vm651, %v682, 0.0
      %v747 = vsel %vm651, %v685, 0.0
      %v748 = vsel %vm651, %v688, 0.0
      %v749 = vsel %vm651, %v691, 0.0
      %v750 = vsel %vm651, %v694, 0.0
      %v751 = vsel %vm651, %v697, 0.0
      %v752 = vsel %vm651, %v700, 0.0
      %753 = vmatpush.msra.mxu0 %v387
      %754 = vmatpush.msra.mxu0 %v386
      %755 = vmatpush.msra.mxu0 %v385
      %756 = vmatpush.msra.mxu0 %v384
      %757 = vmatpush.msra.mxu0 %v383
      %758 = vmatpush.msra.mxu0 %v382
      %759 = vmatpush.msra.mxu0 %v381
      %760 = vmatpush.msra.mxu0 %v380
      %761 = vmatpush.msra.mxu0 %v379
      %762 = vmatpush.msra.mxu0 %v378
      %763 = vmatpush.msra.mxu0 %v377
      %764 = vmatpush.msra.mxu0 %v376
      %765 = vmatpush.msra.mxu0 %v375
      %766 = vmatpush.msra.mxu0 %v374
      %767 = vmatpush.msra.mxu0 %v373
      %768 = vmatpush.msra.mxu0 %v372
      %769 = vmatmul.f32.gmra.mxu0 %v634
      %v770 = vpop.f32.mrf.mxu0
      %v771 = vadd.f32 0.0, %v770
      %772 = vmatmul.f32.gmra.mxu0 %v551
      %v773 = vpop.f32.mrf.mxu0
      %v774 = vadd.f32 0.0, %v773
      %775 = vmatmul.f32.gmra.mxu0 %v635
      %v776 = vpop.f32.mrf.mxu0
      %v777 = vadd.f32 0.0, %v776
      %778 = vmatmul.f32.gmra.mxu0 %v554
      %v779 = vpop.f32.mrf.mxu0
      %v780 = vadd.f32 0.0, %v779
      %781 = vmatmul.f32.gmra.mxu0 %v636
      %v782 = vpop.f32.mrf.mxu0
      %v783 = vadd.f32 0.0, %v782
      %784 = vmatmul.f32.gmra.mxu0 %v557
      %v785 = vpop.f32.mrf.mxu0
      %v786 = vadd.f32 0.0, %v785
      %787 = vmatmul.f32.gmra.mxu0 %v637
      %v788 = vpop.f32.mrf.mxu0
      %v789 = vadd.f32 0.0, %v788
      %790 = vmatmul.f32.gmra.mxu0 %v560
      %v791 = vpop.f32.mrf.mxu0
      %v792 = vadd.f32 0.0, %v791
      %793 = vmatmul.f32.gmra.mxu0 %v638
      %v794 = vpop.f32.mrf.mxu0
      %v795 = vadd.f32 0.0, %v794
      %796 = vmatmul.f32.gmra.mxu0 %v563
      %v797 = vpop.f32.mrf.mxu0
      %v798 = vadd.f32 0.0, %v797
      %799 = vmatmul.f32.gmra.mxu0 %v639
      %v800 = vpop.f32.mrf.mxu0
      %v801 = vadd.f32 0.0, %v800
      %802 = vmatmul.f32.gmra.mxu0 %v566
      %v803 = vpop.f32.mrf.mxu0
      %v804 = vadd.f32 0.0, %v803
      %805 = vmatmul.f32.gmra.mxu0 %v640
      %v806 = vpop.f32.mrf.mxu0
      %v807 = vadd.f32 0.0, %v806
      %808 = vmatmul.f32.gmra.mxu0 %v569
      %v809 = vpop.f32.mrf.mxu0
      %v810 = vadd.f32 0.0, %v809
      %811 = vmatmul.f32.gmra.mxu0 %v641
      %v812 = vpop.f32.mrf.mxu0
      %v813 = vadd.f32 0.0, %v812
      %814 = vmatmul.f32.gmra.mxu0 %v572
      %v815 = vpop.f32.mrf.mxu0
      %v816 = vadd.f32 0.0, %v815
      %817 = vmatmul.f32.gmra.mxu0 %v642
      %v818 = vpop.f32.mrf.mxu0
      %v819 = vadd.f32 0.0, %v818
      %820 = vmatmul.f32.gmra.mxu0 %v575
      %v821 = vpop.f32.mrf.mxu0
      %v822 = vadd.f32 0.0, %v821
      %823 = vmatmul.f32.gmra.mxu0 %v643
      %v824 = vpop.f32.mrf.mxu0
      %v825 = vadd.f32 0.0, %v824
      %826 = vmatmul.f32.gmra.mxu0 %v578
      %v827 = vpop.f32.mrf.mxu0
      %v828 = vadd.f32 0.0, %v827
      %829 = vmatmul.f32.gmra.mxu0 %v644
      %v830 = vpop.f32.mrf.mxu0
      %v831 = vadd.f32 0.0, %v830
      %832 = vmatmul.f32.gmra.mxu0 %v581
      %v833 = vpop.f32.mrf.mxu0
      %v834 = vadd.f32 0.0, %v833
      %835 = vmatmul.f32.gmra.mxu0 %v645
      %v836 = vpop.f32.mrf.mxu0
      %v837 = vadd.f32 0.0, %v836
      %838 = vmatmul.f32.gmra.mxu0 %v584
      %v839 = vpop.f32.mrf.mxu0
      %v840 = vadd.f32 0.0, %v839
      %841 = vmatmul.f32.gmra.mxu0 %v646
      %v842 = vpop.f32.mrf.mxu0
      %v843 = vadd.f32 0.0, %v842
      %844 = vmatmul.f32.gmra.mxu0 %v587
      %v845 = vpop.f32.mrf.mxu0
      %v846 = vadd.f32 0.0, %v845
      %847 = vmatmul.f32.gmra.mxu0 %v647
      %v848 = vpop.f32.mrf.mxu0
      %v849 = vadd.f32 0.0, %v848
      %850 = vmatmul.f32.gmra.mxu0 %v590
      %v851 = vpop.f32.mrf.mxu0
      %v852 = vadd.f32 0.0, %v851
      %853 = vmatmul.f32.gmra.mxu0 %v648
      %v854 = vpop.f32.mrf.mxu0
      %v855 = vadd.f32 0.0, %v854
      %856 = vmatmul.f32.gmra.mxu0 %v593
      %v857 = vpop.f32.mrf.mxu0
      %v858 = vadd.f32 0.0, %v857
      %859 = vmatmul.f32.gmra.mxu0 %v649
      %v860 = vpop.f32.mrf.mxu0
      %v861 = vadd.f32 0.0, %v860
      %862 = vmatmul.f32.gmra.mxu0 %v596
      %v863 = vpop.f32.mrf.mxu0
      %v864 = vadd.f32 0.0, %v863
      %865 = vdwg.mxu0
      %866 = vmatpush.msra.mxu0 %v403
      %867 = vmatpush.msra.mxu0 %v402
      %868 = vmatpush.msra.mxu0 %v401
      %869 = vmatpush.msra.mxu0 %v400
      %870 = vmatpush.msra.mxu0 %v399
      %871 = vmatpush.msra.mxu0 %v398
      %872 = vmatpush.msra.mxu0 %v397
      %873 = vmatpush.msra.mxu0 %v396
      %874 = vmatpush.msra.mxu0 %v395
      %875 = vmatpush.msra.mxu0 %v394
      %876 = vmatpush.msra.mxu0 %v393
      %877 = vmatpush.msra.mxu0 %v392
      %878 = vmatpush.msra.mxu0 %v391
      %879 = vmatpush.msra.mxu0 %v390
      %880 = vmatpush.msra.mxu0 %v389
      %881 = vmatpush.msra.mxu0 %v388
      %882 = vmatmul.f32.gmra.mxu0 0.0
      %v883 = vpop.f32.mrf.mxu0
      %v884 = vadd.f32 %v771, %v883
      %885 = vmatmul.f32.gmra.mxu0 0.0
      %v886 = vpop.f32.mrf.mxu0
      %v887 = vadd.f32 %v774, %v886
      %888 = vmatmul.f32.gmra.mxu0 %v340
      %v889 = vpop.f32.mrf.mxu0
      %v890 = vadd.f32 %v777, %v889
      %891 = vmatmul.f32.gmra.mxu0 %v341
      %v892 = vpop.f32.mrf.mxu0
      %v893 = vadd.f32 %v780, %v892
      %894 = vmatmul.f32.gmra.mxu0 %v342
      %v895 = vpop.f32.mrf.mxu0
      %v896 = vadd.f32 %v783, %v895
      %897 = vmatmul.f32.gmra.mxu0 %v343
      %v898 = vpop.f32.mrf.mxu0
      %v899 = vadd.f32 %v786, %v898
      %900 = vmatmul.f32.gmra.mxu0 %v344
      %v901 = vpop.f32.mrf.mxu0
      %v902 = vadd.f32 %v789, %v901
      %903 = vmatmul.f32.gmra.mxu0 %v345
      %v904 = vpop.f32.mrf.mxu0
      %v905 = vadd.f32 %v792, %v904
      %906 = vmatmul.f32.gmra.mxu0 %v346
      %v907 = vpop.f32.mrf.mxu0
      %v908 = vadd.f32 %v795, %v907
      %909 = vmatmul.f32.gmra.mxu0 %v347
      %v910 = vpop.f32.mrf.mxu0
      %v911 = vadd.f32 %v798, %v910
      %912 = vmatmul.f32.gmra.mxu0 %v348
      %v913 = vpop.f32.mrf.mxu0
      %v914 = vadd.f32 %v801, %v913
      %915 = vmatmul.f32.gmra.mxu0 %v349
      %v916 = vpop.f32.mrf.mxu0
      %v917 = vadd.f32 %v804, %v916
      %918 = vmatmul.f32.gmra.mxu0 %v350
      %v919 = vpop.f32.mrf.mxu0
      %v920 = vadd.f32 %v807, %v919
      %921 = vmatmul.f32.gmra.mxu0 %v351
      %v922 = vpop.f32.mrf.mxu0
      %v923 = vadd.f32 %v810, %v922
      %924 = vmatmul.f32.gmra.mxu0 %v352
      %v925 = vpop.f32.mrf.mxu0
      %v926 = vadd.f32 %v813, %v925
      %927 = vmatmul.f32.gmra.mxu0 %v353
      %v928 = vpop.f32.mrf.mxu0
      %v929 = vadd.f32 %v816, %v928
      %930 = vmatmul.f32.gmra.mxu0 %v354
      %v931 = vpop.f32.mrf.mxu0
      %v932 = vadd.f32 %v819, %v931
      %933 = vmatmul.f32.gmra.mxu0 %v355
      %v934 = vpop.f32.mrf.mxu0
      %v935 = vadd.f32 %v822, %v934
      %936 = vmatmul.f32.gmra.mxu0 %v356
      %v937 = vpop.f32.mrf.mxu0
      %v938 = vadd.f32 %v825, %v937
      %939 = vmatmul.f32.gmra.mxu0 %v357
      %v940 = vpop.f32.mrf.mxu0
      %v941 = vadd.f32 %v828, %v940
      %942 = vmatmul.f32.gmra.mxu0 %v358
      %v943 = vpop.f32.mrf.mxu0
      %v944 = vadd.f32 %v831, %v943
      %945 = vmatmul.f32.gmra.mxu0 %v359
      %v946 = vpop.f32.mrf.mxu0
      %v947 = vadd.f32 %v834, %v946
      %948 = vmatmul.f32.gmra.mxu0 %v360
      %v949 = vpop.f32.mrf.mxu0
      %v950 = vadd.f32 %v837, %v949
      %951 = vmatmul.f32.gmra.mxu0 %v361
      %v952 = vpop.f32.mrf.mxu0
      %v953 = vadd.f32 %v840, %v952
      %954 = vmatmul.f32.gmra.mxu0 %v362
      %v955 = vpop.f32.mrf.mxu0
      %v956 = vadd.f32 %v843, %v955
      %957 = vmatmul.f32.gmra.mxu0 %v363
      %v958 = vpop.f32.mrf.mxu0
      %v959 = vadd.f32 %v846, %v958
      %960 = vmatmul.f32.gmra.mxu0 %v364
      %v961 = vpop.f32.mrf.mxu0
      %v962 = vadd.f32 %v849, %v961
      %963 = vmatmul.f32.gmra.mxu0 %v365
      %v964 = vpop.f32.mrf.mxu0
      %v965 = vadd.f32 %v852, %v964
      %966 = vmatmul.f32.gmra.mxu0 %v366
      %v967 = vpop.f32.mrf.mxu0
      %v968 = vadd.f32 %v855, %v967
      %969 = vmatmul.f32.gmra.mxu0 %v367
      %v970 = vpop.f32.mrf.mxu0
      %v971 = vadd.f32 %v858, %v970
      %972 = vmatmul.f32.gmra.mxu0 %v368
      %v973 = vpop.f32.mrf.mxu0
      %v974 = vadd.f32 %v861, %v973
      %975 = vmatmul.f32.gmra.mxu0 %v369
      %v976 = vpop.f32.mrf.mxu0
      %v977 = vadd.f32 %v864, %v976
      %978 = vdwg.mxu0
      %979 = vmatpush.msra.mxu0 %v419
      %980 = vmatpush.msra.mxu0 %v418
      %981 = vmatpush.msra.mxu0 %v417
      %982 = vmatpush.msra.mxu0 %v416
      %983 = vmatpush.msra.mxu0 %v415
      %984 = vmatpush.msra.mxu0 %v414
      %985 = vmatpush.msra.mxu0 %v413
      %986 = vmatpush.msra.mxu0 %v412
      %987 = vmatpush.msra.mxu0 %v411
      %988 = vmatpush.msra.mxu0 %v410
      %989 = vmatpush.msra.mxu0 %v409
      %990 = vmatpush.msra.mxu0 %v408
      %991 = vmatpush.msra.mxu0 %v407
      %992 = vmatpush.msra.mxu0 %v406
      %993 = vmatpush.msra.mxu0 %v405
      %994 = vmatpush.msra.mxu0 %v404
      %995 = vmatmul.f32.gmra.mxu0 %v653
      %v996 = vpop.f32.mrf.mxu0
      %v997 = vadd.f32 %v884, %v996
      %998 = vmatmul.f32.gmra.mxu0 %v736
      %v999 = vpop.f32.mrf.mxu0
      %v1000 = vadd.f32 %v887, %v999
      %1001 = vmatmul.f32.gmra.mxu0 %v656
      %v1002 = vpop.f32.mrf.mxu0
      %v1003 = vadd.f32 %v890, %v1002
      %1004 = vmatmul.f32.gmra.mxu0 %v737
      %v1005 = vpop.f32.mrf.mxu0
      %v1006 = vadd.f32 %v893, %v1005
      %1007 = vmatmul.f32.gmra.mxu0 %v659
      %v1008 = vpop.f32.mrf.mxu0
      %v1009 = vadd.f32 %v896, %v1008
      %1010 = vmatmul.f32.gmra.mxu0 %v738
      %v1011 = vpop.f32.mrf.mxu0
      %v1012 = vadd.f32 %v899, %v1011
      %1013 = vmatmul.f32.gmra.mxu0 %v662
      %v1014 = vpop.f32.mrf.mxu0
      %v1015 = vadd.f32 %v902, %v1014
      %1016 = vmatmul.f32.gmra.mxu0 %v739
      %v1017 = vpop.f32.mrf.mxu0
      %v1018 = vadd.f32 %v905, %v1017
      %1019 = vmatmul.f32.gmra.mxu0 %v665
      %v1020 = vpop.f32.mrf.mxu0
      %v1021 = vadd.f32 %v908, %v1020
      %1022 = vmatmul.f32.gmra.mxu0 %v740
      %v1023 = vpop.f32.mrf.mxu0
      %v1024 = vadd.f32 %v911, %v1023
      %1025 = vmatmul.f32.gmra.mxu0 %v668
      %v1026 = vpop.f32.mrf.mxu0
      %v1027 = vadd.f32 %v914, %v1026
      %1028 = vmatmul.f32.gmra.mxu0 %v741
      %v1029 = vpop.f32.mrf.mxu0
      %v1030 = vadd.f32 %v917, %v1029
      %1031 = vmatmul.f32.gmra.mxu0 %v671
      %v1032 = vpop.f32.mrf.mxu0
      %v1033 = vadd.f32 %v920, %v1032
      %1034 = vmatmul.f32.gmra.mxu0 %v742
      %v1035 = vpop.f32.mrf.mxu0
      %v1036 = vadd.f32 %v923, %v1035
      %1037 = vmatmul.f32.gmra.mxu0 %v674
      %v1038 = vpop.f32.mrf.mxu0
      %v1039 = vadd.f32 %v926, %v1038
      %1040 = vmatmul.f32.gmra.mxu0 %v743
      %v1041 = vpop.f32.mrf.mxu0
      %v1042 = vadd.f32 %v929, %v1041
      %1043 = vmatmul.f32.gmra.mxu0 %v677
      %v1044 = vpop.f32.mrf.mxu0
      %v1045 = vadd.f32 %v932, %v1044
      %1046 = vmatmul.f32.gmra.mxu0 %v744
      %v1047 = vpop.f32.mrf.mxu0
      %v1048 = vadd.f32 %v935, %v1047
      %1049 = vmatmul.f32.gmra.mxu0 %v680
      %v1050 = vpop.f32.mrf.mxu0
      %v1051 = vadd.f32 %v938, %v1050
      %1052 = vmatmul.f32.gmra.mxu0 %v745
      %v1053 = vpop.f32.mrf.mxu0
      %v1054 = vadd.f32 %v941, %v1053
      %1055 = vmatmul.f32.gmra.mxu0 %v683
      %v1056 = vpop.f32.mrf.mxu0
      %v1057 = vadd.f32 %v944, %v1056
      %1058 = vmatmul.f32.gmra.mxu0 %v746
      %v1059 = vpop.f32.mrf.mxu0
      %v1060 = vadd.f32 %v947, %v1059
      %1061 = vmatmul.f32.gmra.mxu0 %v686
      %v1062 = vpop.f32.mrf.mxu0
      %v1063 = vadd.f32 %v950, %v1062
      %1064 = vmatmul.f32.gmra.mxu0 %v747
      %v1065 = vpop.f32.mrf.mxu0
      %v1066 = vadd.f32 %v953, %v1065
      %1067 = vmatmul.f32.gmra.mxu0 %v689
      %v1068 = vpop.f32.mrf.mxu0
      %v1069 = vadd.f32 %v956, %v1068
      %1070 = vmatmul.f32.gmra.mxu0 %v748
      %v1071 = vpop.f32.mrf.mxu0
      %v1072 = vadd.f32 %v959, %v1071
      %1073 = vmatmul.f32.gmra.mxu0 %v692
      %v1074 = vpop.f32.mrf.mxu0
      %v1075 = vadd.f32 %v962, %v1074
      %1076 = vmatmul.f32.gmra.mxu0 %v749
      %v1077 = vpop.f32.mrf.mxu0
      %v1078 = vadd.f32 %v965, %v1077
      %1079 = vmatmul.f32.gmra.mxu0 %v695
      %v1080 = vpop.f32.mrf.mxu0
      %v1081 = vadd.f32 %v968, %v1080
      %1082 = vmatmul.f32.gmra.mxu0 %v750
      %v1083 = vpop.f32.mrf.mxu0
      %v1084 = vadd.f32 %v971, %v1083
      %1085 = vmatmul.f32.gmra.mxu0 %v698
      %v1086 = vpop.f32.mrf.mxu0
      %v1087 = vadd.f32 %v974, %v1086
      %1088 = vmatmul.f32.gmra.mxu0 %v751
      %v1089 = vpop.f32.mrf.mxu0
      %v1090 = vadd.f32 %v977, %v1089
      %1091 = vdwg.mxu0
      %1092 = vmatpush.msra.mxu0 %v435
      %1093 = vmatpush.msra.mxu0 %v434
      %1094 = vmatpush.msra.mxu0 %v433
      %1095 = vmatpush.msra.mxu0 %v432
      %1096 = vmatpush.msra.mxu0 %v431
      %1097 = vmatpush.msra.mxu0 %v430
      %1098 = vmatpush.msra.mxu0 %v429
      %1099 = vmatpush.msra.mxu0 %v428
      %1100 = vmatpush.msra.mxu0 %v427
      %1101 = vmatpush.msra.mxu0 %v426
      %1102 = vmatpush.msra.mxu0 %v425
      %1103 = vmatpush.msra.mxu0 %v424
      %1104 = vmatpush.msra.mxu0 %v423
      %1105 = vmatpush.msra.mxu0 %v422
      %1106 = vmatpush.msra.mxu0 %v421
      %1107 = vmatpush.msra.mxu0 %v420
      %1108 = vmatmul.f32.gmra.mxu0 %v635
      %v1109 = vpop.f32.mrf.mxu0
      %v1110 = vadd.f32 %v997, %v1109
      %1111 = vmatmul.f32.gmra.mxu0 %v554
      %v1112 = vpop.f32.mrf.mxu0
      %v1113 = vadd.f32 %v1000, %v1112
      %1114 = vmatmul.f32.gmra.mxu0 %v636
      %v1115 = vpop.f32.mrf.mxu0
      %v1116 = vadd.f32 %v1003, %v1115
      %1117 = vmatmul.f32.gmra.mxu0 %v557
      %v1118 = vpop.f32.mrf.mxu0
      %v1119 = vadd.f32 %v1006, %v1118
      %1120 = vmatmul.f32.gmra.mxu0 %v637
      %v1121 = vpop.f32.mrf.mxu0
      %v1122 = vadd.f32 %v1009, %v1121
      %1123 = vmatmul.f32.gmra.mxu0 %v560
      %v1124 = vpop.f32.mrf.mxu0
      %v1125 = vadd.f32 %v1012, %v1124
      %1126 = vmatmul.f32.gmra.mxu0 %v638
      %v1127 = vpop.f32.mrf.mxu0
      %v1128 = vadd.f32 %v1015, %v1127
      %1129 = vmatmul.f32.gmra.mxu0 %v563
      %v1130 = vpop.f32.mrf.mxu0
      %v1131 = vadd.f32 %v1018, %v1130
      %1132 = vmatmul.f32.gmra.mxu0 %v639
      %v1133 = vpop.f32.mrf.mxu0
      %v1134 = vadd.f32 %v1021, %v1133
      %1135 = vmatmul.f32.gmra.mxu0 %v566
      %v1136 = vpop.f32.mrf.mxu0
      %v1137 = vadd.f32 %v1024, %v1136
      %1138 = vmatmul.f32.gmra.mxu0 %v640
      %v1139 = vpop.f32.mrf.mxu0
      %v1140 = vadd.f32 %v1027, %v1139
      %1141 = vmatmul.f32.gmra.mxu0 %v569
      %v1142 = vpop.f32.mrf.mxu0
      %v1143 = vadd.f32 %v1030, %v1142
      %1144 = vmatmul.f32.gmra.mxu0 %v641
      %v1145 = vpop.f32.mrf.mxu0
      %v1146 = vadd.f32 %v1033, %v1145
      %1147 = vmatmul.f32.gmra.mxu0 %v572
      %v1148 = vpop.f32.mrf.mxu0
      %v1149 = vadd.f32 %v1036, %v1148
      %1150 = vmatmul.f32.gmra.mxu0 %v642
      %v1151 = vpop.f32.mrf.mxu0
      %v1152 = vadd.f32 %v1039, %v1151
      %1153 = vmatmul.f32.gmra.mxu0 %v575
      %v1154 = vpop.f32.mrf.mxu0
      %v1155 = vadd.f32 %v1042, %v1154
      %1156 = vmatmul.f32.gmra.mxu0 %v643
      %v1157 = vpop.f32.mrf.mxu0
      %v1158 = vadd.f32 %v1045, %v1157
      %1159 = vmatmul.f32.gmra.mxu0 %v578
      %v1160 = vpop.f32.mrf.mxu0
      %v1161 = vadd.f32 %v1048, %v1160
      %1162 = vmatmul.f32.gmra.mxu0 %v644
      %v1163 = vpop.f32.mrf.mxu0
      %v1164 = vadd.f32 %v1051, %v1163
      %1165 = vmatmul.f32.gmra.mxu0 %v581
      %v1166 = vpop.f32.mrf.mxu0
      %v1167 = vadd.f32 %v1054, %v1166
      %1168 = vmatmul.f32.gmra.mxu0 %v645
      %v1169 = vpop.f32.mrf.mxu0
      %v1170 = vadd.f32 %v1057, %v1169
      %1171 = vmatmul.f32.gmra.mxu0 %v584
      %v1172 = vpop.f32.mrf.mxu0
      %v1173 = vadd.f32 %v1060, %v1172
      %1174 = vmatmul.f32.gmra.mxu0 %v646
      %v1175 = vpop.f32.mrf.mxu0
      %v1176 = vadd.f32 %v1063, %v1175
      %1177 = vmatmul.f32.gmra.mxu0 %v587
      %v1178 = vpop.f32.mrf.mxu0
      %v1179 = vadd.f32 %v1066, %v1178
      %1180 = vmatmul.f32.gmra.mxu0 %v647
      %v1181 = vpop.f32.mrf.mxu0
      %v1182 = vadd.f32 %v1069, %v1181
      %1183 = vmatmul.f32.gmra.mxu0 %v590
      %v1184 = vpop.f32.mrf.mxu0
      %v1185 = vadd.f32 %v1072, %v1184
      %1186 = vmatmul.f32.gmra.mxu0 %v648
      %v1187 = vpop.f32.mrf.mxu0
      %v1188 = vadd.f32 %v1075, %v1187
      %1189 = vmatmul.f32.gmra.mxu0 %v593
      %v1190 = vpop.f32.mrf.mxu0
      %v1191 = vadd.f32 %v1078, %v1190
      %1192 = vmatmul.f32.gmra.mxu0 %v649
      %v1193 = vpop.f32.mrf.mxu0
      %v1194 = vadd.f32 %v1081, %v1193
      %1195 = vmatmul.f32.gmra.mxu0 %v596
      %v1196 = vpop.f32.mrf.mxu0
      %v1197 = vadd.f32 %v1084, %v1196
      %1198 = vmatmul.f32.gmra.mxu0 %v650
      %v1199 = vpop.f32.mrf.mxu0
      %v1200 = vadd.f32 %v1087, %v1199
      %1201 = vmatmul.f32.gmra.mxu0 %v599
      %v1202 = vpop.f32.mrf.mxu0
      %v1203 = vadd.f32 %v1090, %v1202
      %1204 = vdwg.mxu0
      %1205 = vmatpush.msra.mxu0 %v451
      %1206 = vmatpush.msra.mxu0 %v450
      %1207 = vmatpush.msra.mxu0 %v449
      %1208 = vmatpush.msra.mxu0 %v448
      %1209 = vmatpush.msra.mxu0 %v447
      %1210 = vmatpush.msra.mxu0 %v446
      %1211 = vmatpush.msra.mxu0 %v445
      %1212 = vmatpush.msra.mxu0 %v444
      %1213 = vmatpush.msra.mxu0 %v443
      %1214 = vmatpush.msra.mxu0 %v442
      %1215 = vmatpush.msra.mxu0 %v441
      %1216 = vmatpush.msra.mxu0 %v440
      %1217 = vmatpush.msra.mxu0 %v439
      %1218 = vmatpush.msra.mxu0 %v438
      %1219 = vmatpush.msra.mxu0 %v437
      %1220 = vmatpush.msra.mxu0 %v436
      %1221 = vmatmul.f32.gmra.mxu0 %v340
      %v1222 = vpop.f32.mrf.mxu0
      %v1223 = vadd.f32 %v1110, %v1222
      %1224 = vmatmul.f32.gmra.mxu0 %v341
      %v1225 = vpop.f32.mrf.mxu0
      %v1226 = vadd.f32 %v1113, %v1225
      %1227 = vmatmul.f32.gmra.mxu0 %v342
      %v1228 = vpop.f32.mrf.mxu0
      %v1229 = vadd.f32 %v1116, %v1228
      %1230 = vmatmul.f32.gmra.mxu0 %v343
      %v1231 = vpop.f32.mrf.mxu0
      %v1232 = vadd.f32 %v1119, %v1231
      %1233 = vmatmul.f32.gmra.mxu0 %v344
      %v1234 = vpop.f32.mrf.mxu0
      %v1235 = vadd.f32 %v1122, %v1234
      %1236 = vmatmul.f32.gmra.mxu0 %v345
      %v1237 = vpop.f32.mrf.mxu0
      %v1238 = vadd.f32 %v1125, %v1237
      %1239 = vmatmul.f32.gmra.mxu0 %v346
      %v1240 = vpop.f32.mrf.mxu0
      %v1241 = vadd.f32 %v1128, %v1240
      %1242 = vmatmul.f32.gmra.mxu0 %v347
      %v1243 = vpop.f32.mrf.mxu0
      %v1244 = vadd.f32 %v1131, %v1243
      %1245 = vmatmul.f32.gmra.mxu0 %v348
      %v1246 = vpop.f32.mrf.mxu0
      %v1247 = vadd.f32 %v1134, %v1246
      %1248 = vmatmul.f32.gmra.mxu0 %v349
      %v1249 = vpop.f32.mrf.mxu0
      %v1250 = vadd.f32 %v1137, %v1249
      %1251 = vmatmul.f32.gmra.mxu0 %v350
      %v1252 = vpop.f32.mrf.mxu0
      %v1253 = vadd.f32 %v1140, %v1252
      %1254 = vmatmul.f32.gmra.mxu0 %v351
      %v1255 = vpop.f32.mrf.mxu0
      %v1256 = vadd.f32 %v1143, %v1255
      %1257 = vmatmul.f32.gmra.mxu0 %v352
      %v1258 = vpop.f32.mrf.mxu0
      %v1259 = vadd.f32 %v1146, %v1258
      %1260 = vmatmul.f32.gmra.mxu0 %v353
      %v1261 = vpop.f32.mrf.mxu0
      %v1262 = vadd.f32 %v1149, %v1261
      %1263 = vmatmul.f32.gmra.mxu0 %v354
      %v1264 = vpop.f32.mrf.mxu0
      %v1265 = vadd.f32 %v1152, %v1264
      %1266 = vmatmul.f32.gmra.mxu0 %v355
      %v1267 = vpop.f32.mrf.mxu0
      %v1268 = vadd.f32 %v1155, %v1267
      %1269 = vmatmul.f32.gmra.mxu0 %v356
      %v1270 = vpop.f32.mrf.mxu0
      %v1271 = vadd.f32 %v1158, %v1270
      %1272 = vmatmul.f32.gmra.mxu0 %v357
      %v1273 = vpop.f32.mrf.mxu0
      %v1274 = vadd.f32 %v1161, %v1273
      %1275 = vmatmul.f32.gmra.mxu0 %v358
      %v1276 = vpop.f32.mrf.mxu0
      %v1277 = vadd.f32 %v1164, %v1276
      %1278 = vmatmul.f32.gmra.mxu0 %v359
      %v1279 = vpop.f32.mrf.mxu0
      %v1280 = vadd.f32 %v1167, %v1279
      %1281 = vmatmul.f32.gmra.mxu0 %v360
      %v1282 = vpop.f32.mrf.mxu0
      %v1283 = vadd.f32 %v1170, %v1282
      %1284 = vmatmul.f32.gmra.mxu0 %v361
      %v1285 = vpop.f32.mrf.mxu0
      %v1286 = vadd.f32 %v1173, %v1285
      %1287 = vmatmul.f32.gmra.mxu0 %v362
      %v1288 = vpop.f32.mrf.mxu0
      %v1289 = vadd.f32 %v1176, %v1288
      %1290 = vmatmul.f32.gmra.mxu0 %v363
      %v1291 = vpop.f32.mrf.mxu0
      %v1292 = vadd.f32 %v1179, %v1291
      %1293 = vmatmul.f32.gmra.mxu0 %v364
      %v1294 = vpop.f32.mrf.mxu0
      %v1295 = vadd.f32 %v1182, %v1294
      %1296 = vmatmul.f32.gmra.mxu0 %v365
      %v1297 = vpop.f32.mrf.mxu0
      %v1298 = vadd.f32 %v1185, %v1297
      %1299 = vmatmul.f32.gmra.mxu0 %v366
      %v1300 = vpop.f32.mrf.mxu0
      %v1301 = vadd.f32 %v1188, %v1300
      %1302 = vmatmul.f32.gmra.mxu0 %v367
      %v1303 = vpop.f32.mrf.mxu0
      %v1304 = vadd.f32 %v1191, %v1303
      %1305 = vmatmul.f32.gmra.mxu0 %v368
      %v1306 = vpop.f32.mrf.mxu0
      %v1307 = vadd.f32 %v1194, %v1306
      %1308 = vmatmul.f32.gmra.mxu0 %v369
      %v1309 = vpop.f32.mrf.mxu0
      %v1310 = vadd.f32 %v1197, %v1309
      %1311 = vmatmul.f32.gmra.mxu0 %v370
      %v1312 = vpop.f32.mrf.mxu0
      %v1313 = vadd.f32 %v1200, %v1312
      %1314 = vmatmul.f32.gmra.mxu0 %v371
      %v1315 = vpop.f32.mrf.mxu0
      %v1316 = vadd.f32 %v1203, %v1315
      %1317 = vdwg.mxu0
      %1318 = vmatpush.msra.mxu0 %v467
      %1319 = vmatpush.msra.mxu0 %v466
      %1320 = vmatpush.msra.mxu0 %v465
      %1321 = vmatpush.msra.mxu0 %v464
      %1322 = vmatpush.msra.mxu0 %v463
      %1323 = vmatpush.msra.mxu0 %v462
      %1324 = vmatpush.msra.mxu0 %v461
      %1325 = vmatpush.msra.mxu0 %v460
      %1326 = vmatpush.msra.mxu0 %v459
      %1327 = vmatpush.msra.mxu0 %v458
      %1328 = vmatpush.msra.mxu0 %v457
      %1329 = vmatpush.msra.mxu0 %v456
      %1330 = vmatpush.msra.mxu0 %v455
      %1331 = vmatpush.msra.mxu0 %v454
      %1332 = vmatpush.msra.mxu0 %v453
      %1333 = vmatpush.msra.mxu0 %v452
      %1334 = vmatmul.f32.gmra.mxu0 %v656
      %v1335 = vpop.f32.mrf.mxu0
      %v1336 = vadd.f32 %v1223, %v1335
      %1337 = vmatmul.f32.gmra.mxu0 %v737
      %v1338 = vpop.f32.mrf.mxu0
      %v1339 = vadd.f32 %v1226, %v1338
      %1340 = vmatmul.f32.gmra.mxu0 %v659
      %v1341 = vpop.f32.mrf.mxu0
      %v1342 = vadd.f32 %v1229, %v1341
      %1343 = vmatmul.f32.gmra.mxu0 %v738
      %v1344 = vpop.f32.mrf.mxu0
      %v1345 = vadd.f32 %v1232, %v1344
      %1346 = vmatmul.f32.gmra.mxu0 %v662
      %v1347 = vpop.f32.mrf.mxu0
      %v1348 = vadd.f32 %v1235, %v1347
      %1349 = vmatmul.f32.gmra.mxu0 %v739
      %v1350 = vpop.f32.mrf.mxu0
      %v1351 = vadd.f32 %v1238, %v1350
      %1352 = vmatmul.f32.gmra.mxu0 %v665
      %v1353 = vpop.f32.mrf.mxu0
      %v1354 = vadd.f32 %v1241, %v1353
      %1355 = vmatmul.f32.gmra.mxu0 %v740
      %v1356 = vpop.f32.mrf.mxu0
      %v1357 = vadd.f32 %v1244, %v1356
      %1358 = vmatmul.f32.gmra.mxu0 %v668
      %v1359 = vpop.f32.mrf.mxu0
      %v1360 = vadd.f32 %v1247, %v1359
      %1361 = vmatmul.f32.gmra.mxu0 %v741
      %v1362 = vpop.f32.mrf.mxu0
      %v1363 = vadd.f32 %v1250, %v1362
      %1364 = vmatmul.f32.gmra.mxu0 %v671
      %v1365 = vpop.f32.mrf.mxu0
      %v1366 = vadd.f32 %v1253, %v1365
      %1367 = vmatmul.f32.gmra.mxu0 %v742
      %v1368 = vpop.f32.mrf.mxu0
      %v1369 = vadd.f32 %v1256, %v1368
      %1370 = vmatmul.f32.gmra.mxu0 %v674
      %v1371 = vpop.f32.mrf.mxu0
      %v1372 = vadd.f32 %v1259, %v1371
      %1373 = vmatmul.f32.gmra.mxu0 %v743
      %v1374 = vpop.f32.mrf.mxu0
      %v1375 = vadd.f32 %v1262, %v1374
      %1376 = vmatmul.f32.gmra.mxu0 %v677
      %v1377 = vpop.f32.mrf.mxu0
      %v1378 = vadd.f32 %v1265, %v1377
      %1379 = vmatmul.f32.gmra.mxu0 %v744
      %v1380 = vpop.f32.mrf.mxu0
      %v1381 = vadd.f32 %v1268, %v1380
      %1382 = vmatmul.f32.gmra.mxu0 %v680
      %v1383 = vpop.f32.mrf.mxu0
      %v1384 = vadd.f32 %v1271, %v1383
      %1385 = vmatmul.f32.gmra.mxu0 %v745
      %v1386 = vpop.f32.mrf.mxu0
      %v1387 = vadd.f32 %v1274, %v1386
      %1388 = vmatmul.f32.gmra.mxu0 %v683
      %v1389 = vpop.f32.mrf.mxu0
      %v1390 = vadd.f32 %v1277, %v1389
      %1391 = vmatmul.f32.gmra.mxu0 %v746
      %v1392 = vpop.f32.mrf.mxu0
      %v1393 = vadd.f32 %v1280, %v1392
      %1394 = vmatmul.f32.gmra.mxu0 %v686
      %v1395 = vpop.f32.mrf.mxu0
      %v1396 = vadd.f32 %v1283, %v1395
      %1397 = vmatmul.f32.gmra.mxu0 %v747
      %v1398 = vpop.f32.mrf.mxu0
      %v1399 = vadd.f32 %v1286, %v1398
      %1400 = vmatmul.f32.gmra.mxu0 %v689
      %v1401 = vpop.f32.mrf.mxu0
      %v1402 = vadd.f32 %v1289, %v1401
      %1403 = vmatmul.f32.gmra.mxu0 %v748
      %v1404 = vpop.f32.mrf.mxu0
      %v1405 = vadd.f32 %v1292, %v1404
      %1406 = vmatmul.f32.gmra.mxu0 %v692
      %v1407 = vpop.f32.mrf.mxu0
      %v1408 = vadd.f32 %v1295, %v1407
      %1409 = vmatmul.f32.gmra.mxu0 %v749
      %v1410 = vpop.f32.mrf.mxu0
      %v1411 = vadd.f32 %v1298, %v1410
      %1412 = vmatmul.f32.gmra.mxu0 %v695
      %v1413 = vpop.f32.mrf.mxu0
      %v1414 = vadd.f32 %v1301, %v1413
      %1415 = vmatmul.f32.gmra.mxu0 %v750
      %v1416 = vpop.f32.mrf.mxu0
      %v1417 = vadd.f32 %v1304, %v1416
      %1418 = vmatmul.f32.gmra.mxu0 %v698
      %v1419 = vpop.f32.mrf.mxu0
      %v1420 = vadd.f32 %v1307, %v1419
      %1421 = vmatmul.f32.gmra.mxu0 %v751
      %v1422 = vpop.f32.mrf.mxu0
      %v1423 = vadd.f32 %v1310, %v1422
      %1424 = vmatmul.f32.gmra.mxu0 %v701
      %v1425 = vpop.f32.mrf.mxu0
      %v1426 = vadd.f32 %v1313, %v1425
      %1427 = vmatmul.f32.gmra.mxu0 %v752
      %v1428 = vpop.f32.mrf.mxu0
      %v1429 = vadd.f32 %v1316, %v1428
      %1430 = vdwg.mxu0
      %1431 = vmatpush.msra.mxu0 %v483
      %1432 = vmatpush.msra.mxu0 %v482
      %1433 = vmatpush.msra.mxu0 %v481
      %1434 = vmatpush.msra.mxu0 %v480
      %1435 = vmatpush.msra.mxu0 %v479
      %1436 = vmatpush.msra.mxu0 %v478
      %1437 = vmatpush.msra.mxu0 %v477
      %1438 = vmatpush.msra.mxu0 %v476
      %1439 = vmatpush.msra.mxu0 %v475
      %1440 = vmatpush.msra.mxu0 %v474
      %1441 = vmatpush.msra.mxu0 %v473
      %1442 = vmatpush.msra.mxu0 %v472
      %1443 = vmatpush.msra.mxu0 %v471
      %1444 = vmatpush.msra.mxu0 %v470
      %1445 = vmatpush.msra.mxu0 %v469
      %1446 = vmatpush.msra.mxu0 %v468
      %1447 = vmatmul.f32.gmra.mxu0 %v636
      %v1448 = vpop.f32.mrf.mxu0
      %v1449 = vadd.f32 %v1336, %v1448
      %1450 = vmatmul.f32.gmra.mxu0 %v557
      %v1451 = vpop.f32.mrf.mxu0
      %v1452 = vadd.f32 %v1339, %v1451
      %1453 = vmatmul.f32.gmra.mxu0 %v637
      %v1454 = vpop.f32.mrf.mxu0
      %v1455 = vadd.f32 %v1342, %v1454
      %1456 = vmatmul.f32.gmra.mxu0 %v560
      %v1457 = vpop.f32.mrf.mxu0
      %v1458 = vadd.f32 %v1345, %v1457
      %1459 = vmatmul.f32.gmra.mxu0 %v638
      %v1460 = vpop.f32.mrf.mxu0
      %v1461 = vadd.f32 %v1348, %v1460
      %1462 = vmatmul.f32.gmra.mxu0 %v563
      %v1463 = vpop.f32.mrf.mxu0
      %v1464 = vadd.f32 %v1351, %v1463
      %1465 = vmatmul.f32.gmra.mxu0 %v639
      %v1466 = vpop.f32.mrf.mxu0
      %v1467 = vadd.f32 %v1354, %v1466
      %1468 = vmatmul.f32.gmra.mxu0 %v566
      %v1469 = vpop.f32.mrf.mxu0
      %v1470 = vadd.f32 %v1357, %v1469
      %1471 = vmatmul.f32.gmra.mxu0 %v640
      %v1472 = vpop.f32.mrf.mxu0
      %v1473 = vadd.f32 %v1360, %v1472
      %1474 = vmatmul.f32.gmra.mxu0 %v569
      %v1475 = vpop.f32.mrf.mxu0
      %v1476 = vadd.f32 %v1363, %v1475
      %1477 = vmatmul.f32.gmra.mxu0 %v641
      %v1478 = vpop.f32.mrf.mxu0
      %v1479 = vadd.f32 %v1366, %v1478
      %1480 = vmatmul.f32.gmra.mxu0 %v572
      %v1481 = vpop.f32.mrf.mxu0
      %v1482 = vadd.f32 %v1369, %v1481
      %1483 = vmatmul.f32.gmra.mxu0 %v642
      %v1484 = vpop.f32.mrf.mxu0
      %v1485 = vadd.f32 %v1372, %v1484
      %1486 = vmatmul.f32.gmra.mxu0 %v575
      %v1487 = vpop.f32.mrf.mxu0
      %v1488 = vadd.f32 %v1375, %v1487
      %1489 = vmatmul.f32.gmra.mxu0 %v643
      %v1490 = vpop.f32.mrf.mxu0
      %v1491 = vadd.f32 %v1378, %v1490
      %1492 = vmatmul.f32.gmra.mxu0 %v578
      %v1493 = vpop.f32.mrf.mxu0
      %v1494 = vadd.f32 %v1381, %v1493
      %1495 = vmatmul.f32.gmra.mxu0 %v644
      %v1496 = vpop.f32.mrf.mxu0
      %v1497 = vadd.f32 %v1384, %v1496
      %1498 = vmatmul.f32.gmra.mxu0 %v581
      %v1499 = vpop.f32.mrf.mxu0
      %v1500 = vadd.f32 %v1387, %v1499
      %1501 = vmatmul.f32.gmra.mxu0 %v645
      %v1502 = vpop.f32.mrf.mxu0
      %v1503 = vadd.f32 %v1390, %v1502
      %1504 = vmatmul.f32.gmra.mxu0 %v584
      %v1505 = vpop.f32.mrf.mxu0
      %v1506 = vadd.f32 %v1393, %v1505
      %1507 = vmatmul.f32.gmra.mxu0 %v646
      %v1508 = vpop.f32.mrf.mxu0
      %v1509 = vadd.f32 %v1396, %v1508
      %1510 = vmatmul.f32.gmra.mxu0 %v587
      %v1511 = vpop.f32.mrf.mxu0
      %v1512 = vadd.f32 %v1399, %v1511
      %1513 = vmatmul.f32.gmra.mxu0 %v647
      %v1514 = vpop.f32.mrf.mxu0
      %v1515 = vadd.f32 %v1402, %v1514
      %1516 = vmatmul.f32.gmra.mxu0 %v590
      %v1517 = vpop.f32.mrf.mxu0
      %v1518 = vadd.f32 %v1405, %v1517
      %1519 = vmatmul.f32.gmra.mxu0 %v648
      %v1520 = vpop.f32.mrf.mxu0
      %v1521 = vadd.f32 %v1408, %v1520
      %1522 = vmatmul.f32.gmra.mxu0 %v593
      %v1523 = vpop.f32.mrf.mxu0
      %v1524 = vadd.f32 %v1411, %v1523
      %1525 = vmatmul.f32.gmra.mxu0 %v649
      %v1526 = vpop.f32.mrf.mxu0
      %v1527 = vadd.f32 %v1414, %v1526
      %1528 = vmatmul.f32.gmra.mxu0 %v596
      %v1529 = vpop.f32.mrf.mxu0
      %v1530 = vadd.f32 %v1417, %v1529
      %1531 = vmatmul.f32.gmra.mxu0 %v650
      %v1532 = vpop.f32.mrf.mxu0
      %v1533 = vadd.f32 %v1420, %v1532
      %1534 = vmatmul.f32.gmra.mxu0 %v599
      %v1535 = vpop.f32.mrf.mxu0
      %v1536 = vadd.f32 %v1423, %v1535
      %1537 = vmatmul.f32.gmra.mxu0 %v634
      %v1538 = vpop.f32.mrf.mxu0
      %v1539 = vadd.f32 %v1426, %v1538
      %1540 = vmatmul.f32.gmra.mxu0 %v551
      %v1541 = vpop.f32.mrf.mxu0
      %v1542 = vadd.f32 %v1429, %v1541
      %1543 = vdwg.mxu0
      %1544 = vmatpush.msra.mxu0 %v499
      %1545 = vmatpush.msra.mxu0 %v498
      %1546 = vmatpush.msra.mxu0 %v497
      %1547 = vmatpush.msra.mxu0 %v496
      %1548 = vmatpush.msra.mxu0 %v495
      %1549 = vmatpush.msra.mxu0 %v494
      %1550 = vmatpush.msra.mxu0 %v493
      %1551 = vmatpush.msra.mxu0 %v492
      %1552 = vmatpush.msra.mxu0 %v491
      %1553 = vmatpush.msra.mxu0 %v490
      %1554 = vmatpush.msra.mxu0 %v489
      %1555 = vmatpush.msra.mxu0 %v488
      %1556 = vmatpush.msra.mxu0 %v487
      %1557 = vmatpush.msra.mxu0 %v486
      %1558 = vmatpush.msra.mxu0 %v485
      %1559 = vmatpush.msra.mxu0 %v484
      %1560 = vmatmul.f32.gmra.mxu0 %v342
      %v1561 = vpop.f32.mrf.mxu0
      %v1562 = vadd.f32 %v1449, %v1561
      %1563 = vmatmul.f32.gmra.mxu0 %v343
      %v1564 = vpop.f32.mrf.mxu0
      %v1565 = vadd.f32 %v1452, %v1564
      %1566 = vmatmul.f32.gmra.mxu0 %v344
      %v1567 = vpop.f32.mrf.mxu0
      %v1568 = vadd.f32 %v1455, %v1567
      %1569 = vmatmul.f32.gmra.mxu0 %v345
      %v1570 = vpop.f32.mrf.mxu0
      %v1571 = vadd.f32 %v1458, %v1570
      %1572 = vmatmul.f32.gmra.mxu0 %v346
      %v1573 = vpop.f32.mrf.mxu0
      %v1574 = vadd.f32 %v1461, %v1573
      %1575 = vmatmul.f32.gmra.mxu0 %v347
      %v1576 = vpop.f32.mrf.mxu0
      %v1577 = vadd.f32 %v1464, %v1576
      %1578 = vmatmul.f32.gmra.mxu0 %v348
      %v1579 = vpop.f32.mrf.mxu0
      %v1580 = vadd.f32 %v1467, %v1579
      %1581 = vmatmul.f32.gmra.mxu0 %v349
      %v1582 = vpop.f32.mrf.mxu0
      %v1583 = vadd.f32 %v1470, %v1582
      %1584 = vmatmul.f32.gmra.mxu0 %v350
      %v1585 = vpop.f32.mrf.mxu0
      %v1586 = vadd.f32 %v1473, %v1585
      %1587 = vmatmul.f32.gmra.mxu0 %v351
      %v1588 = vpop.f32.mrf.mxu0
      %v1589 = vadd.f32 %v1476, %v1588
      %1590 = vmatmul.f32.gmra.mxu0 %v352
      %v1591 = vpop.f32.mrf.mxu0
      %v1592 = vadd.f32 %v1479, %v1591
      %1593 = vmatmul.f32.gmra.mxu0 %v353
      %v1594 = vpop.f32.mrf.mxu0
      %v1595 = vadd.f32 %v1482, %v1594
      %1596 = vmatmul.f32.gmra.mxu0 %v354
      %v1597 = vpop.f32.mrf.mxu0
      %v1598 = vadd.f32 %v1485, %v1597
      %1599 = vmatmul.f32.gmra.mxu0 %v355
      %v1600 = vpop.f32.mrf.mxu0
      %v1601 = vadd.f32 %v1488, %v1600
      %1602 = vmatmul.f32.gmra.mxu0 %v356
      %v1603 = vpop.f32.mrf.mxu0
      %v1604 = vadd.f32 %v1491, %v1603
      %1605 = vmatmul.f32.gmra.mxu0 %v357
      %v1606 = vpop.f32.mrf.mxu0
      %v1607 = vadd.f32 %v1494, %v1606
      %1608 = vmatmul.f32.gmra.mxu0 %v358
      %v1609 = vpop.f32.mrf.mxu0
      %v1610 = vadd.f32 %v1497, %v1609
      %1611 = vmatmul.f32.gmra.mxu0 %v359
      %v1612 = vpop.f32.mrf.mxu0
      %v1613 = vadd.f32 %v1500, %v1612
      %1614 = vmatmul.f32.gmra.mxu0 %v360
      %v1615 = vpop.f32.mrf.mxu0
      %v1616 = vadd.f32 %v1503, %v1615
      %1617 = vmatmul.f32.gmra.mxu0 %v361
      %v1618 = vpop.f32.mrf.mxu0
      %v1619 = vadd.f32 %v1506, %v1618
      %1620 = vmatmul.f32.gmra.mxu0 %v362
      %v1621 = vpop.f32.mrf.mxu0
      %v1622 = vadd.f32 %v1509, %v1621
      %1623 = vmatmul.f32.gmra.mxu0 %v363
      %v1624 = vpop.f32.mrf.mxu0
      %v1625 = vadd.f32 %v1512, %v1624
      %1626 = vmatmul.f32.gmra.mxu0 %v364
      %v1627 = vpop.f32.mrf.mxu0
      %v1628 = vadd.f32 %v1515, %v1627
      %1629 = vmatmul.f32.gmra.mxu0 %v365
      %v1630 = vpop.f32.mrf.mxu0
      %v1631 = vadd.f32 %v1518, %v1630
      %1632 = vmatmul.f32.gmra.mxu0 %v366
      %v1633 = vpop.f32.mrf.mxu0
      %v1634 = vadd.f32 %v1521, %v1633
      %1635 = vmatmul.f32.gmra.mxu0 %v367
      %v1636 = vpop.f32.mrf.mxu0
      %v1637 = vadd.f32 %v1524, %v1636
      %1638 = vmatmul.f32.gmra.mxu0 %v368
      %v1639 = vpop.f32.mrf.mxu0
      %v1640 = vadd.f32 %v1527, %v1639
      %1641 = vmatmul.f32.gmra.mxu0 %v369
      %v1642 = vpop.f32.mrf.mxu0
      %v1643 = vadd.f32 %v1530, %v1642
      %1644 = vmatmul.f32.gmra.mxu0 %v370
      %v1645 = vpop.f32.mrf.mxu0
      %v1646 = vadd.f32 %v1533, %v1645
      %1647 = vmatmul.f32.gmra.mxu0 %v371
      %v1648 = vpop.f32.mrf.mxu0
      %v1649 = vadd.f32 %v1536, %v1648
      %1650 = vmatmul.f32.gmra.mxu0 0.0
      %v1651 = vpop.f32.mrf.mxu0
      %v1652 = vadd.f32 %v1539, %v1651
      %1653 = vmatmul.f32.gmra.mxu0 0.0
      %v1654 = vpop.f32.mrf.mxu0
      %v1655 = vadd.f32 %v1542, %v1654
      %1656 = vdwg.mxu0
      %1657 = vmatpush.msra.mxu0 %v515
      %1658 = vmatpush.msra.mxu0 %v514
      %1659 = vmatpush.msra.mxu0 %v513
      %1660 = vmatpush.msra.mxu0 %v512
      %1661 = vmatpush.msra.mxu0 %v511
      %1662 = vmatpush.msra.mxu0 %v510
      %1663 = vmatpush.msra.mxu0 %v509
      %1664 = vmatpush.msra.mxu0 %v508
      %1665 = vmatpush.msra.mxu0 %v507
      %1666 = vmatpush.msra.mxu0 %v506
      %1667 = vmatpush.msra.mxu0 %v505
      %1668 = vmatpush.msra.mxu0 %v504
      %1669 = vmatpush.msra.mxu0 %v503
      %1670 = vmatpush.msra.mxu0 %v502
      %1671 = vmatpush.msra.mxu0 %v501
      %1672 = vmatpush.msra.mxu0 %v500
      %1673 = vmatmul.f32.gmra.mxu0 %v659
      %v1674 = vpop.f32.mrf.mxu0
      %v1675 = vadd.f32 %v1562, %v1674
      %1676 = vmatmul.f32.gmra.mxu0 %v738
      %v1677 = vpop.f32.mrf.mxu0
      %v1678 = vadd.f32 %v1565, %v1677
      %1679 = vmatmul.f32.gmra.mxu0 %v662
      %v1680 = vpop.f32.mrf.mxu0
      %v1681 = vadd.f32 %v1568, %v1680
      %1682 = vmatmul.f32.gmra.mxu0 %v739
      %v1683 = vpop.f32.mrf.mxu0
      %v1684 = vadd.f32 %v1571, %v1683
      %1685 = vmatmul.f32.gmra.mxu0 %v665
      %v1686 = vpop.f32.mrf.mxu0
      %v1687 = vadd.f32 %v1574, %v1686
      %1688 = vmatmul.f32.gmra.mxu0 %v740
      %v1689 = vpop.f32.mrf.mxu0
      %v1690 = vadd.f32 %v1577, %v1689
      %1691 = vmatmul.f32.gmra.mxu0 %v668
      %v1692 = vpop.f32.mrf.mxu0
      %v1693 = vadd.f32 %v1580, %v1692
      %1694 = vmatmul.f32.gmra.mxu0 %v741
      %v1695 = vpop.f32.mrf.mxu0
      %v1696 = vadd.f32 %v1583, %v1695
      %1697 = vmatmul.f32.gmra.mxu0 %v671
      %v1698 = vpop.f32.mrf.mxu0
      %v1699 = vadd.f32 %v1586, %v1698
      %1700 = vmatmul.f32.gmra.mxu0 %v742
      %v1701 = vpop.f32.mrf.mxu0
      %v1702 = vadd.f32 %v1589, %v1701
      %1703 = vmatmul.f32.gmra.mxu0 %v674
      %v1704 = vpop.f32.mrf.mxu0
      %v1705 = vadd.f32 %v1592, %v1704
      %1706 = vmatmul.f32.gmra.mxu0 %v743
      %v1707 = vpop.f32.mrf.mxu0
      %v1708 = vadd.f32 %v1595, %v1707
      %1709 = vmatmul.f32.gmra.mxu0 %v677
      %v1710 = vpop.f32.mrf.mxu0
      %v1711 = vadd.f32 %v1598, %v1710
      %1712 = vmatmul.f32.gmra.mxu0 %v744
      %v1713 = vpop.f32.mrf.mxu0
      %v1714 = vadd.f32 %v1601, %v1713
      %1715 = vmatmul.f32.gmra.mxu0 %v680
      %v1716 = vpop.f32.mrf.mxu0
      %v1717 = vadd.f32 %v1604, %v1716
      %1718 = vmatmul.f32.gmra.mxu0 %v745
      %v1719 = vpop.f32.mrf.mxu0
      %v1720 = vadd.f32 %v1607, %v1719
      %1721 = vmatmul.f32.gmra.mxu0 %v683
      %v1722 = vpop.f32.mrf.mxu0
      %v1723 = vadd.f32 %v1610, %v1722
      %1724 = vmatmul.f32.gmra.mxu0 %v746
      %v1725 = vpop.f32.mrf.mxu0
      %v1726 = vadd.f32 %v1613, %v1725
      %1727 = vmatmul.f32.gmra.mxu0 %v686
      %v1728 = vpop.f32.mrf.mxu0
      %v1729 = vadd.f32 %v1616, %v1728
      %1730 = vmatmul.f32.gmra.mxu0 %v747
      %v1731 = vpop.f32.mrf.mxu0
      %v1732 = vadd.f32 %v1619, %v1731
      %1733 = vmatmul.f32.gmra.mxu0 %v689
      %v1734 = vpop.f32.mrf.mxu0
      %v1735 = vadd.f32 %v1622, %v1734
      %1736 = vmatmul.f32.gmra.mxu0 %v748
      %v1737 = vpop.f32.mrf.mxu0
      %v1738 = vadd.f32 %v1625, %v1737
      %1739 = vmatmul.f32.gmra.mxu0 %v692
      %v1740 = vpop.f32.mrf.mxu0
      %v1741 = vadd.f32 %v1628, %v1740
      %1742 = vmatmul.f32.gmra.mxu0 %v749
      %v1743 = vpop.f32.mrf.mxu0
      %v1744 = vadd.f32 %v1631, %v1743
      %1745 = vmatmul.f32.gmra.mxu0 %v695
      %v1746 = vpop.f32.mrf.mxu0
      %v1747 = vadd.f32 %v1634, %v1746
      %1748 = vmatmul.f32.gmra.mxu0 %v750
      %v1749 = vpop.f32.mrf.mxu0
      %v1750 = vadd.f32 %v1637, %v1749
      %1751 = vmatmul.f32.gmra.mxu0 %v698
      %v1752 = vpop.f32.mrf.mxu0
      %v1753 = vadd.f32 %v1640, %v1752
      %1754 = vmatmul.f32.gmra.mxu0 %v751
      %v1755 = vpop.f32.mrf.mxu0
      %v1756 = vadd.f32 %v1643, %v1755
      %1757 = vmatmul.f32.gmra.mxu0 %v701
      %v1758 = vpop.f32.mrf.mxu0
      %v1759 = vadd.f32 %v1646, %v1758
      %1760 = vmatmul.f32.gmra.mxu0 %v752
      %v1761 = vpop.f32.mrf.mxu0
      %v1762 = vadd.f32 %v1649, %v1761
      %1763 = vmatmul.f32.gmra.mxu0 %v653
      %v1764 = vpop.f32.mrf.mxu0
      %v1765 = vadd.f32 %v1652, %v1764
      %1766 = vmatmul.f32.gmra.mxu0 %v736
      %v1767 = vpop.f32.mrf.mxu0
      %v1768 = vadd.f32 %v1655, %v1767
      %1769 = vdwg.mxu0
      %1770 = vst [vmem:[%s231] sm:$0xff] %v1675
      %1771 = vst [vmem:[%s231 + $0x8] sm:$0xff] %v1678
      %1772 = vst [vmem:[%s231 + $0x10] sm:$0xff] %v1681
      %1773 = vst [vmem:[%s231 + $0x18] sm:$0xff] %v1684
      %1774 = vst [vmem:[%s231 + $0x20] sm:$0xff] %v1687
      %1775 = vst [vmem:[%s231 + $0x28] sm:$0xff] %v1690
      %1776 = vst [vmem:[%s231 + $0x30] sm:$0xff] %v1693
      %1777 = vst [vmem:[%s231 + $0x38] sm:$0xff] %v1696
      %1778 = vst [vmem:[%s231 + $0x40] sm:$0xff] %v1699
      %1779 = vst [vmem:[%s231 + $0x48] sm:$0xff] %v1702
      %1780 = vst [vmem:[%s231 + $0x50] sm:$0xff] %v1705
      %1781 = vst [vmem:[%s231 + $0x58] sm:$0xff] %v1708
      %1782 = vst [vmem:[%s231 + $0x60] sm:$0xff] %v1711
      %1783 = vst [vmem:[%s231 + $0x68] sm:$0xff] %v1714
      %1784 = vst [vmem:[%s231 + $0x70] sm:$0xff] %v1717
      %1785 = vst [vmem:[%s231 + $0x78] sm:$0xff] %v1720
      %1786 = vst [vmem:[%s231 + $0x80] sm:$0xff] %v1723
      %1787 = vst [vmem:[%s231 + $0x88] sm:$0xff] %v1726
      %1788 = vst [vmem:[%s231 + $0x90] sm:$0xff] %v1729
      %1789 = vst [vmem:[%s231 + $0x98] sm:$0xff] %v1732
      %1790 = vst [vmem:[%s231 + $0xa0] sm:$0xff] %v1735
      %1791 = vst [vmem:[%s231 + $0xa8] sm:$0xff] %v1738
      %1792 = vst [vmem:[%s231 + $0xb0] sm:$0xff] %v1741
      %1793 = vst [vmem:[%s231 + $0xb8] sm:$0xff] %v1744
      %1794 = vst [vmem:[%s231 + $0xc0] sm:$0xff] %v1747
      %1795 = vst [vmem:[%s231 + $0xc8] sm:$0xff] %v1750
      %1796 = vst [vmem:[%s231 + $0xd0] sm:$0xff] %v1753
      %1797 = vst [vmem:[%s231 + $0xd8] sm:$0xff] %v1756
      %1798 = vst [vmem:[%s231 + $0xe0] sm:$0xff] %v1759
      %1799 = vst [vmem:[%s231 + $0xe8] sm:$0xff] %v1762
      %1800 = vst [vmem:[%s231 + $0xf0] sm:$0xff] %v1765
      %1801 = vst [vmem:[%s231 + $0xf8] sm:$0xff] %v1768
      %v1802 = vadd.f32 %v1675, %v1678
      %v1803 = vadd.f32 %v1802, %v1681
      %v1804 = vadd.f32 %v1803, %v1684
      %v1805 = vadd.f32 %v1804, %v1687
      %v1806 = vadd.f32 %v1805, %v1690
      %v1807 = vadd.f32 %v1806, %v1693
      %v1808 = vadd.f32 %v1807, %v1696
      %v1809 = vadd.f32 %v1808, %v1699
      %v1810 = vadd.f32 %v1809, %v1702
      %v1811 = vadd.f32 %v1810, %v1705
      %v1812 = vadd.f32 %v1811, %v1708
      %v1813 = vadd.f32 %v1812, %v1711
      %v1814 = vadd.f32 %v1813, %v1714
      %v1815 = vadd.f32 %v1814, %v1717
      %v1816 = vadd.f32 %v1815, %v1720
      %v1817 = vadd.f32 %v1816, %v1723
      %v1818 = vadd.f32 %v1817, %v1726
      %v1819 = vadd.f32 %v1818, %v1729
      %v1820 = vadd.f32 %v1819, %v1732
      %v1821 = vadd.f32 %v1820, %v1735
      %v1822 = vadd.f32 %v1821, %v1738
      %v1823 = vadd.f32 %v1822, %v1741
      %v1824 = vadd.f32 %v1823, %v1744
      %v1825 = vadd.f32 %v1824, %v1747
      %v1826 = vadd.f32 %v1825, %v1750
      %v1827 = vadd.f32 %v1826, %v1753
      %v1828 = vadd.f32 %v1827, %v1756
      %v1829 = vadd.f32 %v1828, %v1759
      %v1830 = vadd.f32 %v1829, %v1762
      %v1831 = vadd.f32 %v1830, %v1765
      %v1832 = vadd.f32 %v1831, %v1768
      %v1833 = vrot.slane %v1832, 4
      %v1834 = vadd.f32 %v1832, %v1833
      %v1835 = vrot.slane %v1834, 2
      %v1836 = vadd.f32 %v1834, %v1835
      %v1837 = vrot.slane %v1836, 1
      %v1838 = vadd.f32 %v1836, %v1837
      %v1839 = vmul.f32 %v1675, %v1675
      %v1840 = vmul.f32 %v1678, %v1678
      %v1841 = vmul.f32 %v1681, %v1681
      %v1842 = vmul.f32 %v1684, %v1684
      %v1843 = vmul.f32 %v1687, %v1687
      %v1844 = vmul.f32 %v1690, %v1690
      %v1845 = vmul.f32 %v1693, %v1693
      %v1846 = vmul.f32 %v1696, %v1696
      %v1847 = vmul.f32 %v1699, %v1699
      %v1848 = vmul.f32 %v1702, %v1702
      %v1849 = vmul.f32 %v1705, %v1705
      %v1850 = vmul.f32 %v1708, %v1708
      %v1851 = vmul.f32 %v1711, %v1711
      %v1852 = vmul.f32 %v1714, %v1714
      %v1853 = vmul.f32 %v1717, %v1717
      %v1854 = vmul.f32 %v1720, %v1720
      %v1855 = vmul.f32 %v1723, %v1723
      %v1856 = vmul.f32 %v1726, %v1726
      %v1857 = vmul.f32 %v1729, %v1729
      %v1858 = vmul.f32 %v1732, %v1732
      %v1859 = vmul.f32 %v1735, %v1735
      %v1860 = vmul.f32 %v1738, %v1738
      %v1861 = vmul.f32 %v1741, %v1741
      %v1862 = vmul.f32 %v1744, %v1744
      %v1863 = vmul.f32 %v1747, %v1747
      %v1864 = vmul.f32 %v1750, %v1750
      %v1865 = vmul.f32 %v1753, %v1753
      %v1866 = vmul.f32 %v1756, %v1756
      %v1867 = vmul.f32 %v1759, %v1759
      %v1868 = vmul.f32 %v1762, %v1762
      %v1869 = vmul.f32 %v1765, %v1765
      %v1870 = vmul.f32 %v1768, %v1768
      %v1871 = vadd.f32 %v1839, %v1840
      %v1872 = vadd.f32 %v1871, %v1841
      %v1873 = vadd.f32 %v1872, %v1842
      %v1874 = vadd.f32 %v1873, %v1843
      %v1875 = vadd.f32 %v1874, %v1844
      %v1876 = vadd.f32 %v1875, %v1845
      %v1877 = vadd.f32 %v1876, %v1846
      %v1878 = vadd.f32 %v1877, %v1847
      %v1879 = vadd.f32 %v1878, %v1848
      %v1880 = vadd.f32 %v1879, %v1849
      %v1881 = vadd.f32 %v1880, %v1850
      %v1882 = vadd.f32 %v1881, %v1851
      %v1883 = vadd.f32 %v1882, %v1852
      %v1884 = vadd.f32 %v1883, %v1853
      %v1885 = vadd.f32 %v1884, %v1854
      %v1886 = vadd.f32 %v1885, %v1855
      %v1887 = vadd.f32 %v1886, %v1856
      %v1888 = vadd.f32 %v1887, %v1857
      %v1889 = vadd.f32 %v1888, %v1858
      %v1890 = vadd.f32 %v1889, %v1859
      %v1891 = vadd.f32 %v1890, %v1860
      %v1892 = vadd.f32 %v1891, %v1861
      %v1893 = vadd.f32 %v1892, %v1862
      %v1894 = vadd.f32 %v1893, %v1863
      %v1895 = vadd.f32 %v1894, %v1864
      %v1896 = vadd.f32 %v1895, %v1865
      %v1897 = vadd.f32 %v1896, %v1866
      %v1898 = vadd.f32 %v1897, %v1867
      %v1899 = vadd.f32 %v1898, %v1868
      %v1900 = vadd.f32 %v1899, %v1869
      %v1901 = vadd.f32 %v1900, %v1870
      %v1902 = vrot.slane %v1901, 4
      %v1903 = vadd.f32 %v1901, %v1902
      %v1904 = vrot.slane %v1903, 2
      %v1905 = vadd.f32 %v1903, %v1904
      %v1906 = vrot.slane %v1905, 1
      %v1907 = vadd.f32 %v1905, %v1906
      %v1908 = vsel %vm549, %v1838, %v1907
      %1909 = vst [vmem:[%s235] sm:$0x3] %v1908
      %p1910 = scmp.lt.s32.totalorder %s17, 1
      %s1911 = scalar_select %p1910, %s17, 1
      %s1912 = smul.addr %s1911, 32
      %s1913 = smul.addr %s1912, 8
      %s1914 = scalar_lea.vmem %s4, %s1913
      %p1915 = scmp.lt.s32.totalorder %s17, 1
      %s1916 = scalar_select %p1915, %s17, 1
      %s1917 = smul.addr %s1916, 2
      %s1918 = scalar_lea.vmem %s5, %s1917
      // Predicated region
      $region37: #{double_conv.4} parent=35 // pred_check
        %p1919 = pneg %p124
      $region38: #{double_conv.4} parent=35 // pred_check_branch
        %1921 = sbr.rel (%p1919) target = $region40
      $region39: #{double_conv.4} parent=35 // pred_region
        _
      $region40: #{double_conv.4} parent=35 // pred_fallthru
        _
      // Predicated region
      $region41: #{double_conv.4} parent=35 // pred_check
        %p1922 = pneg %p150
      $region42: #{double_conv.4} parent=35 // pred_check_branch
        %1924 = sbr.rel (%p1922) target = $region44
      $region43: #{double_conv.4} parent=35 // pred_region
        _
      $region44: #{double_conv.4} parent=35 // pred_fallthru
        _
    $region36: #{double_conv.4} parent=5 // pred_fallthru
      _
    %p1925 = scmp.le.s32.totalorder 2, %s12
    // Predicated region
    $region45: #{double_conv.4} parent=5 // pred_check
      %p1926 = pneg %p1925
    $region46: #{double_conv.4} parent=5 // pred_check_branch
      %1928 = sbr.rel (%p1926) target = $region48
    $region47: #{double_conv.4} parent=5 // pred_region
      %s1929 = ssub.s32 %s12, 2
      // Predicated region
      $region49: #{double_conv.4} parent=47 // pred_check
        %p1930 = pneg %p130
      $region50: #{double_conv.4} parent=47 // pred_check_branch
        %1932 = sbr.rel (%p1930) target = $region52
      $region51: #{double_conv.4} parent=47 // pred_region
        %p1933 = scmp.lt.s32.totalorder %s18, 1
        %s1934 = scalar_select %p1933, %s18, 1
        %s1935 = smul.addr %s1934, 32
        %s1936 = smul.addr %s1935, 8
        %s1937 = scalar_lea.vmem %s4, %s1936
      $region52: #{double_conv.4} parent=47 // pred_fallthru
        _
      // Predicated region
      $region53: #{double_conv.4} parent=47 // pred_check
        %p1938 = pneg %p156
      $region54: #{double_conv.4} parent=47 // pred_check_branch
        %1940 = sbr.rel (%p1938) target = $region56
      $region55: #{double_conv.4} parent=47 // pred_region
        %p1941 = scmp.lt.s32.totalorder %s18, 1
        %s1942 = scalar_select %p1941, %s18, 1
        %s1943 = smul.addr %s1942, 2
        %s1944 = scalar_lea.vmem %s5, %s1943
      $region56: #{double_conv.4} parent=47 // pred_fallthru
        _
    $region48: #{double_conv.4} parent=5 // pred_fallthru
      _
  $region6: #{double_conv.4} parent=0 // loop_footer
    %s16 = sadd.s32 1, %s12
  $region7: #{double_conv.4} parent=0 // loop_footer_branch
    %11 = sbr.rel target = $region3
  $region8: #{double_conv.4} parent=0 // loop_exit
    _

</llo_original>
